<compile_context>
chip_gen: v7x
topology: tpu7x:2x2x1
jax: 0.10.0
libtpu: 0.0.40
codegen_flags: <defaults>
</compile_context>

<pallas_src>
import functools

import jax
import jax.numpy as jnp
from jax.experimental import pallas as pl
from jax.experimental.pallas import tpu as pltpu

LANE = 128


def _round_up(x, m):
    return ((x + m - 1) // m) * m


def _pad_to(x, shape):
    return jnp.pad(x, [(0, s - d) for d, s in zip(x.shape, shape)])


# ----------------------------------------------------------------------------
# Pallas kernel: one SAGEConv('lstm') layer (+ fused activation / dropout)
# ----------------------------------------------------------------------------
def sage_lstm_layer_kernel(deg_ref, nb_ref, x_ref, drop_ref,
                           wih_t_ref, whh_t_ref, b_lstm_ref,
                           wself_t_ref, wneigh_t_ref, bias_ref,
                           out_ref, h_scr, c_scr,
                           *, num_steps, apply_relu_dropout, apply_sigmoid):
    TN, L, D = nb_ref.shape          # D is the lane-padded in_feats (= lstm hidden)

    # Hoisted input-gate matmul: one (TN*L, D) x (D, 4D) MXU pass instead of L
    # small pushes inside the serial recurrence.  bf16 operands, f32 accumulate.
    nb2 = nb_ref[...].reshape(TN * L, D)                                  # bf16
    gx = (jnp.dot(nb2, wih_t_ref[...], preferred_element_type=jnp.float32)
          + b_lstm_ref[...])                                              # (TN*L, 4D) f32
    gx = gx.reshape(TN, L, 4 * D)

    # zero initial LSTM state (matches DGL's _lstm_reducer)
    h_scr[...] = jnp.zeros_like(h_scr)
    c_scr[...] = jnp.zeros_like(c_scr)

    whh_t = whh_t_ref[...]                                                # (D, 4D) bf16
    deg = deg_ref[...]                                                    # (TN, 1) f32

    # Masked LSTM over the padded neighbor sequence; a node of in-degree d ends
    # up with the hidden state after exactly d steps.  Only the recurrent
    # h_prev @ W_hh^T matmul remains inside the serial loop.
    for t in range(num_steps):
        h_prev = h_scr[...]
        c_prev = c_scr[...]
        gates = gx[:, t, :] + jnp.dot(h_prev.astype(jnp.bfloat16), whh_t,
                                      preferred_element_type=jnp.float32)  # (TN, 4D)
        i_g = jax.nn.sigmoid(gates[:, 0 * D:1 * D])
        f_g = jax.nn.sigmoid(gates[:, 1 * D:2 * D])
        g_g = jnp.tanh(gates[:, 2 * D:3 * D])
        o_g = jax.nn.sigmoid(gates[:, 3 * D:4 * D])
        c_new = f_g * c_prev + i_g * g_g
        h_new = o_g * jnp.tanh(c_new)
        live = deg > float(t)                                             # (TN, 1) bool
        h_scr[...] = jnp.where(live, h_new, h_prev)
        c_scr[...] = jnp.where(live, c_new, c_prev)

    neigh = h_scr[...]                                                    # (TN, D) f32

    # rst = fc_self(h_self) + fc_neigh(h_neigh) + bias
    out = (jnp.dot(x_ref[...], wself_t_ref[...],
                   preferred_element_type=jnp.float32)
           + jnp.dot(neigh.astype(jnp.bfloat16), wneigh_t_ref[...],
                     preferred_element_type=jnp.float32)
           + bias_ref[...])                                               # (TN, DoutP)

    if apply_relu_dropout:
        out = jnp.maximum(out, 0.0)                                       # F.relu
        # nn.Dropout(0.5) built inside forward() -> training mode -> active.
        # Inverted-dropout scale mask is precomputed in the wrapper (no TPU-only
        # PRNG primitive, so this also runs under interpret mode).
        out = out * drop_ref[...]

    if apply_sigmoid:
        out = jax.nn.sigmoid(out)                                         # torch.sigmoid

    out_ref[...] = out.astype(out_ref.dtype)


# ----------------------------------------------------------------------------
# Wrapper for one SAGEConv('lstm') layer
# ----------------------------------------------------------------------------
def sage_conv_lstm(h, nb_idx, deg, params, *, relu_dropout, sigmoid,
                   dropout_key=None, dropout_p=0.5,
                   out_dtype=jnp.bfloat16, tile_nodes=256):
    N = h.shape[0]
    L = nb_idx.shape[1]
    D = params["wih"].shape[1]            # logical in_feats (= LSTM hidden)
    Dout = params["wself"].shape[0]       # logical out_feats

    Dp = _round_up(D, LANE)
    DoutP = _round_up(Dout, LANE)

    # --- pad node features to Dp lanes (pad channels stay exactly zero) ---
    h_b = h.astype(jnp.bfloat16)
    h_b = _pad_to(h_b, (N, Dp))

    # --- pad & transpose weights; gate-blocked padding keeps PyTorch's
    #     [i, f, g, o] layout on 128-lane boundaries ---
    def pad_gates_mat(w):                 # (4D, D) -> (Dp, 4Dp), bf16
        w4 = _pad_to(w.reshape(4, D, D), (4, Dp, Dp))
        return w4.reshape(4 * Dp, Dp).T.astype(jnp.bfloat16)

    def pad_gates_vec(b):                 # (4D,) -> (1, 4Dp), f32
        b4 = _pad_to(b.reshape(4, D), (4, Dp))
        return b4.reshape(1, 4 * Dp).astype(jnp.float32)

    wih_t = pad_gates_mat(params["wih"])                               # (Dp, 4Dp)
    whh_t = pad_gates_mat(params["whh"])                               # (Dp, 4Dp)
    b_lstm = pad_gates_vec(params["bih"] + params["bhh"])              # (1, 4Dp)
    wself_t = _pad_to(params["wself"], (DoutP, Dp)).T.astype(jnp.bfloat16)   # (Dp, DoutP)
    wneigh_t = _pad_to(params["wneigh"], (DoutP, Dp)).T.astype(jnp.bfloat16)  # (Dp, DoutP)
    bias = _pad_to(params["bias"], (DoutP,)).reshape(1, DoutP).astype(jnp.float32)

    # --- node tiling: big sublane-aligned tiles, pad the remainder rows ---
    tn = min(tile_nodes, _round_up(N, 8))
    Np = _round_up(N, tn)

    # Glue: gather padded in-neighbor features (message = copy_u).  Padded slots
    # / padded rows are neutralised in-kernel by the degree mask, so no
    # wrapper-side mask multiply (extra HBM round-trip) is needed.
    # TODO(synk): a DMA gather inside the kernel (scalar-prefetched nb_idx +
    # memory_space=pl.ANY on h) would avoid materialising this L-x duplicated
    # tensor in HBM; kept as plain-JAX indexing here for robustness.
    nb_feats = _pad_to(h_b[nb_idx], (Np, L, Dp))                       # (Np, L, Dp) bf16
    h_b = _pad_to(h_b, (Np, Dp))                                       # (Np, Dp)  bf16
    deg_col = _pad_to(deg.astype(jnp.float32), (Np,)).reshape(Np, 1)   # (Np, 1)

    if relu_dropout:
        keep = jax.random.bernoulli(dropout_key, 1.0 - dropout_p, (Np, DoutP))
        drop = keep.astype(jnp.float32) * (1.0 / (1.0 - dropout_p))
    else:
        drop = jnp.ones((Np, DoutP), jnp.float32)

    kernel = functools.partial(
        sage_lstm_layer_kernel,
        num_steps=L,
        apply_relu_dropout=relu_dropout,
        apply_sigmoid=sigmoid,
    )

    grid = (Np // tn,)
    out = pl.pallas_call(
        kernel,
        out_shape=jax.ShapeDtypeStruct((Np, DoutP), out_dtype),
        grid=grid,
        in_specs=[
            pl.BlockSpec((tn, 1), lambda i: (i, 0)),            # in-degrees
            pl.BlockSpec((tn, L, Dp), lambda i: (i, 0, 0)),     # neighbor feats
            pl.BlockSpec((tn, Dp), lambda i: (i, 0)),           # self feats
            pl.BlockSpec((tn, DoutP), lambda i: (i, 0)),        # dropout scale mask
            pl.BlockSpec((Dp, 4 * Dp), lambda i: (0, 0)),       # W_ih^T (padded)
            pl.BlockSpec((Dp, 4 * Dp), lambda i: (0, 0)),       # W_hh^T (padded)
            pl.BlockSpec((1, 4 * Dp), lambda i: (0, 0)),        # b_ih + b_hh
            pl.BlockSpec((Dp, DoutP), lambda i: (0, 0)),        # fc_self W^T
            pl.BlockSpec((Dp, DoutP), lambda i: (0, 0)),        # fc_neigh W^T
            pl.BlockSpec((1, DoutP), lambda i: (0, 0)),         # SAGEConv bias
        ],
        out_specs=pl.BlockSpec((tn, DoutP), lambda i: (i, 0)),
        scratch_shapes=[
            pltpu.VMEM((tn, Dp), jnp.float32),                  # LSTM h state
            pltpu.VMEM((tn, Dp), jnp.float32),                  # LSTM c state
        ],
        compiler_params=pltpu.CompilerParams(
            dimension_semantics=("parallel",)),                 # node tiles independent
    )(deg_col, nb_feats, h_b, drop, wih_t, whh_t, b_lstm,
      wself_t, wneigh_t, bias)

    # Keep the lane-padded feature dim for the next layer; drop padded rows.
    return out[:N]


# ----------------------------------------------------------------------------
# Full GraphSAGE forward: conv1..conv4 with fused relu/dropout/sigmoid
# ----------------------------------------------------------------------------
def graphsage_forward(params, nb_idx, deg, x, key):
    k1, k2, k3 = jax.random.split(key, 3)
    h = sage_conv_lstm(x, nb_idx, deg, params["conv1"],
                       relu_dropout=True, sigmoid=False, dropout_key=k1)
    h = sage_conv_lstm(h, nb_idx, deg, params["conv2"],
                       relu_dropout=True, sigmoid=False, dropout_key=k2)
    h = sage_conv_lstm(h, nb_idx, deg, params["conv3"],
                       relu_dropout=True, sigmoid=False, dropout_key=k3)
    h = sage_conv_lstm(h, nb_idx, deg, params["conv4"],
                       relu_dropout=False, sigmoid=True,
                       out_dtype=jnp.float32)
    d_out = params["conv4"]["wself"].shape[0]
    return h[:, :d_out]                                         # strip lane padding


# ----------------------------------------------------------------------------
# Deterministic parameter init (shapes follow dgl.nn.SAGEConv(din, dout,'lstm'))
# ----------------------------------------------------------------------------
def init_sage_layer(key, din, dout):
    ks = jax.random.split(key, 7)
    u = lambda k, shape, fan: jax.random.uniform(
        k, shape, jnp.float32, -1.0 / jnp.sqrt(fan), 1.0 / jnp.sqrt(fan))
    return {
        "wih": u(ks[0], (4 * din, din), din),      # nn.LSTM weight_ih_l0
        "whh": u(ks[1], (4 * din, din), din),      # nn.LSTM weight_hh_l0
        "bih": u(ks[2], (4 * din,), din),
        "bhh": u(ks[3], (4 * din,), din),
        "wself": u(ks[4], (dout, din), din),       # fc_self (bias=False)
        "wneigh": u(ks[5], (dout, din), din),      # fc_neigh (bias=False)
        "bias": u(ks[6], (dout,), din),            # SAGEConv bias
    }


def init_params(key, in_feats, h_feats):
    k1, k2, k3, k4 = jax.random.split(key, 4)
    return {
        "conv1": init_sage_layer(k1, in_feats, h_feats),
        "conv2": init_sage_layer(k2, h_feats, 100),
        "conv3": init_sage_layer(k3, 100, h_feats),
        "conv4": init_sage_layer(k4, h_feats, 1),
    }


# TODO(synk): graph construction via networkx/DGL has no Pallas equivalent; the
# graph is represented here as a padded in-neighbor index table + in-degrees.

if __name__ == "__main__":
    key = jax.random.PRNGKey(0)
    k_graph, k_deg, k_feat, k_param, k_drop = jax.random.split(key, 5)

    N, L = 16, 4          # nodes, max in-degree (padded neighbor slots)
    in_feats, h_feats = 8, 32

    # deterministic synthetic graph: padded in-neighbor indices + in-degrees
    nb_idx = jax.random.randint(k_graph, (N, L), 0, N, dtype=jnp.int32)
    deg = jax.random.randint(k_deg, (N,), 0, L + 1, dtype=jnp.int32)

    x = jax.random.normal(k_feat, (N, in_feats), dtype=jnp.float32)
    params = init_params(k_param, in_feats, h_feats)

    out = graphsage_forward(params, nb_idx, deg, x, key=k_drop)
    out = jax.block_until_ready(out)

    assert out.shape == (N, 1)
    assert bool(jnp.all(jnp.isfinite(out)))
    assert bool(jnp.all((out >= 0.0) & (out <= 1.0)))   # sigmoid output range
    print("KERNEL_OK")
</pallas_src>

<mosaic_0001>
module attributes {stable_mosaic.version = 11 : i64} {
  func.func @sage_lstm_layer_kernel(%arg0: i32, %arg1: memref<16x1xf32, #tpu.memory_space<vmem>>, %arg2: memref<16x4x128xbf16, #tpu.memory_space<vmem>>, %arg3: memref<16x128xbf16, #tpu.memory_space<vmem>>, %arg4: memref<16x128xf32, #tpu.memory_space<vmem>>, %arg5: memref<128x512xbf16, #tpu.memory_space<vmem>>, %arg6: memref<128x512xbf16, #tpu.memory_space<vmem>>, %arg7: memref<1x512xf32, #tpu.memory_space<vmem>>, %arg8: memref<128x128xbf16, #tpu.memory_space<vmem>>, %arg9: memref<128x128xbf16, #tpu.memory_space<vmem>>, %arg10: memref<1x128xf32, #tpu.memory_space<vmem>>, %arg11: memref<16x128xbf16, #tpu.memory_space<vmem>>, %arg12: memref<16x128xf32, #tpu.memory_space<vmem>>, %arg13: memref<16x128xf32, #tpu.memory_space<vmem>>) attributes {dimension_semantics = [#tpu.dimension_semantics<parallel>], iteration_bounds = array<i64: 1>, scalar_prefetch = 0 : i64, scratch_operands = 2 : i64, tpu.core_type = #tpu.core_type<tc>, window_params = [{transform_indices = @transform_0, window_bounds = array<i64: 16, 1>}, {transform_indices = @transform_1, window_bounds = array<i64: 16, 4, 128>}, {transform_indices = @transform_2, window_bounds = array<i64: 16, 128>}, {transform_indices = @transform_3, window_bounds = array<i64: 16, 128>}, {pipeline_mode = #tpu.pipeline_mode<synchronous>, transform_indices = @transform_4, window_bounds = array<i64: 128, 512>}, {pipeline_mode = #tpu.pipeline_mode<synchronous>, transform_indices = @transform_5, window_bounds = array<i64: 128, 512>}, {pipeline_mode = #tpu.pipeline_mode<synchronous>, transform_indices = @transform_6, window_bounds = array<i64: 1, 512>}, {pipeline_mode = #tpu.pipeline_mode<synchronous>, transform_indices = @transform_7, window_bounds = array<i64: 128, 128>}, {pipeline_mode = #tpu.pipeline_mode<synchronous>, transform_indices = @transform_8, window_bounds = array<i64: 128, 128>}, {pipeline_mode = #tpu.pipeline_mode<synchronous>, transform_indices = @transform_9, window_bounds = array<i64: 1, 128>}, {transform_indices = @transform_10, window_bounds = array<i64: 16, 128>}]} {
    %c0 = arith.constant 0 : index
    %c0_0 = arith.constant 0 : index
    %c0_1 = arith.constant 0 : index
    %0 = vector.load %arg2[%c0, %c0_0, %c0_1] : memref<16x4x128xbf16, #tpu.memory_space<vmem>>, vector<16x4x128xbf16>
    %1 = vector.shape_cast %0 : vector<16x4x128xbf16> to vector<64x128xbf16>
    %c0_2 = arith.constant 0 : index
    %c0_3 = arith.constant 0 : index
    %2 = vector.load %arg5[%c0_2, %c0_3] : memref<128x512xbf16, #tpu.memory_space<vmem>>, vector<128x512xbf16>
    %cst = arith.constant dense<0.000000e+00> : vector<64x512xf32>
    %3 = tpu.matmul %1, %2, %cst {dimension_numbers = #tpu.dot_dimension_numbers<[1], [0], [0], [1], [0, 0, 1, 1], [], []>} : vector<64x128xbf16>, vector<128x512xbf16>, vector<64x512xf32> -> vector<64x512xf32>
    %c0_4 = arith.constant 0 : index
    %c0_5 = arith.constant 0 : index
    %4 = vector.load %arg7[%c0_4, %c0_5] : memref<1x512xf32, #tpu.memory_space<vmem>>, vector<1x512xf32>
    %5 = vector.broadcast %4 : vector<1x512xf32> to vector<64x512xf32>
    %6 = arith.addf %3, %5 : vector<64x512xf32>
    %7 = vector.shape_cast %6 : vector<64x512xf32> to vector<16x4x512xf32>
    %cst_6 = arith.constant 0.000000e+00 : f32
    %8 = vector.broadcast %cst_6 : f32 to vector<16x128xf32>
    %c0_7 = arith.constant 0 : index
    %c0_8 = arith.constant 0 : index
    %9 = vector.load %arg12[%c0_7, %c0_8] : memref<16x128xf32, #tpu.memory_space<vmem>>, vector<16x128xf32>
    tpu.vector_store %arg12[%c0_7, %c0_8], %8 {strides = array<i32>} : memref<16x128xf32, #tpu.memory_space<vmem>>, vector<16x128xf32>,
    %cst_9 = arith.constant 0.000000e+00 : f32
    %10 = vector.broadcast %cst_9 : f32 to vector<16x128xf32>
    %c0_10 = arith.constant 0 : index
    %c0_11 = arith.constant 0 : index
    %11 = vector.load %arg13[%c0_10, %c0_11] : memref<16x128xf32, #tpu.memory_space<vmem>>, vector<16x128xf32>
    tpu.vector_store %arg13[%c0_10, %c0_11], %10 {strides = array<i32>} : memref<16x128xf32, #tpu.memory_space<vmem>>, vector<16x128xf32>,
    %c0_12 = arith.constant 0 : index
    %c0_13 = arith.constant 0 : index
    %12 = vector.load %arg6[%c0_12, %c0_13] : memref<128x512xbf16, #tpu.memory_space<vmem>>, vector<128x512xbf16>
    %c0_14 = arith.constant 0 : index
    %c0_15 = arith.constant 0 : index
    %13 = vector.load %arg1[%c0_14, %c0_15] : memref<16x1xf32, #tpu.memory_space<vmem>>, vector<16x1xf32>
    %c0_16 = arith.constant 0 : index
    %c0_17 = arith.constant 0 : index
    %14 = vector.load %arg12[%c0_16, %c0_17] : memref<16x128xf32, #tpu.memory_space<vmem>>, vector<16x128xf32>
    %c0_18 = arith.constant 0 : index
    %c0_19 = arith.constant 0 : index
    %15 = vector.load %arg13[%c0_18, %c0_19] : memref<16x128xf32, #tpu.memory_space<vmem>>, vector<16x128xf32>
    %16 = vector.extract_strided_slice %7 {offsets = [0, 0, 0], sizes = [16, 1, 512], strides = [1, 1, 1]} : vector<16x4x512xf32> to vector<16x1x512xf32>
    %17 = vector.shape_cast %16 : vector<16x1x512xf32> to vector<16x512xf32>
    %18 = arith.truncf %14 : vector<16x128xf32> to vector<16x128xbf16>
    %cst_20 = arith.constant dense<0.000000e+00> : vector<16x512xf32>
    %19 = tpu.matmul %18, %12, %cst_20 {dimension_numbers = #tpu.dot_dimension_numbers<[1], [0], [0], [1], [0, 0, 1, 1], [], []>} : vector<16x128xbf16>, vector<128x512xbf16>, vector<16x512xf32> -> vector<16x512xf32>
    %20 = arith.addf %17, %19 : vector<16x512xf32>
    %21 = vector.extract_strided_slice %20 {offsets = [0, 0], sizes = [16, 128], strides = [1, 1]} : vector<16x512xf32> to vector<16x128xf32>
    %22 = arith.negf %21 : vector<16x128xf32>
    %23 = math.exp %22 : vector<16x128xf32>
    %cst_21 = arith.constant 1.000000e+00 : f32
    %24 = vector.broadcast %cst_21 : f32 to vector<16x128xf32>
    %25 = arith.addf %24, %23 : vector<16x128xf32>
    %26 = arith.divf %24, %25 : vector<16x128xf32>
    %27 = vector.extract_strided_slice %20 {offsets = [0, 128], sizes = [16, 128], strides = [1, 1]} : vector<16x512xf32> to vector<16x128xf32>
    %28 = arith.negf %27 : vector<16x128xf32>
    %29 = math.exp %28 : vector<16x128xf32>
    %cst_22 = arith.constant 1.000000e+00 : f32
    %30 = vector.broadcast %cst_22 : f32 to vector<16x128xf32>
    %31 = arith.addf %30, %29 : vector<16x128xf32>
    %32 = arith.divf %30, %31 : vector<16x128xf32>
    %33 = vector.extract_strided_slice %20 {offsets = [0, 256], sizes = [16, 128], strides = [1, 1]} : vector<16x512xf32> to vector<16x128xf32>
    %34 = math.tanh %33 : vector<16x128xf32>
    %35 = vector.extract_strided_slice %20 {offsets = [0, 384], sizes = [16, 128], strides = [1, 1]} : vector<16x512xf32> to vector<16x128xf32>
    %36 = arith.negf %35 : vector<16x128xf32>
    %37 = math.exp %36 : vector<16x128xf32>
    %cst_23 = arith.constant 1.000000e+00 : f32
    %38 = vector.broadcast %cst_23 : f32 to vector<16x128xf32>
    %39 = arith.addf %38, %37 : vector<16x128xf32>
    %40 = arith.divf %38, %39 : vector<16x128xf32>
    %41 = arith.mulf %32, %15 : vector<16x128xf32>
    %42 = arith.mulf %26, %34 : vector<16x128xf32>
    %43 = arith.addf %41, %42 : vector<16x128xf32>
    %44 = math.tanh %43 : vector<16x128xf32>
    %45 = arith.mulf %40, %44 : vector<16x128xf32>
    %cst_24 = arith.constant 0.000000e+00 : f32
    %46 = vector.broadcast %cst_24 : f32 to vector<16x1xf32>
    %47 = arith.cmpf ogt, %13, %46 : vector<16x1xf32>
    %48 = vector.shape_cast %47 : vector<16x1xi1> to vector<16x1xi1>
    %49 = vector.broadcast %48 : vector<16x1xi1> to vector<16x128xi1>
    %50 = arith.select %49, %45, %14 : vector<16x128xi1>, vector<16x128xf32>
    %c0_25 = arith.constant 0 : index
    %c0_26 = arith.constant 0 : index
    %51 = vector.load %arg12[%c0_25, %c0_26] : memref<16x128xf32, #tpu.memory_space<vmem>>, vector<16x128xf32>
    tpu.vector_store %arg12[%c0_25, %c0_26], %50 {strides = array<i32>} : memref<16x128xf32, #tpu.memory_space<vmem>>, vector<16x128xf32>,
    %52 = vector.shape_cast %47 : vector<16x1xi1> to vector<16x1xi1>
    %53 = vector.broadcast %52 : vector<16x1xi1> to vector<16x128xi1>
    %54 = arith.select %53, %43, %15 : vector<16x128xi1>, vector<16x128xf32>
    %c0_27 = arith.constant 0 : index
    %c0_28 = arith.constant 0 : index
    %55 = vector.load %arg13[%c0_27, %c0_28] : memref<16x128xf32, #tpu.memory_space<vmem>>, vector<16x128xf32>
    tpu.vector_store %arg13[%c0_27, %c0_28], %54 {strides = array<i32>} : memref<16x128xf32, #tpu.memory_space<vmem>>, vector<16x128xf32>,
    %c0_29 = arith.constant 0 : index
    %c0_30 = arith.constant 0 : index
    %56 = vector.load %arg12[%c0_29, %c0_30] : memref<16x128xf32, #tpu.memory_space<vmem>>, vector<16x128xf32>
    %c0_31 = arith.constant 0 : index
    %c0_32 = arith.constant 0 : index
    %57 = vector.load %arg13[%c0_31, %c0_32] : memref<16x128xf32, #tpu.memory_space<vmem>>, vector<16x128xf32>
    %58 = vector.extract_strided_slice %7 {offsets = [0, 1, 0], sizes = [16, 1, 512], strides = [1, 1, 1]} : vector<16x4x512xf32> to vector<16x1x512xf32>
    %59 = vector.shape_cast %58 : vector<16x1x512xf32> to vector<16x512xf32>
    %60 = arith.truncf %56 : vector<16x128xf32> to vector<16x128xbf16>
    %cst_33 = arith.constant dense<0.000000e+00> : vector<16x512xf32>
    %61 = tpu.matmul %60, %12, %cst_33 {dimension_numbers = #tpu.dot_dimension_numbers<[1], [0], [0], [1], [0, 0, 1, 1], [], []>} : vector<16x128xbf16>, vector<128x512xbf16>, vector<16x512xf32> -> vector<16x512xf32>
    %62 = arith.addf %59, %61 : vector<16x512xf32>
    %63 = vector.extract_strided_slice %62 {offsets = [0, 0], sizes = [16, 128], strides = [1, 1]} : vector<16x512xf32> to vector<16x128xf32>
    %64 = arith.negf %63 : vector<16x128xf32>
    %65 = math.exp %64 : vector<16x128xf32>
    %cst_34 = arith.constant 1.000000e+00 : f32
    %66 = vector.broadcast %cst_34 : f32 to vector<16x128xf32>
    %67 = arith.addf %66, %65 : vector<16x128xf32>
    %68 = arith.divf %66, %67 : vector<16x128xf32>
    %69 = vector.extract_strided_slice %62 {offsets = [0, 128], sizes = [16, 128], strides = [1, 1]} : vector<16x512xf32> to vector<16x128xf32>
    %70 = arith.negf %69 : vector<16x128xf32>
    %71 = math.exp %70 : vector<16x128xf32>
    %cst_35 = arith.constant 1.000000e+00 : f32
    %72 = vector.broadcast %cst_35 : f32 to vector<16x128xf32>
    %73 = arith.addf %72, %71 : vector<16x128xf32>
    %74 = arith.divf %72, %73 : vector<16x128xf32>
    %75 = vector.extract_strided_slice %62 {offsets = [0, 256], sizes = [16, 128], strides = [1, 1]} : vector<16x512xf32> to vector<16x128xf32>
    %76 = math.tanh %75 : vector<16x128xf32>
    %77 = vector.extract_strided_slice %62 {offsets = [0, 384], sizes = [16, 128], strides = [1, 1]} : vector<16x512xf32> to vector<16x128xf32>
    %78 = arith.negf %77 : vector<16x128xf32>
    %79 = math.exp %78 : vector<16x128xf32>
    %cst_36 = arith.constant 1.000000e+00 : f32
    %80 = vector.broadcast %cst_36 : f32 to vector<16x128xf32>
    %81 = arith.addf %80, %79 : vector<16x128xf32>
    %82 = arith.divf %80, %81 : vector<16x128xf32>
    %83 = arith.mulf %74, %57 : vector<16x128xf32>
    %84 = arith.mulf %68, %76 : vector<16x128xf32>
    %85 = arith.addf %83, %84 : vector<16x128xf32>
    %86 = math.tanh %85 : vector<16x128xf32>
    %87 = arith.mulf %82, %86 : vector<16x128xf32>
    %cst_37 = arith.constant 1.000000e+00 : f32
    %88 = vector.broadcast %cst_37 : f32 to vector<16x1xf32>
    %89 = arith.cmpf ogt, %13, %88 : vector<16x1xf32>
    %90 = vector.shape_cast %89 : vector<16x1xi1> to vector<16x1xi1>
    %91 = vector.broadcast %90 : vector<16x1xi1> to vector<16x128xi1>
    %92 = arith.select %91, %87, %56 : vector<16x128xi1>, vector<16x128xf32>
    %c0_38 = arith.constant 0 : index
    %c0_39 = arith.constant 0 : index
    %93 = vector.load %arg12[%c0_38, %c0_39] : memref<16x128xf32, #tpu.memory_space<vmem>>, vector<16x128xf32>
    tpu.vector_store %arg12[%c0_38, %c0_39], %92 {strides = array<i32>} : memref<16x128xf32, #tpu.memory_space<vmem>>, vector<16x128xf32>,
    %94 = vector.shape_cast %89 : vector<16x1xi1> to vector<16x1xi1>
    %95 = vector.broadcast %94 : vector<16x1xi1> to vector<16x128xi1>
    %96 = arith.select %95, %85, %57 : vector<16x128xi1>, vector<16x128xf32>
    %c0_40 = arith.constant 0 : index
    %c0_41 = arith.constant 0 : index
    %97 = vector.load %arg13[%c0_40, %c0_41] : memref<16x128xf32, #tpu.memory_space<vmem>>, vector<16x128xf32>
    tpu.vector_store %arg13[%c0_40, %c0_41], %96 {strides = array<i32>} : memref<16x128xf32, #tpu.memory_space<vmem>>, vector<16x128xf32>,
    %c0_42 = arith.constant 0 : index
    %c0_43 = arith.constant 0 : index
    %98 = vector.load %arg12[%c0_42, %c0_43] : memref<16x128xf32, #tpu.memory_space<vmem>>, vector<16x128xf32>
    %c0_44 = arith.constant 0 : index
    %c0_45 = arith.constant 0 : index
    %99 = vector.load %arg13[%c0_44, %c0_45] : memref<16x128xf32, #tpu.memory_space<vmem>>, vector<16x128xf32>
    %100 = vector.extract_strided_slice %7 {offsets = [0, 2, 0], sizes = [16, 1, 512], strides = [1, 1, 1]} : vector<16x4x512xf32> to vector<16x1x512xf32>
    %101 = vector.shape_cast %100 : vector<16x1x512xf32> to vector<16x512xf32>
    %102 = arith.truncf %98 : vector<16x128xf32> to vector<16x128xbf16>
    %cst_46 = arith.constant dense<0.000000e+00> : vector<16x512xf32>
    %103 = tpu.matmul %102, %12, %cst_46 {dimension_numbers = #tpu.dot_dimension_numbers<[1], [0], [0], [1], [0, 0, 1, 1], [], []>} : vector<16x128xbf16>, vector<128x512xbf16>, vector<16x512xf32> -> vector<16x512xf32>
    %104 = arith.addf %101, %103 : vector<16x512xf32>
    %105 = vector.extract_strided_slice %104 {offsets = [0, 0], sizes = [16, 128], strides = [1, 1]} : vector<16x512xf32> to vector<16x128xf32>
    %106 = arith.negf %105 : vector<16x128xf32>
    %107 = math.exp %106 : vector<16x128xf32>
    %cst_47 = arith.constant 1.000000e+00 : f32
    %108 = vector.broadcast %cst_47 : f32 to vector<16x128xf32>
    %109 = arith.addf %108, %107 : vector<16x128xf32>
    %110 = arith.divf %108, %109 : vector<16x128xf32>
    %111 = vector.extract_strided_slice %104 {offsets = [0, 128], sizes = [16, 128], strides = [1, 1]} : vector<16x512xf32> to vector<16x128xf32>
    %112 = arith.negf %111 : vector<16x128xf32>
    %113 = math.exp %112 : vector<16x128xf32>
    %cst_48 = arith.constant 1.000000e+00 : f32
    %114 = vector.broadcast %cst_48 : f32 to vector<16x128xf32>
    %115 = arith.addf %114, %113 : vector<16x128xf32>
    %116 = arith.divf %114, %115 : vector<16x128xf32>
    %117 = vector.extract_strided_slice %104 {offsets = [0, 256], sizes = [16, 128], strides = [1, 1]} : vector<16x512xf32> to vector<16x128xf32>
    %118 = math.tanh %117 : vector<16x128xf32>
    %119 = vector.extract_strided_slice %104 {offsets = [0, 384], sizes = [16, 128], strides = [1, 1]} : vector<16x512xf32> to vector<16x128xf32>
    %120 = arith.negf %119 : vector<16x128xf32>
    %121 = math.exp %120 : vector<16x128xf32>
    %cst_49 = arith.constant 1.000000e+00 : f32
    %122 = vector.broadcast %cst_49 : f32 to vector<16x128xf32>
    %123 = arith.addf %122, %121 : vector<16x128xf32>
    %124 = arith.divf %122, %123 : vector<16x128xf32>
    %125 = arith.mulf %116, %99 : vector<16x128xf32>
    %126 = arith.mulf %110, %118 : vector<16x128xf32>
    %127 = arith.addf %125, %126 : vector<16x128xf32>
    %128 = math.tanh %127 : vector<16x128xf32>
    %129 = arith.mulf %124, %128 : vector<16x128xf32>
    %cst_50 = arith.constant 2.000000e+00 : f32
    %130 = vector.broadcast %cst_50 : f32 to vector<16x1xf32>
    %131 = arith.cmpf ogt, %13, %130 : vector<16x1xf32>
    %132 = vector.shape_cast %131 : vector<16x1xi1> to vector<16x1xi1>
    %133 = vector.broadcast %132 : vector<16x1xi1> to vector<16x128xi1>
    %134 = arith.select %133, %129, %98 : vector<16x128xi1>, vector<16x128xf32>
    %c0_51 = arith.constant 0 : index
    %c0_52 = arith.constant 0 : index
    %135 = vector.load %arg12[%c0_51, %c0_52] : memref<16x128xf32, #tpu.memory_space<vmem>>, vector<16x128xf32>
    tpu.vector_store %arg12[%c0_51, %c0_52], %134 {strides = array<i32>} : memref<16x128xf32, #tpu.memory_space<vmem>>, vector<16x128xf32>,
    %136 = vector.shape_cast %131 : vector<16x1xi1> to vector<16x1xi1>
    %137 = vector.broadcast %136 : vector<16x1xi1> to vector<16x128xi1>
    %138 = arith.select %137, %127, %99 : vector<16x128xi1>, vector<16x128xf32>
    %c0_53 = arith.constant 0 : index
    %c0_54 = arith.constant 0 : index
    %139 = vector.load %arg13[%c0_53, %c0_54] : memref<16x128xf32, #tpu.memory_space<vmem>>, vector<16x128xf32>
    tpu.vector_store %arg13[%c0_53, %c0_54], %138 {strides = array<i32>} : memref<16x128xf32, #tpu.memory_space<vmem>>, vector<16x128xf32>,
    %c0_55 = arith.constant 0 : index
    %c0_56 = arith.constant 0 : index
    %140 = vector.load %arg12[%c0_55, %c0_56] : memref<16x128xf32, #tpu.memory_space<vmem>>, vector<16x128xf32>
    %c0_57 = arith.constant 0 : index
    %c0_58 = arith.constant 0 : index
    %141 = vector.load %arg13[%c0_57, %c0_58] : memref<16x128xf32, #tpu.memory_space<vmem>>, vector<16x128xf32>
    %142 = vector.extract_strided_slice %7 {offsets = [0, 3, 0], sizes = [16, 1, 512], strides = [1, 1, 1]} : vector<16x4x512xf32> to vector<16x1x512xf32>
    %143 = vector.shape_cast %142 : vector<16x1x512xf32> to vector<16x512xf32>
    %144 = arith.truncf %140 : vector<16x128xf32> to vector<16x128xbf16>
    %cst_59 = arith.constant dense<0.000000e+00> : vector<16x512xf32>
    %145 = tpu.matmul %144, %12, %cst_59 {dimension_numbers = #tpu.dot_dimension_numbers<[1], [0], [0], [1], [0, 0, 1, 1], [], []>} : vector<16x128xbf16>, vector<128x512xbf16>, vector<16x512xf32> -> vector<16x512xf32>
    %146 = arith.addf %143, %145 : vector<16x512xf32>
    %147 = vector.extract_strided_slice %146 {offsets = [0, 0], sizes = [16, 128], strides = [1, 1]} : vector<16x512xf32> to vector<16x128xf32>
    %148 = arith.negf %147 : vector<16x128xf32>
    %149 = math.exp %148 : vector<16x128xf32>
    %cst_60 = arith.constant 1.000000e+00 : f32
    %150 = vector.broadcast %cst_60 : f32 to vector<16x128xf32>
    %151 = arith.addf %150, %149 : vector<16x128xf32>
    %152 = arith.divf %150, %151 : vector<16x128xf32>
    %153 = vector.extract_strided_slice %146 {offsets = [0, 128], sizes = [16, 128], strides = [1, 1]} : vector<16x512xf32> to vector<16x128xf32>
    %154 = arith.negf %153 : vector<16x128xf32>
    %155 = math.exp %154 : vector<16x128xf32>
    %cst_61 = arith.constant 1.000000e+00 : f32
    %156 = vector.broadcast %cst_61 : f32 to vector<16x128xf32>
    %157 = arith.addf %156, %155 : vector<16x128xf32>
    %158 = arith.divf %156, %157 : vector<16x128xf32>
    %159 = vector.extract_strided_slice %146 {offsets = [0, 256], sizes = [16, 128], strides = [1, 1]} : vector<16x512xf32> to vector<16x128xf32>
    %160 = math.tanh %159 : vector<16x128xf32>
    %161 = vector.extract_strided_slice %146 {offsets = [0, 384], sizes = [16, 128], strides = [1, 1]} : vector<16x512xf32> to vector<16x128xf32>
    %162 = arith.negf %161 : vector<16x128xf32>
    %163 = math.exp %162 : vector<16x128xf32>
    %cst_62 = arith.constant 1.000000e+00 : f32
    %164 = vector.broadcast %cst_62 : f32 to vector<16x128xf32>
    %165 = arith.addf %164, %163 : vector<16x128xf32>
    %166 = arith.divf %164, %165 : vector<16x128xf32>
    %167 = arith.mulf %158, %141 : vector<16x128xf32>
    %168 = arith.mulf %152, %160 : vector<16x128xf32>
    %169 = arith.addf %167, %168 : vector<16x128xf32>
    %170 = math.tanh %169 : vector<16x128xf32>
    %171 = arith.mulf %166, %170 : vector<16x128xf32>
    %cst_63 = arith.constant 3.000000e+00 : f32
    %172 = vector.broadcast %cst_63 : f32 to vector<16x1xf32>
    %173 = arith.cmpf ogt, %13, %172 : vector<16x1xf32>
    %174 = vector.shape_cast %173 : vector<16x1xi1> to vector<16x1xi1>
    %175 = vector.broadcast %174 : vector<16x1xi1> to vector<16x128xi1>
    %176 = arith.select %175, %171, %140 : vector<16x128xi1>, vector<16x128xf32>
    %c0_64 = arith.constant 0 : index
    %c0_65 = arith.constant 0 : index
    %177 = vector.load %arg12[%c0_64, %c0_65] : memref<16x128xf32, #tpu.memory_space<vmem>>, vector<16x128xf32>
    tpu.vector_store %arg12[%c0_64, %c0_65], %176 {strides = array<i32>} : memref<16x128xf32, #tpu.memory_space<vmem>>, vector<16x128xf32>,
    %178 = vector.shape_cast %173 : vector<16x1xi1> to vector<16x1xi1>
    %179 = vector.broadcast %178 : vector<16x1xi1> to vector<16x128xi1>
    %180 = arith.select %179, %169, %141 : vector<16x128xi1>, vector<16x128xf32>
    %c0_66 = arith.constant 0 : index
    %c0_67 = arith.constant 0 : index
    %181 = vector.load %arg13[%c0_66, %c0_67] : memref<16x128xf32, #tpu.memory_space<vmem>>, vector<16x128xf32>
    tpu.vector_store %arg13[%c0_66, %c0_67], %180 {strides = array<i32>} : memref<16x128xf32, #tpu.memory_space<vmem>>, vector<16x128xf32>,
    %c0_68 = arith.constant 0 : index
    %c0_69 = arith.constant 0 : index
    %182 = vector.load %arg12[%c0_68, %c0_69] : memref<16x128xf32, #tpu.memory_space<vmem>>, vector<16x128xf32>
    %c0_70 = arith.constant 0 : index
    %c0_71 = arith.constant 0 : index
    %183 = vector.load %arg3[%c0_70, %c0_71] : memref<16x128xbf16, #tpu.memory_space<vmem>>, vector<16x128xbf16>
    %c0_72 = arith.constant 0 : index
    %c0_73 = arith.constant 0 : index
    %184 = vector.load %arg8[%c0_72, %c0_73] : memref<128x128xbf16, #tpu.memory_space<vmem>>, vector<128x128xbf16>
    %cst_74 = arith.constant dense<0.000000e+00> : vector<16x128xf32>
    %185 = tpu.matmul %183, %184, %cst_74 {dimension_numbers = #tpu.dot_dimension_numbers<[1], [0], [0], [1], [0, 0, 1, 1], [], []>} : vector<16x128xbf16>, vector<128x128xbf16>, vector<16x128xf32> -> vector<16x128xf32>
    %186 = arith.truncf %182 : vector<16x128xf32> to vector<16x128xbf16>
    %c0_75 = arith.constant 0 : index
    %c0_76 = arith.constant 0 : index
    %187 = vector.load %arg9[%c0_75, %c0_76] : memref<128x128xbf16, #tpu.memory_space<vmem>>, vector<128x128xbf16>
    %cst_77 = arith.constant dense<0.000000e+00> : vector<16x128xf32>
    %188 = tpu.matmul %186, %187, %cst_77 {dimension_numbers = #tpu.dot_dimension_numbers<[1], [0], [0], [1], [0, 0, 1, 1], [], []>} : vector<16x128xbf16>, vector<128x128xbf16>, vector<16x128xf32> -> vector<16x128xf32>
    %189 = arith.addf %185, %188 : vector<16x128xf32>
    %c0_78 = arith.constant 0 : index
    %c0_79 = arith.constant 0 : index
    %190 = vector.load %arg10[%c0_78, %c0_79] : memref<1x128xf32, #tpu.memory_space<vmem>>, vector<1x128xf32>
    %191 = vector.broadcast %190 : vector<1x128xf32> to vector<16x128xf32>
    %192 = arith.addf %189, %191 : vector<16x128xf32>
    %cst_80 = arith.constant 0.000000e+00 : f32
    %193 = vector.broadcast %cst_80 : f32 to vector<16x128xf32>
    %194 = arith.maximumf %192, %193 : vector<16x128xf32>
    %c0_81 = arith.constant 0 : index
    %c0_82 = arith.constant 0 : index
    %195 = vector.load %arg4[%c0_81, %c0_82] : memref<16x128xf32, #tpu.memory_space<vmem>>, vector<16x128xf32>
    %196 = arith.mulf %194, %195 : vector<16x128xf32>
    %197 = arith.truncf %196 : vector<16x128xf32> to vector<16x128xbf16>
    %c0_83 = arith.constant 0 : index
    %c0_84 = arith.constant 0 : index
    %198 = vector.load %arg11[%c0_83, %c0_84] : memref<16x128xbf16, #tpu.memory_space<vmem>>, vector<16x128xbf16>
    tpu.vector_store %arg11[%c0_83, %c0_84], %197 {strides = array<i32>} : memref<16x128xbf16, #tpu.memory_space<vmem>>, vector<16x128xbf16>,
    return
  }
  func.func @transform_0(%arg0: i32) -> (i32, i32) {
    %c0_i32 = arith.constant 0 : i32
    %c0_i32_0 = arith.constant 0 : i32
    return %arg0, %c0_i32 : i32, i32
  }
  func.func @transform_1(%arg0: i32) -> (i32, i32, i32) {
    %c0_i32 = arith.constant 0 : i32
    %c0_i32_0 = arith.constant 0 : i32
    %c0_i32_1 = arith.constant 0 : i32
    return %arg0, %c0_i32, %c0_i32_0 : i32, i32, i32
  }
  func.func @transform_2(%arg0: i32) -> (i32, i32) {
    %c0_i32 = arith.constant 0 : i32
    %c0_i32_0 = arith.constant 0 : i32
    return %arg0, %c0_i32 : i32, i32
  }
  func.func @transform_3(%arg0: i32) -> (i32, i32) {
    %c0_i32 = arith.constant 0 : i32
    %c0_i32_0 = arith.constant 0 : i32
    return %arg0, %c0_i32 : i32, i32
  }
  func.func @transform_4(%arg0: i32) -> (i32, i32) {
    %c0_i32 = arith.constant 0 : i32
    %c0_i32_0 = arith.constant 0 : i32
    %c0_i32_1 = arith.constant 0 : i32
    return %c0_i32, %c0_i32_0 : i32, i32
  }
  func.func @transform_5(%arg0: i32) -> (i32, i32) {
    %c0_i32 = arith.constant 0 : i32
    %c0_i32_0 = arith.constant 0 : i32
    %c0_i32_1 = arith.constant 0 : i32
    return %c0_i32, %c0_i32_0 : i32, i32
  }
  func.func @transform_6(%arg0: i32) -> (i32, i32) {
    %c0_i32 = arith.constant 0 : i32
    %c0_i32_0 = arith.constant 0 : i32
    %c0_i32_1 = arith.constant 0 : i32
    return %c0_i32, %c0_i32_0 : i32, i32
  }
  func.func @transform_7(%arg0: i32) -> (i32, i32) {
    %c0_i32 = arith.constant 0 : i32
    %c0_i32_0 = arith.constant 0 : i32
    %c0_i32_1 = arith.constant 0 : i32
    return %c0_i32, %c0_i32_0 : i32, i32
  }
  func.func @transform_8(%arg0: i32) -> (i32, i32) {
    %c0_i32 = arith.constant 0 : i32
    %c0_i32_0 = arith.constant 0 : i32
    %c0_i32_1 = arith.constant 0 : i32
    return %c0_i32, %c0_i32_0 : i32, i32
  }
  func.func @transform_9(%arg0: i32) -> (i32, i32) {
    %c0_i32 = arith.constant 0 : i32
    %c0_i32_0 = arith.constant 0 : i32
    %c0_i32_1 = arith.constant 0 : i32
    return %c0_i32, %c0_i32_0 : i32, i32
  }
  func.func @transform_10(%arg0: i32) -> (i32, i32) {
    %c0_i32 = arith.constant 0 : i32
    %c0_i32_0 = arith.constant 0 : i32
    return %arg0, %c0_i32 : i32, i32
  }
}

</mosaic_0001>

<llo_original>
// kernel: tpu_custom_call.1
$region0: #{tpu_custom_call.1}
  #allocation0 [shape = 'u32[]', space=smem, size = 0x4, offset = 0x4, fixed_abs, tag = 'smem constant byte address 0x4 - core index']
  #allocation1 [shape = 'u32[144,128]{1,0:T(1,128)}', space=vmem, size = 0x12000, scoped, tag = 'internal scratch']
  #allocation2 [shape = 'f32[16,128]{1,0:T(8,128)}', space=vmem, size = 0x2000, scoped, tag = 'scratch operand']
  #allocation3 [shape = 'f32[16,128]{1,0:T(8,128)}', space=vmem, size = 0x2000, scoped, tag = 'scratch operand']
  %s0 = inlined_call_operand.vmem [shape: f32[16,1], index: 0, kind: input, shape index: {}]
  %s1 = inlined_call_operand.hbm [shape: bf16[16,4,128], index: 1, kind: input, shape index: {}]
  %s2 = inlined_call_operand.vmem [shape: bf16[16,128], index: 2, kind: input, shape index: {}]
  %s3 = inlined_call_operand.vmem [shape: f32[16,128], index: 3, kind: input, shape index: {}]
  %s4 = inlined_call_operand.hbm [shape: bf16[128,512], index: 4, kind: input, shape index: {}]
  %s5 = inlined_call_operand.hbm [shape: bf16[128,512], index: 5, kind: input, shape index: {}]
  %s6 = inlined_call_operand.vmem [shape: f32[1,512], index: 6, kind: input, shape index: {}]
  %s7 = inlined_call_operand.hbm [shape: bf16[128,128], index: 7, kind: input, shape index: {}]
  %s8 = inlined_call_operand.hbm [shape: bf16[128,128], index: 8, kind: input, shape index: {}]
  %s9 = inlined_call_operand.vmem [shape: f32[1,128], index: 9, kind: input, shape index: {}]
  %s10 = inlined_call_operand.hbm [shape: bf16[16,128], index: 10, kind: output, shape index: {}]
  %s11 = sld [smem:[#allocation0]]
  $region70: #{tpu_custom_call.1} parent=0
    _
  %s13 = ssub.s32 1, %s11
  %s14 = scalar_select 0, %s13, %s11
  $region1: #{tpu_custom_call.1} parent=0
    #allocation4 [shape = 'u8[16384]{0}', space=vmem, size = 0x4000, scoped, tag = 'input window, operand 1, single buffered']
    #allocation5 [shape = 's32[1]{0}', space=sflag, size = 0x4, scoped, tag = 'scoped memory for tpu_custom_call.1']
    #allocation6 [shape = 's32[1]{0}', space=sflag, size = 0x4, scoped, tag = 'scoped memory for tpu_custom_call.1']
    #allocation7 [shape = 'u8[131072]{0}', space=vmem, size = 0x20000, scoped, tag = 'input window, operand 4, single buffered']
    #allocation8 [shape = 's32[1]{0}', space=sflag, size = 0x4, scoped, tag = 'scoped memory for tpu_custom_call.1']
    #allocation9 [shape = 'u8[131072]{0}', space=vmem, size = 0x20000, scoped, tag = 'input window, operand 5, single buffered']
    #allocation10 [shape = 'u8[32768]{0}', space=vmem, size = 0x8000, scoped, tag = 'input window, operand 7, single buffered']
    #allocation11 [shape = 's32[1]{0}', space=sflag, size = 0x4, scoped, tag = 'scoped memory for tpu_custom_call.1']
    #allocation12 [shape = 'u8[32768]{0}', space=vmem, size = 0x8000, scoped, tag = 'input window, operand 8, single buffered']
    #allocation13 [shape = 'u8[4096]{0}', space=vmem, size = 0x1000, scoped, tag = 'output window, operand 0, single buffered']
    %15 = vsyncpa [#allocation5], 0
    %16 = vsyncpa [#allocation8], 0
    %17 = vsyncpa [#allocation11], 0
    %18 = vsyncpa [#allocation6], 0
    // Predicated region
    $region2: #{tpu_custom_call.1} parent=1 // pred_check
      _
    $region3: #{tpu_custom_call.1} parent=1 // pred_check_branch
      %20 = sbr.rel (0) target = $region5
    $region4: #{tpu_custom_call.1} parent=1 // pred_region
      _
    $region5: #{tpu_custom_call.1} parent=1 // pred_fallthru
      _
    // Predicated region
    $region6: #{tpu_custom_call.1} parent=1 // pred_check
      _
    $region7: #{tpu_custom_call.1} parent=1 // pred_check_branch
      %22 = sbr.rel (0) target = $region9
    $region8: #{tpu_custom_call.1} parent=1 // pred_region
      %s24 = ssub.s32 512, 512
      %25 = vsyncadd [#allocation5], %s24
      %s26 = sshll.u32 [#allocation4], 4
      %s27 = int_to_ptr.vmem [resolvable:$true] %s26
      %32 = dma.hbm_to_vmem [thread:$0]  %s1, 512, %s27, [#allocation5], 32, 32, 2
    $region9: #{tpu_custom_call.1} parent=1 // pred_fallthru
      _
    // Predicated region
    $region10: #{tpu_custom_call.1} parent=1 // pred_check
      _
    $region11: #{tpu_custom_call.1} parent=1 // pred_check_branch
      %34 = sbr.rel (0) target = $region13
    $region12: #{tpu_custom_call.1} parent=1 // pred_region
      _
    $region13: #{tpu_custom_call.1} parent=1 // pred_fallthru
      _
    // Predicated region
    $region14: #{tpu_custom_call.1} parent=1 // pred_check
      _
    $region15: #{tpu_custom_call.1} parent=1 // pred_check_branch
      %36 = sbr.rel (0) target = $region17
    $region16: #{tpu_custom_call.1} parent=1 // pred_region
      _
    $region17: #{tpu_custom_call.1} parent=1 // pred_fallthru
      _
    // Predicated region
    $region18: #{tpu_custom_call.1} parent=1 // pred_check
      _
    $region19: #{tpu_custom_call.1} parent=1 // pred_check_branch
      %38 = sbr.rel (0) target = $region21
    $region20: #{tpu_custom_call.1} parent=1 // pred_region
      %s40 = ssub.s32 4096, 4096
      %41 = vsyncadd [#allocation8], %s40
      %s42 = sshll.u32 [#allocation7], 4
      %s43 = int_to_ptr.vmem [resolvable:$true] %s42
      %48 = dma.hbm_to_vmem [thread:$0]  %s4, 4096, %s43, [#allocation8], 256, 256, 16
    $region21: #{tpu_custom_call.1} parent=1 // pred_fallthru
      _
    // Predicated region
    $region22: #{tpu_custom_call.1} parent=1 // pred_check
      _
    $region23: #{tpu_custom_call.1} parent=1 // pred_check_branch
      %50 = sbr.rel (0) target = $region25
    $region24: #{tpu_custom_call.1} parent=1 // pred_region
      %s52 = ssub.s32 4096, 4096
      %53 = vsyncadd [#allocation8], %s52
      %s54 = sshll.u32 [#allocation9], 4
      %s55 = int_to_ptr.vmem [resolvable:$true] %s54
      %60 = dma.hbm_to_vmem [thread:$0]  %s5, 4096, %s55, [#allocation8], 256, 256, 16
    $region25: #{tpu_custom_call.1} parent=1 // pred_fallthru
      _
    // Predicated region
    $region26: #{tpu_custom_call.1} parent=1 // pred_check
      _
    $region27: #{tpu_custom_call.1} parent=1 // pred_check_branch
      %62 = sbr.rel (0) target = $region29
    $region28: #{tpu_custom_call.1} parent=1 // pred_region
      _
    $region29: #{tpu_custom_call.1} parent=1 // pred_fallthru
      _
    // Predicated region
    $region30: #{tpu_custom_call.1} parent=1 // pred_check
      _
    $region31: #{tpu_custom_call.1} parent=1 // pred_check_branch
      %64 = sbr.rel (0) target = $region33
    $region32: #{tpu_custom_call.1} parent=1 // pred_region
      %s66 = ssub.s32 1024, 1024
      %67 = vsyncadd [#allocation11], %s66
      %s68 = sshll.u32 [#allocation10], 4
      %s69 = int_to_ptr.vmem [resolvable:$true] %s68
      %74 = dma.hbm_to_vmem [thread:$0]  %s7, 1024, %s69, [#allocation11], 64, 64, 4
    $region33: #{tpu_custom_call.1} parent=1 // pred_fallthru
      _
    // Predicated region
    $region34: #{tpu_custom_call.1} parent=1 // pred_check
      _
    $region35: #{tpu_custom_call.1} parent=1 // pred_check_branch
      %76 = sbr.rel (0) target = $region37
    $region36: #{tpu_custom_call.1} parent=1 // pred_region
      %s78 = ssub.s32 1024, 1024
      %79 = vsyncadd [#allocation11], %s78
      %s80 = sshll.u32 [#allocation12], 4
      %s81 = int_to_ptr.vmem [resolvable:$true] %s80
      %86 = dma.hbm_to_vmem [thread:$0]  %s8, 1024, %s81, [#allocation11], 64, 64, 4
    $region37: #{tpu_custom_call.1} parent=1 // pred_fallthru
      _
    // Predicated region
    $region38: #{tpu_custom_call.1} parent=1 // pred_check
      _
    $region39: #{tpu_custom_call.1} parent=1 // pred_check_branch
      %88 = sbr.rel (0) target = $region41
    $region40: #{tpu_custom_call.1} parent=1 // pred_region
      _
    $region41: #{tpu_custom_call.1} parent=1 // pred_fallthru
      _
    // Predicated region
    $region42: #{tpu_custom_call.1} parent=1 // pred_check
      _
    $region43: #{tpu_custom_call.1} parent=1 // pred_check_branch
      %90 = sbr.rel (0) target = $region45
    $region44: #{tpu_custom_call.1} parent=1 // pred_region
      %91 = dma.done [#allocation5], 512
    $region45: #{tpu_custom_call.1} parent=1 // pred_fallthru
      _
    // Predicated region
    $region46: #{tpu_custom_call.1} parent=1 // pred_check
      _
    $region47: #{tpu_custom_call.1} parent=1 // pred_check_branch
      %93 = sbr.rel (0) target = $region49
    $region48: #{tpu_custom_call.1} parent=1 // pred_region
      %94 = dma.done [#allocation8], 4096
    $region49: #{tpu_custom_call.1} parent=1 // pred_fallthru
      _
    // Predicated region
    $region50: #{tpu_custom_call.1} parent=1 // pred_check
      _
    $region51: #{tpu_custom_call.1} parent=1 // pred_check_branch
      %96 = sbr.rel (0) target = $region53
    $region52: #{tpu_custom_call.1} parent=1 // pred_region
      %97 = dma.done [#allocation8], 4096
    $region53: #{tpu_custom_call.1} parent=1 // pred_fallthru
      _
    // Predicated region
    $region54: #{tpu_custom_call.1} parent=1 // pred_check
      _
    $region55: #{tpu_custom_call.1} parent=1 // pred_check_branch
      %99 = sbr.rel (0) target = $region57
    $region56: #{tpu_custom_call.1} parent=1 // pred_region
      %100 = dma.done [#allocation11], 1024
    $region57: #{tpu_custom_call.1} parent=1 // pred_fallthru
      _
    // Predicated region
    $region58: #{tpu_custom_call.1} parent=1 // pred_check
      _
    $region59: #{tpu_custom_call.1} parent=1 // pred_check_branch
      %102 = sbr.rel (0) target = $region61
    $region60: #{tpu_custom_call.1} parent=1 // pred_region
      %103 = dma.done [#allocation11], 1024
    $region61: #{tpu_custom_call.1} parent=1 // pred_fallthru
      _
    %v105 = vld [vmem:[#allocation4] sm:$0x3]
    %v106 = vld [vmem:[#allocation4 + $0x2] sm:$0x3]
    %v107 = vld [vmem:[#allocation4 + $0x4] sm:$0x3]
    %v108 = vld [vmem:[#allocation4 + $0x6] sm:$0x3]
    %v109 = vld [vmem:[#allocation4 + $0x8] sm:$0x3]
    %v110 = vld [vmem:[#allocation4 + $0xa] sm:$0x3]
    %v111 = vld [vmem:[#allocation4 + $0xc] sm:$0x3]
    %v112 = vld [vmem:[#allocation4 + $0xe] sm:$0x3]
    %v113 = vld [vmem:[#allocation4 + $0x10] sm:$0x3]
    %v114 = vld [vmem:[#allocation4 + $0x12] sm:$0x3]
    %v115 = vld [vmem:[#allocation4 + $0x14] sm:$0x3]
    %v116 = vld [vmem:[#allocation4 + $0x16] sm:$0x3]
    %v117 = vld [vmem:[#allocation4 + $0x18] sm:$0x3]
    %v118 = vld [vmem:[#allocation4 + $0x1a] sm:$0x3]
    %v119 = vld [vmem:[#allocation4 + $0x1c] sm:$0x3]
    %v120 = vld [vmem:[#allocation4 + $0x1e] sm:$0x3]
    %v121 = vld [vmem:[#allocation7] sm:$0xff]
    %v122 = vld [vmem:[#allocation7 + $0x8] sm:$0xff]
    %v123 = vld [vmem:[#allocation7 + $0x10] sm:$0xff]
    %v124 = vld [vmem:[#allocation7 + $0x18] sm:$0xff]
    %v125 = vld [vmem:[#allocation7 + $0x20] sm:$0xff]
    %v126 = vld [vmem:[#allocation7 + $0x28] sm:$0xff]
    %v127 = vld [vmem:[#allocation7 + $0x30] sm:$0xff]
    %v128 = vld [vmem:[#allocation7 + $0x38] sm:$0xff]
    %v129 = vld [vmem:[#allocation7 + $0x40] sm:$0xff]
    %v130 = vld [vmem:[#allocation7 + $0x48] sm:$0xff]
    %v131 = vld [vmem:[#allocation7 + $0x50] sm:$0xff]
    %v132 = vld [vmem:[#allocation7 + $0x58] sm:$0xff]
    %v133 = vld [vmem:[#allocation7 + $0x60] sm:$0xff]
    %v134 = vld [vmem:[#allocation7 + $0x68] sm:$0xff]
    %v135 = vld [vmem:[#allocation7 + $0x70] sm:$0xff]
    %v136 = vld [vmem:[#allocation7 + $0x78] sm:$0xff]
    %v137 = vld [vmem:[#allocation7 + $0x80] sm:$0xff]
    %v138 = vld [vmem:[#allocation7 + $0x88] sm:$0xff]
    %v139 = vld [vmem:[#allocation7 + $0x90] sm:$0xff]
    %v140 = vld [vmem:[#allocation7 + $0x98] sm:$0xff]
    %v141 = vld [vmem:[#allocation7 + $0xa0] sm:$0xff]
    %v142 = vld [vmem:[#allocation7 + $0xa8] sm:$0xff]
    %v143 = vld [vmem:[#allocation7 + $0xb0] sm:$0xff]
    %v144 = vld [vmem:[#allocation7 + $0xb8] sm:$0xff]
    %v145 = vld [vmem:[#allocation7 + $0xc0] sm:$0xff]
    %v146 = vld [vmem:[#allocation7 + $0xc8] sm:$0xff]
    %v147 = vld [vmem:[#allocation7 + $0xd0] sm:$0xff]
    %v148 = vld [vmem:[#allocation7 + $0xd8] sm:$0xff]
    %v149 = vld [vmem:[#allocation7 + $0xe0] sm:$0xff]
    %v150 = vld [vmem:[#allocation7 + $0xe8] sm:$0xff]
    %v151 = vld [vmem:[#allocation7 + $0xf0] sm:$0xff]
    %v152 = vld [vmem:[#allocation7 + $0xf8] sm:$0xff]
    %v153 = vld [vmem:[%s6] sm:$0xf]
    %v155 = vlaneseq
    %v156 = vshrl.u32 %v155, 7
    %v157 = vsub.s32 0, %v156
    %v158 = vrot.slane %v153, %v157
    %v159 = vlaneseq
    %v160 = vshrl.u32 %v159, 7
    %v161 = vsub.s32 1, %v160
    %v162 = vrot.slane %v153, %v161
    %v163 = vlaneseq
    %v164 = vshrl.u32 %v163, 7
    %v165 = vsub.s32 2, %v164
    %v166 = vrot.slane %v153, %v165
    %v167 = vlaneseq
    %v168 = vshrl.u32 %v167, 7
    %v169 = vsub.s32 3, %v168
    %v170 = vrot.slane %v153, %v169
    %v191 = vcombine.low %v105, %v106
    %v192 = vcombine.low %v107, %v108
    %v194 = vunpack.c.l.s4 1983009808
    %v195 = vunpack.c.0.s8 %v194
    %v196 = vlaneseq
    %v197 = vshrl.u32 %v196, 7
    %v198 = vsub.s32 %v195, %v197
    %v199 = vrot.slane %v191, %v198
    %v201 = vunpack.c.l.s4 1983009808
    %v202 = vunpack.c.0.s8 %v201
    %v203 = vlaneseq
    %v204 = vshrl.u32 %v203, 7
    %v205 = vsub.s32 %v202, %v204
    %v206 = vrot.slane %v192, %v205
    %v207 = vcombine.low %v199, %v206
    %v208 = vcombine.low %v109, %v110
    %v209 = vcombine.low %v111, %v112
    %v211 = vunpack.c.l.s4 1983009808
    %v212 = vunpack.c.0.s8 %v211
    %v213 = vlaneseq
    %v214 = vshrl.u32 %v213, 7
    %v215 = vsub.s32 %v212, %v214
    %v216 = vrot.slane %v208, %v215
    %v218 = vunpack.c.l.s4 1983009808
    %v219 = vunpack.c.0.s8 %v218
    %v220 = vlaneseq
    %v221 = vshrl.u32 %v220, 7
    %v222 = vsub.s32 %v219, %v221
    %v223 = vrot.slane %v209, %v222
    %v224 = vcombine.low %v216, %v223
    %v225 = vcombine.low %v113, %v114
    %v226 = vcombine.low %v115, %v116
    %v228 = vunpack.c.l.s4 1983009808
    %v229 = vunpack.c.0.s8 %v228
    %v230 = vlaneseq
    %v231 = vshrl.u32 %v230, 7
    %v232 = vsub.s32 %v229, %v231
    %v233 = vrot.slane %v225, %v232
    %v235 = vunpack.c.l.s4 1983009808
    %v236 = vunpack.c.0.s8 %v235
    %v237 = vlaneseq
    %v238 = vshrl.u32 %v237, 7
    %v239 = vsub.s32 %v236, %v238
    %v240 = vrot.slane %v226, %v239
    %v241 = vcombine.low %v233, %v240
    %v242 = vcombine.low %v117, %v118
    %v243 = vcombine.low %v119, %v120
    %v245 = vunpack.c.l.s4 1983009808
    %v246 = vunpack.c.0.s8 %v245
    %v247 = vlaneseq
    %v248 = vshrl.u32 %v247, 7
    %v249 = vsub.s32 %v246, %v248
    %v250 = vrot.slane %v242, %v249
    %v252 = vunpack.c.l.s4 1983009808
    %v253 = vunpack.c.0.s8 %v252
    %v254 = vlaneseq
    %v255 = vshrl.u32 %v254, 7
    %v256 = vsub.s32 %v253, %v255
    %v257 = vrot.slane %v243, %v256
    %v258 = vcombine.low %v250, %v257
    %v295 = vunpack.c.l.b16 %v121
    %v296 = vunpack.c.h.b16 %v121
    %v297 = vunpack.c.l.b16 %v122
    %v298 = vunpack.c.h.b16 %v122
    %v299 = vunpack.c.l.b16 %v123
    %v300 = vunpack.c.h.b16 %v123
    %v301 = vunpack.c.l.b16 %v124
    %v302 = vunpack.c.h.b16 %v124
    %v303 = vunpack.c.l.b16 %v125
    %v304 = vunpack.c.h.b16 %v125
    %v305 = vunpack.c.l.b16 %v126
    %v306 = vunpack.c.h.b16 %v126
    %v307 = vunpack.c.l.b16 %v127
    %v308 = vunpack.c.h.b16 %v127
    %v309 = vunpack.c.l.b16 %v128
    %v310 = vunpack.c.h.b16 %v128
    %v311 = vunpack.c.l.b16 %v129
    %v312 = vunpack.c.h.b16 %v129
    %v313 = vunpack.c.l.b16 %v130
    %v314 = vunpack.c.h.b16 %v130
    %v315 = vunpack.c.l.b16 %v131
    %v316 = vunpack.c.h.b16 %v131
    %v317 = vunpack.c.l.b16 %v132
    %v318 = vunpack.c.h.b16 %v132
    %v319 = vunpack.c.l.b16 %v133
    %v320 = vunpack.c.h.b16 %v133
    %v321 = vunpack.c.l.b16 %v134
    %v322 = vunpack.c.h.b16 %v134
    %v323 = vunpack.c.l.b16 %v135
    %v324 = vunpack.c.h.b16 %v135
    %v325 = vunpack.c.l.b16 %v136
    %v326 = vunpack.c.h.b16 %v136
    %v327 = vunpack.c.l.b16 %v137
    %v328 = vunpack.c.h.b16 %v137
    %v329 = vunpack.c.l.b16 %v138
    %v330 = vunpack.c.h.b16 %v138
    %v331 = vunpack.c.l.b16 %v139
    %v332 = vunpack.c.h.b16 %v139
    %v333 = vunpack.c.l.b16 %v140
    %v334 = vunpack.c.h.b16 %v140
    %v335 = vunpack.c.l.b16 %v141
    %v336 = vunpack.c.h.b16 %v141
    %v337 = vunpack.c.l.b16 %v142
    %v338 = vunpack.c.h.b16 %v142
    %v339 = vunpack.c.l.b16 %v143
    %v340 = vunpack.c.h.b16 %v143
    %v341 = vunpack.c.l.b16 %v144
    %v342 = vunpack.c.h.b16 %v144
    %v343 = vunpack.c.l.b16 %v145
    %v344 = vunpack.c.h.b16 %v145
    %v345 = vunpack.c.l.b16 %v146
    %v346 = vunpack.c.h.b16 %v146
    %v347 = vunpack.c.l.b16 %v147
    %v348 = vunpack.c.h.b16 %v147
    %v349 = vunpack.c.l.b16 %v148
    %v350 = vunpack.c.h.b16 %v148
    %v351 = vunpack.c.l.b16 %v149
    %v352 = vunpack.c.h.b16 %v149
    %v353 = vunpack.c.l.b16 %v150
    %v354 = vunpack.c.h.b16 %v150
    %v355 = vunpack.c.l.b16 %v151
    %v356 = vunpack.c.h.b16 %v151
    %v357 = vunpack.c.l.b16 %v152
    %v358 = vunpack.c.h.b16 %v152
    %v359 = vpack.c.b16 %v299, %v295
    %v360 = vpack.c.b16 %v300, %v296
    %v361 = vpack.c.b16 %v301, %v297
    %v362 = vpack.c.b16 %v302, %v298
    %v363 = vpack.c.b16 %v307, %v303
    %v364 = vpack.c.b16 %v308, %v304
    %v365 = vpack.c.b16 %v309, %v305
    %v366 = vpack.c.b16 %v310, %v306
    %v367 = vpack.c.b16 %v315, %v311
    %v368 = vpack.c.b16 %v316, %v312
    %v369 = vpack.c.b16 %v317, %v313
    %v370 = vpack.c.b16 %v318, %v314
    %v371 = vpack.c.b16 %v323, %v319
    %v372 = vpack.c.b16 %v324, %v320
    %v373 = vpack.c.b16 %v325, %v321
    %v374 = vpack.c.b16 %v326, %v322
    %v375 = vpack.c.b16 %v331, %v327
    %v376 = vpack.c.b16 %v332, %v328
    %v377 = vpack.c.b16 %v333, %v329
    %v378 = vpack.c.b16 %v334, %v330
    %v379 = vpack.c.b16 %v339, %v335
    %v380 = vpack.c.b16 %v340, %v336
    %v381 = vpack.c.b16 %v341, %v337
    %v382 = vpack.c.b16 %v342, %v338
    %v383 = vpack.c.b16 %v347, %v343
    %v384 = vpack.c.b16 %v348, %v344
    %v385 = vpack.c.b16 %v349, %v345
    %v386 = vpack.c.b16 %v350, %v346
    %v387 = vpack.c.b16 %v355, %v351
    %v388 = vpack.c.b16 %v356, %v352
    %v389 = vpack.c.b16 %v357, %v353
    %v390 = vpack.c.b16 %v358, %v354
    %423 = vmatprep.subr.bf16.mxu0 %v360
    %424 = vmatpush1.bf16.msra.mxu0 %v359
    %425 = vmatprep.subr.bf16.mxu0 %v364
    %426 = vmatpush1.bf16.msra.mxu0 %v363
    %427 = vmatprep.subr.bf16.mxu0 %v368
    %428 = vmatpush1.bf16.msra.mxu0 %v367
    %429 = vmatprep.subr.bf16.mxu0 %v372
    %430 = vmatpush1.bf16.msra.mxu0 %v371
    %431 = vmatprep.subr.bf16.mxu0 %v376
    %432 = vmatpush1.bf16.msra.mxu0 %v375
    %433 = vmatprep.subr.bf16.mxu0 %v380
    %434 = vmatpush1.bf16.msra.mxu0 %v379
    %435 = vmatprep.subr.bf16.mxu0 %v384
    %436 = vmatpush1.bf16.msra.mxu0 %v383
    %437 = vmatprep.subr.bf16.mxu0 %v388
    %438 = vmatpush1.bf16.msra.mxu0 %v387
    %439 = vmatprep.subr.bf16.mxu0 0
    %440 = vmatpush1.bf16.msra.mxu0 0
    %441 = vmatprep.subr.bf16.mxu0 0
    %442 = vmatpush1.bf16.msra.mxu0 0
    %443 = vmatprep.subr.bf16.mxu0 0
    %444 = vmatpush1.bf16.msra.mxu0 0
    %445 = vmatprep.subr.bf16.mxu0 0
    %446 = vmatpush1.bf16.msra.mxu0 0
    %447 = vmatprep.subr.bf16.mxu0 0
    %448 = vmatpush1.bf16.msra.mxu0 0
    %449 = vmatprep.subr.bf16.mxu0 0
    %450 = vmatpush1.bf16.msra.mxu0 0
    %451 = vmatprep.subr.bf16.mxu0 0
    %452 = vmatpush1.bf16.msra.mxu0 0
    %453 = vmatprep.subr.bf16.mxu0 0
    %454 = vmatpush1.bf16.msra.mxu0 0
    %455 = vmatprep.mubr.bf16.mxu0 0
    %456 = vmatmul.mubr.bf16.gmra.mrb[0].mxu0 %v207
    %v457 = vpop.f32.mrb[0].mxu0
    %v458 = vadd.f32 %v158, %v457
    %v459 = vpop.f32.mrb[0].mxu0
    %v460 = vadd.f32 %v162, %v459
    %v461 = vpop.f32.mrb[0].mxu0
    %v462 = vadd.f32 %v158, %v461
    %v463 = vpop.f32.mrb[0].mxu0
    %v464 = vadd.f32 %v162, %v463
    %465 = vmatprep.mubr.bf16.mxu0 0
    %466 = vmatmul.mubr.bf16.gmra.mrb[0].mxu0 %v224
    %v467 = vpop.f32.mrb[0].mxu0
    %v468 = vadd.f32 %v158, %v467
    %v469 = vpop.f32.mrb[0].mxu0
    %v470 = vadd.f32 %v162, %v469
    %v471 = vpop.f32.mrb[0].mxu0
    %v472 = vadd.f32 %v158, %v471
    %v473 = vpop.f32.mrb[0].mxu0
    %v474 = vadd.f32 %v162, %v473
    %475 = vmatprep.mubr.bf16.mxu0 0
    %476 = vmatmul.mubr.bf16.gmra.mrb[0].mxu0 %v241
    %v477 = vpop.f32.mrb[0].mxu0
    %v478 = vadd.f32 %v158, %v477
    %v479 = vpop.f32.mrb[0].mxu0
    %v480 = vadd.f32 %v162, %v479
    %v481 = vpop.f32.mrb[0].mxu0
    %v482 = vadd.f32 %v158, %v481
    %v483 = vpop.f32.mrb[0].mxu0
    %v484 = vadd.f32 %v162, %v483
    %485 = vmatprep.mubr.bf16.mxu0 0
    %486 = vmatmul.mubr.bf16.gmra.mrb[0].mxu0 %v258
    %v487 = vpop.f32.mrb[0].mxu0
    %v488 = vadd.f32 %v158, %v487
    %v489 = vpop.f32.mrb[0].mxu0
    %v490 = vadd.f32 %v162, %v489
    %v491 = vpop.f32.mrb[0].mxu0
    %v492 = vadd.f32 %v158, %v491
    %v493 = vpop.f32.mrb[0].mxu0
    %v494 = vadd.f32 %v162, %v493
    %495 = vdwg.mxu0
    %496 = vmatprep.subr.bf16.mxu0 %v362
    %497 = vmatpush1.bf16.msra.mxu0 %v361
    %498 = vmatprep.subr.bf16.mxu0 %v366
    %499 = vmatpush1.bf16.msra.mxu0 %v365
    %500 = vmatprep.subr.bf16.mxu0 %v370
    %501 = vmatpush1.bf16.msra.mxu0 %v369
    %502 = vmatprep.subr.bf16.mxu0 %v374
    %503 = vmatpush1.bf16.msra.mxu0 %v373
    %504 = vmatprep.subr.bf16.mxu0 %v378
    %505 = vmatpush1.bf16.msra.mxu0 %v377
    %506 = vmatprep.subr.bf16.mxu0 %v382
    %507 = vmatpush1.bf16.msra.mxu0 %v381
    %508 = vmatprep.subr.bf16.mxu0 %v386
    %509 = vmatpush1.bf16.msra.mxu0 %v385
    %510 = vmatprep.subr.bf16.mxu0 %v390
    %511 = vmatpush1.bf16.msra.mxu0 %v389
    %512 = vmatprep.subr.bf16.mxu0 0
    %513 = vmatpush1.bf16.msra.mxu0 0
    %514 = vmatprep.subr.bf16.mxu0 0
    %515 = vmatpush1.bf16.msra.mxu0 0
    %516 = vmatprep.subr.bf16.mxu0 0
    %517 = vmatpush1.bf16.msra.mxu0 0
    %518 = vmatprep.subr.bf16.mxu0 0
    %519 = vmatpush1.bf16.msra.mxu0 0
    %520 = vmatprep.subr.bf16.mxu0 0
    %521 = vmatpush1.bf16.msra.mxu0 0
    %522 = vmatprep.subr.bf16.mxu0 0
    %523 = vmatpush1.bf16.msra.mxu0 0
    %524 = vmatprep.subr.bf16.mxu0 0
    %525 = vmatpush1.bf16.msra.mxu0 0
    %526 = vmatprep.subr.bf16.mxu0 0
    %527 = vmatpush1.bf16.msra.mxu0 0
    %528 = vmatprep.mubr.bf16.mxu0 0
    %529 = vmatmul.mubr.bf16.gmra.mrb[0].mxu0 %v207
    %v530 = vpop.f32.mrb[0].mxu0
    %v531 = vadd.f32 %v166, %v530
    %v532 = vpop.f32.mrb[0].mxu0
    %v533 = vadd.f32 %v170, %v532
    %v534 = vpop.f32.mrb[0].mxu0
    %v535 = vadd.f32 %v166, %v534
    %v536 = vpop.f32.mrb[0].mxu0
    %v537 = vadd.f32 %v170, %v536
    %538 = vmatprep.mubr.bf16.mxu0 0
    %539 = vmatmul.mubr.bf16.gmra.mrb[0].mxu0 %v224
    %v540 = vpop.f32.mrb[0].mxu0
    %v541 = vadd.f32 %v166, %v540
    %v542 = vpop.f32.mrb[0].mxu0
    %v543 = vadd.f32 %v170, %v542
    %v544 = vpop.f32.mrb[0].mxu0
    %v545 = vadd.f32 %v166, %v544
    %v546 = vpop.f32.mrb[0].mxu0
    %v547 = vadd.f32 %v170, %v546
    %548 = vmatprep.mubr.bf16.mxu0 0
    %549 = vmatmul.mubr.bf16.gmra.mrb[0].mxu0 %v241
    %v550 = vpop.f32.mrb[0].mxu0
    %v551 = vadd.f32 %v166, %v550
    %v552 = vpop.f32.mrb[0].mxu0
    %v553 = vadd.f32 %v170, %v552
    %v554 = vpop.f32.mrb[0].mxu0
    %v555 = vadd.f32 %v166, %v554
    %v556 = vpop.f32.mrb[0].mxu0
    %v557 = vadd.f32 %v170, %v556
    %558 = vmatprep.mubr.bf16.mxu0 0
    %559 = vmatmul.mubr.bf16.gmra.mrb[0].mxu0 %v258
    %v560 = vpop.f32.mrb[0].mxu0
    %v561 = vadd.f32 %v166, %v560
    %v562 = vpop.f32.mrb[0].mxu0
    %v563 = vadd.f32 %v170, %v562
    %v564 = vpop.f32.mrb[0].mxu0
    %v565 = vadd.f32 %v166, %v564
    %v566 = vpop.f32.mrb[0].mxu0
    %v567 = vadd.f32 %v170, %v566
    %568 = vdwg.mxu0
    %v601 = vcombine.low %v458, %v460
    %v602 = vcombine.high %v458, %v460
    %v603 = vcombine.low %v531, %v533
    %v604 = vcombine.high %v531, %v533
    %v605 = vcombine.low %v462, %v464
    %v606 = vcombine.high %v462, %v464
    %v607 = vcombine.low %v535, %v537
    %v608 = vcombine.high %v535, %v537
    %v609 = vcombine.low %v468, %v470
    %v610 = vcombine.high %v468, %v470
    %v611 = vcombine.low %v541, %v543
    %v612 = vcombine.high %v541, %v543
    %v613 = vcombine.low %v472, %v474
    %v614 = vcombine.high %v472, %v474
    %v615 = vcombine.low %v545, %v547
    %v616 = vcombine.high %v545, %v547
    %v617 = vcombine.low %v478, %v480
    %v618 = vcombine.high %v478, %v480
    %v619 = vcombine.low %v551, %v553
    %v620 = vcombine.high %v551, %v553
    %v621 = vcombine.low %v482, %v484
    %v622 = vcombine.high %v482, %v484
    %v623 = vcombine.low %v555, %v557
    %v624 = vcombine.high %v555, %v557
    %v625 = vcombine.low %v488, %v490
    %v626 = vcombine.high %v488, %v490
    %v627 = vcombine.low %v561, %v563
    %v628 = vcombine.high %v561, %v563
    %v629 = vcombine.low %v492, %v494
    %v630 = vcombine.high %v492, %v494
    %v631 = vcombine.low %v565, %v567
    %v632 = vcombine.high %v565, %v567
    %665 = vst [vmem:[#allocation2] sm:$0xff] 0.0
    %666 = vst [vmem:[#allocation2 + $0x8] sm:$0xff] 0.0
    %667 = vst [vmem:[#allocation3] sm:$0xff] 0.0
    %668 = vst [vmem:[#allocation3 + $0x8] sm:$0xff] 0.0
    %v669 = vld [vmem:[#allocation9] sm:$0xff]
    %v670 = vld [vmem:[#allocation9 + $0x8] sm:$0xff]
    %v671 = vld [vmem:[#allocation9 + $0x10] sm:$0xff]
    %v672 = vld [vmem:[#allocation9 + $0x18] sm:$0xff]
    %v673 = vld [vmem:[#allocation9 + $0x20] sm:$0xff]
    %v674 = vld [vmem:[#allocation9 + $0x28] sm:$0xff]
    %v675 = vld [vmem:[#allocation9 + $0x30] sm:$0xff]
    %v676 = vld [vmem:[#allocation9 + $0x38] sm:$0xff]
    %v677 = vld [vmem:[#allocation9 + $0x40] sm:$0xff]
    %v678 = vld [vmem:[#allocation9 + $0x48] sm:$0xff]
    %v679 = vld [vmem:[#allocation9 + $0x50] sm:$0xff]
    %v680 = vld [vmem:[#allocation9 + $0x58] sm:$0xff]
    %v681 = vld [vmem:[#allocation9 + $0x60] sm:$0xff]
    %v682 = vld [vmem:[#allocation9 + $0x68] sm:$0xff]
    %v683 = vld [vmem:[#allocation9 + $0x70] sm:$0xff]
    %v684 = vld [vmem:[#allocation9 + $0x78] sm:$0xff]
    %v685 = vld [vmem:[#allocation9 + $0x80] sm:$0xff]
    %v686 = vld [vmem:[#allocation9 + $0x88] sm:$0xff]
    %v687 = vld [vmem:[#allocation9 + $0x90] sm:$0xff]
    %v688 = vld [vmem:[#allocation9 + $0x98] sm:$0xff]
    %v689 = vld [vmem:[#allocation9 + $0xa0] sm:$0xff]
    %v690 = vld [vmem:[#allocation9 + $0xa8] sm:$0xff]
    %v691 = vld [vmem:[#allocation9 + $0xb0] sm:$0xff]
    %v692 = vld [vmem:[#allocation9 + $0xb8] sm:$0xff]
    %v693 = vld [vmem:[#allocation9 + $0xc0] sm:$0xff]
    %v694 = vld [vmem:[#allocation9 + $0xc8] sm:$0xff]
    %v695 = vld [vmem:[#allocation9 + $0xd0] sm:$0xff]
    %v696 = vld [vmem:[#allocation9 + $0xd8] sm:$0xff]
    %v697 = vld [vmem:[#allocation9 + $0xe0] sm:$0xff]
    %v698 = vld [vmem:[#allocation9 + $0xe8] sm:$0xff]
    %v699 = vld [vmem:[#allocation9 + $0xf0] sm:$0xff]
    %v700 = vld [vmem:[#allocation9 + $0xf8] sm:$0xff]
    %v701 = vld [vmem:[%s0] sm:$0xff]
    %v702 = vld [vmem:[%s0 + $0x8] sm:$0xff]
    %v703 = vld [vmem:[#allocation2] sm:$0xff]
    %v704 = vld [vmem:[#allocation2 + $0x8] sm:$0xff]
    %v705 = vld [vmem:[#allocation3] sm:$0xff]
    %v706 = vld [vmem:[#allocation3 + $0x8] sm:$0xff]
    %v707 = vpack.c.bf16 %v704, %v703
    %v740 = vunpack.c.l.b16 %v669
    %v741 = vunpack.c.h.b16 %v669
    %v742 = vunpack.c.l.b16 %v670
    %v743 = vunpack.c.h.b16 %v670
    %v744 = vunpack.c.l.b16 %v671
    %v745 = vunpack.c.h.b16 %v671
    %v746 = vunpack.c.l.b16 %v672
    %v747 = vunpack.c.h.b16 %v672
    %v748 = vunpack.c.l.b16 %v673
    %v749 = vunpack.c.h.b16 %v673
    %v750 = vunpack.c.l.b16 %v674
    %v751 = vunpack.c.h.b16 %v674
    %v752 = vunpack.c.l.b16 %v675
    %v753 = vunpack.c.h.b16 %v675
    %v754 = vunpack.c.l.b16 %v676
    %v755 = vunpack.c.h.b16 %v676
    %v756 = vunpack.c.l.b16 %v677
    %v757 = vunpack.c.h.b16 %v677
    %v758 = vunpack.c.l.b16 %v678
    %v759 = vunpack.c.h.b16 %v678
    %v760 = vunpack.c.l.b16 %v679
    %v761 = vunpack.c.h.b16 %v679
    %v762 = vunpack.c.l.b16 %v680
    %v763 = vunpack.c.h.b16 %v680
    %v764 = vunpack.c.l.b16 %v681
    %v765 = vunpack.c.h.b16 %v681
    %v766 = vunpack.c.l.b16 %v682
    %v767 = vunpack.c.h.b16 %v682
    %v768 = vunpack.c.l.b16 %v683
    %v769 = vunpack.c.h.b16 %v683
    %v770 = vunpack.c.l.b16 %v684
    %v771 = vunpack.c.h.b16 %v684
    %v772 = vunpack.c.l.b16 %v685
    %v773 = vunpack.c.h.b16 %v685
    %v774 = vunpack.c.l.b16 %v686
    %v775 = vunpack.c.h.b16 %v686
    %v776 = vunpack.c.l.b16 %v687
    %v777 = vunpack.c.h.b16 %v687
    %v778 = vunpack.c.l.b16 %v688
    %v779 = vunpack.c.h.b16 %v688
    %v780 = vunpack.c.l.b16 %v689
    %v781 = vunpack.c.h.b16 %v689
    %v782 = vunpack.c.l.b16 %v690
    %v783 = vunpack.c.h.b16 %v690
    %v784 = vunpack.c.l.b16 %v691
    %v785 = vunpack.c.h.b16 %v691
    %v786 = vunpack.c.l.b16 %v692
    %v787 = vunpack.c.h.b16 %v692
    %v788 = vunpack.c.l.b16 %v693
    %v789 = vunpack.c.h.b16 %v693
    %v790 = vunpack.c.l.b16 %v694
    %v791 = vunpack.c.h.b16 %v694
    %v792 = vunpack.c.l.b16 %v695
    %v793 = vunpack.c.h.b16 %v695
    %v794 = vunpack.c.l.b16 %v696
    %v795 = vunpack.c.h.b16 %v696
    %v796 = vunpack.c.l.b16 %v697
    %v797 = vunpack.c.h.b16 %v697
    %v798 = vunpack.c.l.b16 %v698
    %v799 = vunpack.c.h.b16 %v698
    %v800 = vunpack.c.l.b16 %v699
    %v801 = vunpack.c.h.b16 %v699
    %v802 = vunpack.c.l.b16 %v700
    %v803 = vunpack.c.h.b16 %v700
    %v804 = vpack.c.b16 %v744, %v740
    %v805 = vpack.c.b16 %v745, %v741
    %v806 = vpack.c.b16 %v746, %v742
    %v807 = vpack.c.b16 %v747, %v743
    %v808 = vpack.c.b16 %v752, %v748
    %v809 = vpack.c.b16 %v753, %v749
    %v810 = vpack.c.b16 %v754, %v750
    %v811 = vpack.c.b16 %v755, %v751
    %v812 = vpack.c.b16 %v760, %v756
    %v813 = vpack.c.b16 %v761, %v757
    %v814 = vpack.c.b16 %v762, %v758
    %v815 = vpack.c.b16 %v763, %v759
    %v816 = vpack.c.b16 %v768, %v764
    %v817 = vpack.c.b16 %v769, %v765
    %v818 = vpack.c.b16 %v770, %v766
    %v819 = vpack.c.b16 %v771, %v767
    %v820 = vpack.c.b16 %v776, %v772
    %v821 = vpack.c.b16 %v777, %v773
    %v822 = vpack.c.b16 %v778, %v774
    %v823 = vpack.c.b16 %v779, %v775
    %v824 = vpack.c.b16 %v784, %v780
    %v825 = vpack.c.b16 %v785, %v781
    %v826 = vpack.c.b16 %v786, %v782
    %v827 = vpack.c.b16 %v787, %v783
    %v828 = vpack.c.b16 %v792, %v788
    %v829 = vpack.c.b16 %v793, %v789
    %v830 = vpack.c.b16 %v794, %v790
    %v831 = vpack.c.b16 %v795, %v791
    %v832 = vpack.c.b16 %v800, %v796
    %v833 = vpack.c.b16 %v801, %v797
    %v834 = vpack.c.b16 %v802, %v798
    %v835 = vpack.c.b16 %v803, %v799
    %868 = vmatprep.subr.bf16.mxu0 %v805
    %869 = vmatpush1.bf16.msra.mxu0 %v804
    %870 = vmatprep.subr.bf16.mxu0 %v809
    %871 = vmatpush1.bf16.msra.mxu0 %v808
    %872 = vmatprep.subr.bf16.mxu0 %v813
    %873 = vmatpush1.bf16.msra.mxu0 %v812
    %874 = vmatprep.subr.bf16.mxu0 %v817
    %875 = vmatpush1.bf16.msra.mxu0 %v816
    %876 = vmatprep.subr.bf16.mxu0 %v821
    %877 = vmatpush1.bf16.msra.mxu0 %v820
    %878 = vmatprep.subr.bf16.mxu0 %v825
    %879 = vmatpush1.bf16.msra.mxu0 %v824
    %880 = vmatprep.subr.bf16.mxu0 %v829
    %881 = vmatpush1.bf16.msra.mxu0 %v828
    %882 = vmatprep.subr.bf16.mxu0 %v833
    %883 = vmatpush1.bf16.msra.mxu0 %v832
    %884 = vmatprep.subr.bf16.mxu0 0
    %885 = vmatpush1.bf16.msra.mxu0 0
    %886 = vmatprep.subr.bf16.mxu0 0
    %887 = vmatpush1.bf16.msra.mxu0 0
    %888 = vmatprep.subr.bf16.mxu0 0
    %889 = vmatpush1.bf16.msra.mxu0 0
    %890 = vmatprep.subr.bf16.mxu0 0
    %891 = vmatpush1.bf16.msra.mxu0 0
    %892 = vmatprep.subr.bf16.mxu0 0
    %893 = vmatpush1.bf16.msra.mxu0 0
    %894 = vmatprep.subr.bf16.mxu0 0
    %895 = vmatpush1.bf16.msra.mxu0 0
    %896 = vmatprep.subr.bf16.mxu0 0
    %897 = vmatpush1.bf16.msra.mxu0 0
    %898 = vmatprep.subr.bf16.mxu0 0
    %899 = vmatpush1.bf16.msra.mxu0 0
    %900 = vmatprep.mubr.bf16.mxu0 0
    %901 = vmatmul.mubr.bf16.gmra.mrb[0].mxu0 %v707
    %v902 = vpop.f32.mrb[0].mxu0
    %v903 = vadd.f32 0.0, %v902
    %v904 = vpop.f32.mrb[0].mxu0
    %v905 = vadd.f32 0.0, %v904
    %v906 = vpop.f32.mrb[0].mxu0
    %v907 = vadd.f32 0.0, %v906
    %v908 = vpop.f32.mrb[0].mxu0
    %v909 = vadd.f32 0.0, %v908
    %910 = vdwg.mxu0
    %911 = vmatprep.subr.bf16.mxu0 %v807
    %912 = vmatpush1.bf16.msra.mxu0 %v806
    %913 = vmatprep.subr.bf16.mxu0 %v811
    %914 = vmatpush1.bf16.msra.mxu0 %v810
    %915 = vmatprep.subr.bf16.mxu0 %v815
    %916 = vmatpush1.bf16.msra.mxu0 %v814
    %917 = vmatprep.subr.bf16.mxu0 %v819
    %918 = vmatpush1.bf16.msra.mxu0 %v818
    %919 = vmatprep.subr.bf16.mxu0 %v823
    %920 = vmatpush1.bf16.msra.mxu0 %v822
    %921 = vmatprep.subr.bf16.mxu0 %v827
    %922 = vmatpush1.bf16.msra.mxu0 %v826
    %923 = vmatprep.subr.bf16.mxu0 %v831
    %924 = vmatpush1.bf16.msra.mxu0 %v830
    %925 = vmatprep.subr.bf16.mxu0 %v835
    %926 = vmatpush1.bf16.msra.mxu0 %v834
    %927 = vmatprep.subr.bf16.mxu0 0
    %928 = vmatpush1.bf16.msra.mxu0 0
    %929 = vmatprep.subr.bf16.mxu0 0
    %930 = vmatpush1.bf16.msra.mxu0 0
    %931 = vmatprep.subr.bf16.mxu0 0
    %932 = vmatpush1.bf16.msra.mxu0 0
    %933 = vmatprep.subr.bf16.mxu0 0
    %934 = vmatpush1.bf16.msra.mxu0 0
    %935 = vmatprep.subr.bf16.mxu0 0
    %936 = vmatpush1.bf16.msra.mxu0 0
    %937 = vmatprep.subr.bf16.mxu0 0
    %938 = vmatpush1.bf16.msra.mxu0 0
    %939 = vmatprep.subr.bf16.mxu0 0
    %940 = vmatpush1.bf16.msra.mxu0 0
    %941 = vmatprep.subr.bf16.mxu0 0
    %942 = vmatpush1.bf16.msra.mxu0 0
    %943 = vmatprep.mubr.bf16.mxu0 0
    %944 = vmatmul.mubr.bf16.gmra.mrb[0].mxu0 %v707
    %v945 = vpop.f32.mrb[0].mxu0
    %v946 = vadd.f32 0.0, %v945
    %v947 = vpop.f32.mrb[0].mxu0
    %v948 = vadd.f32 0.0, %v947
    %v949 = vpop.f32.mrb[0].mxu0
    %v950 = vadd.f32 0.0, %v949
    %v951 = vpop.f32.mrb[0].mxu0
    %v952 = vadd.f32 0.0, %v951
    %953 = vdwg.mxu0
    %v962 = vcombine.low %v903, %v905
    %v963 = vcombine.high %v903, %v905
    %v964 = vcombine.low %v946, %v948
    %v965 = vcombine.high %v946, %v948
    %v966 = vcombine.low %v907, %v909
    %v967 = vcombine.high %v907, %v909
    %v968 = vcombine.low %v950, %v952
    %v969 = vcombine.high %v950, %v952
    %v970 = vrot.slane %v962, 1
    %v971 = vrot.slane %v964, 1
    %v972 = vrot.slane %v962, 2
    %v973 = vrot.slane %v964, 2
    %v974 = vrot.slane %v962, 3
    %v975 = vrot.slane %v964, 3
    %v976 = vrot.slane %v963, 1
    %v977 = vrot.slane %v965, 1
    %v978 = vrot.slane %v963, 2
    %v979 = vrot.slane %v965, 2
    %v980 = vrot.slane %v963, 3
    %v981 = vrot.slane %v965, 3
    %v982 = vrot.slane %v966, 1
    %v983 = vrot.slane %v968, 1
    %v984 = vrot.slane %v966, 2
    %v985 = vrot.slane %v968, 2
    %v986 = vrot.slane %v966, 3
    %v987 = vrot.slane %v968, 3
    %v988 = vrot.slane %v967, 1
    %v989 = vrot.slane %v969, 1
    %v990 = vrot.slane %v967, 2
    %v991 = vrot.slane %v969, 2
    %v992 = vrot.slane %v967, 3
    %v993 = vrot.slane %v969, 3
    %v1026 = vadd.f32 %v601, %v962
    %v1027 = vadd.f32 %v603, %v964
    %v1028 = vadd.f32 %v602, %v970
    %v1029 = vadd.f32 %v604, %v971
    %v1030 = vadd.f32 %v605, %v972
    %v1031 = vadd.f32 %v607, %v973
    %v1032 = vadd.f32 %v606, %v974
    %v1033 = vadd.f32 %v608, %v975
    %v1034 = vadd.f32 %v609, %v963
    %v1035 = vadd.f32 %v611, %v965
    %v1036 = vadd.f32 %v610, %v976
    %v1037 = vadd.f32 %v612, %v977
    %v1038 = vadd.f32 %v613, %v978
    %v1039 = vadd.f32 %v615, %v979
    %v1040 = vadd.f32 %v614, %v980
    %v1041 = vadd.f32 %v616, %v981
    %v1042 = vadd.f32 %v617, %v966
    %v1043 = vadd.f32 %v619, %v968
    %v1044 = vadd.f32 %v618, %v982
    %v1045 = vadd.f32 %v620, %v983
    %v1046 = vadd.f32 %v621, %v984
    %v1047 = vadd.f32 %v623, %v985
    %v1048 = vadd.f32 %v622, %v986
    %v1049 = vadd.f32 %v624, %v987
    %v1050 = vadd.f32 %v625, %v967
    %v1051 = vadd.f32 %v627, %v969
    %v1052 = vadd.f32 %v626, %v988
    %v1053 = vadd.f32 %v628, %v989
    %v1054 = vadd.f32 %v629, %v990
    %v1055 = vadd.f32 %v631, %v991
    %v1056 = vadd.f32 %v630, %v992
    %v1057 = vadd.f32 %v632, %v993
    %v1058 = vxor.u32 %v1026, 2147483648
    %v1059 = vxor.u32 %v1028, 2147483648
    %v1060 = vxor.u32 %v1030, 2147483648
    %v1061 = vxor.u32 %v1032, 2147483648
    %v1062 = vxor.u32 %v1034, 2147483648
    %v1063 = vxor.u32 %v1036, 2147483648
    %v1064 = vxor.u32 %v1038, 2147483648
    %v1065 = vxor.u32 %v1040, 2147483648
    %v1066 = vxor.u32 %v1042, 2147483648
    %v1067 = vxor.u32 %v1044, 2147483648
    %v1068 = vxor.u32 %v1046, 2147483648
    %v1069 = vxor.u32 %v1048, 2147483648
    %v1070 = vxor.u32 %v1050, 2147483648
    %v1071 = vxor.u32 %v1052, 2147483648
    %v1072 = vxor.u32 %v1054, 2147483648
    %v1073 = vxor.u32 %v1056, 2147483648
    %v1074 = vmul.f32 %v1058, 1.442695
    %v1075 = vpow.pop %v1074
    %v1076 = vmul.f32 %v1059, 1.442695
    %v1077 = vpow.pop %v1076
    %v1078 = vmul.f32 %v1060, 1.442695
    %v1079 = vpow.pop %v1078
    %v1080 = vmul.f32 %v1061, 1.442695
    %v1081 = vpow.pop %v1080
    %v1082 = vmul.f32 %v1062, 1.442695
    %v1083 = vpow.pop %v1082
    %v1084 = vmul.f32 %v1063, 1.442695
    %v1085 = vpow.pop %v1084
    %v1086 = vmul.f32 %v1064, 1.442695
    %v1087 = vpow.pop %v1086
    %v1088 = vmul.f32 %v1065, 1.442695
    %v1089 = vpow.pop %v1088
    %v1090 = vmul.f32 %v1066, 1.442695
    %v1091 = vpow.pop %v1090
    %v1092 = vmul.f32 %v1067, 1.442695
    %v1093 = vpow.pop %v1092
    %v1094 = vmul.f32 %v1068, 1.442695
    %v1095 = vpow.pop %v1094
    %v1096 = vmul.f32 %v1069, 1.442695
    %v1097 = vpow.pop %v1096
    %v1098 = vmul.f32 %v1070, 1.442695
    %v1099 = vpow.pop %v1098
    %v1100 = vmul.f32 %v1071, 1.442695
    %v1101 = vpow.pop %v1100
    %v1102 = vmul.f32 %v1072, 1.442695
    %v1103 = vpow.pop %v1102
    %v1104 = vmul.f32 %v1073, 1.442695
    %v1105 = vpow.pop %v1104
    %v1106 = vadd.f32 %v1075, 1.0
    %v1107 = vadd.f32 %v1077, 1.0
    %v1108 = vadd.f32 %v1079, 1.0
    %v1109 = vadd.f32 %v1081, 1.0
    %v1110 = vadd.f32 %v1083, 1.0
    %v1111 = vadd.f32 %v1085, 1.0
    %v1112 = vadd.f32 %v1087, 1.0
    %v1113 = vadd.f32 %v1089, 1.0
    %v1114 = vadd.f32 %v1091, 1.0
    %v1115 = vadd.f32 %v1093, 1.0
    %v1116 = vadd.f32 %v1095, 1.0
    %v1117 = vadd.f32 %v1097, 1.0
    %v1118 = vadd.f32 %v1099, 1.0
    %v1119 = vadd.f32 %v1101, 1.0
    %v1120 = vadd.f32 %v1103, 1.0
    %v1121 = vadd.f32 %v1105, 1.0
    %v1122 = vrcp.pop %v1106
    %v1123 = vmul.f32 1.0, %v1122
    %v1124 = vrcp.pop %v1107
    %v1125 = vmul.f32 1.0, %v1124
    %v1126 = vrcp.pop %v1108
    %v1127 = vmul.f32 1.0, %v1126
    %v1128 = vrcp.pop %v1109
    %v1129 = vmul.f32 1.0, %v1128
    %v1130 = vrcp.pop %v1110
    %v1131 = vmul.f32 1.0, %v1130
    %v1132 = vrcp.pop %v1111
    %v1133 = vmul.f32 1.0, %v1132
    %v1134 = vrcp.pop %v1112
    %v1135 = vmul.f32 1.0, %v1134
    %v1136 = vrcp.pop %v1113
    %v1137 = vmul.f32 1.0, %v1136
    %v1138 = vrcp.pop %v1114
    %v1139 = vmul.f32 1.0, %v1138
    %v1140 = vrcp.pop %v1115
    %v1141 = vmul.f32 1.0, %v1140
    %v1142 = vrcp.pop %v1116
    %v1143 = vmul.f32 1.0, %v1142
    %v1144 = vrcp.pop %v1117
    %v1145 = vmul.f32 1.0, %v1144
    %v1146 = vrcp.pop %v1118
    %v1147 = vmul.f32 1.0, %v1146
    %v1148 = vrcp.pop %v1119
    %v1149 = vmul.f32 1.0, %v1148
    %v1150 = vrcp.pop %v1120
    %v1151 = vmul.f32 1.0, %v1150
    %v1152 = vrcp.pop %v1121
    %v1153 = vmul.f32 1.0, %v1152
    %v1170 = vrot.slane %v1026, 4
    %v1171 = vrot.slane %v1028, 4
    %v1172 = vrot.slane %v1030, 4
    %v1173 = vrot.slane %v1032, 4
    %v1174 = vrot.slane %v1034, 4
    %v1175 = vrot.slane %v1036, 4
    %v1176 = vrot.slane %v1038, 4
    %v1177 = vrot.slane %v1040, 4
    %v1178 = vrot.slane %v1042, 4
    %v1179 = vrot.slane %v1044, 4
    %v1180 = vrot.slane %v1046, 4
    %v1181 = vrot.slane %v1048, 4
    %v1182 = vrot.slane %v1050, 4
    %v1183 = vrot.slane %v1052, 4
    %v1184 = vrot.slane %v1054, 4
    %v1185 = vrot.slane %v1056, 4
    %v1202 = vxor.u32 %v1170, 2147483648
    %v1203 = vxor.u32 %v1171, 2147483648
    %v1204 = vxor.u32 %v1172, 2147483648
    %v1205 = vxor.u32 %v1173, 2147483648
    %v1206 = vxor.u32 %v1174, 2147483648
    %v1207 = vxor.u32 %v1175, 2147483648
    %v1208 = vxor.u32 %v1176, 2147483648
    %v1209 = vxor.u32 %v1177, 2147483648
    %v1210 = vxor.u32 %v1178, 2147483648
    %v1211 = vxor.u32 %v1179, 2147483648
    %v1212 = vxor.u32 %v1180, 2147483648
    %v1213 = vxor.u32 %v1181, 2147483648
    %v1214 = vxor.u32 %v1182, 2147483648
    %v1215 = vxor.u32 %v1183, 2147483648
    %v1216 = vxor.u32 %v1184, 2147483648
    %v1217 = vxor.u32 %v1185, 2147483648
    %v1218 = vmul.f32 %v1202, 1.442695
    %v1219 = vpow.pop %v1218
    %v1220 = vmul.f32 %v1203, 1.442695
    %v1221 = vpow.pop %v1220
    %v1222 = vmul.f32 %v1204, 1.442695
    %v1223 = vpow.pop %v1222
    %v1224 = vmul.f32 %v1205, 1.442695
    %v1225 = vpow.pop %v1224
    %v1226 = vmul.f32 %v1206, 1.442695
    %v1227 = vpow.pop %v1226
    %v1228 = vmul.f32 %v1207, 1.442695
    %v1229 = vpow.pop %v1228
    %v1230 = vmul.f32 %v1208, 1.442695
    %v1231 = vpow.pop %v1230
    %v1232 = vmul.f32 %v1209, 1.442695
    %v1233 = vpow.pop %v1232
    %v1234 = vmul.f32 %v1210, 1.442695
    %v1235 = vpow.pop %v1234
    %v1236 = vmul.f32 %v1211, 1.442695
    %v1237 = vpow.pop %v1236
    %v1238 = vmul.f32 %v1212, 1.442695
    %v1239 = vpow.pop %v1238
    %v1240 = vmul.f32 %v1213, 1.442695
    %v1241 = vpow.pop %v1240
    %v1242 = vmul.f32 %v1214, 1.442695
    %v1243 = vpow.pop %v1242
    %v1244 = vmul.f32 %v1215, 1.442695
    %v1245 = vpow.pop %v1244
    %v1246 = vmul.f32 %v1216, 1.442695
    %v1247 = vpow.pop %v1246
    %v1248 = vmul.f32 %v1217, 1.442695
    %v1249 = vpow.pop %v1248
    %v1250 = vadd.f32 %v1219, 1.0
    %v1251 = vadd.f32 %v1221, 1.0
    %v1252 = vadd.f32 %v1223, 1.0
    %v1253 = vadd.f32 %v1225, 1.0
    %v1254 = vadd.f32 %v1227, 1.0
    %v1255 = vadd.f32 %v1229, 1.0
    %v1256 = vadd.f32 %v1231, 1.0
    %v1257 = vadd.f32 %v1233, 1.0
    %v1258 = vadd.f32 %v1235, 1.0
    %v1259 = vadd.f32 %v1237, 1.0
    %v1260 = vadd.f32 %v1239, 1.0
    %v1261 = vadd.f32 %v1241, 1.0
    %v1262 = vadd.f32 %v1243, 1.0
    %v1263 = vadd.f32 %v1245, 1.0
    %v1264 = vadd.f32 %v1247, 1.0
    %v1265 = vadd.f32 %v1249, 1.0
    %v1266 = vrcp.pop %v1250
    %v1267 = vmul.f32 1.0, %v1266
    %v1268 = vrcp.pop %v1251
    %v1269 = vmul.f32 1.0, %v1268
    %v1270 = vrcp.pop %v1252
    %v1271 = vmul.f32 1.0, %v1270
    %v1272 = vrcp.pop %v1253
    %v1273 = vmul.f32 1.0, %v1272
    %v1274 = vrcp.pop %v1254
    %v1275 = vmul.f32 1.0, %v1274
    %v1276 = vrcp.pop %v1255
    %v1277 = vmul.f32 1.0, %v1276
    %v1278 = vrcp.pop %v1256
    %v1279 = vmul.f32 1.0, %v1278
    %v1280 = vrcp.pop %v1257
    %v1281 = vmul.f32 1.0, %v1280
    %v1282 = vrcp.pop %v1258
    %v1283 = vmul.f32 1.0, %v1282
    %v1284 = vrcp.pop %v1259
    %v1285 = vmul.f32 1.0, %v1284
    %v1286 = vrcp.pop %v1260
    %v1287 = vmul.f32 1.0, %v1286
    %v1288 = vrcp.pop %v1261
    %v1289 = vmul.f32 1.0, %v1288
    %v1290 = vrcp.pop %v1262
    %v1291 = vmul.f32 1.0, %v1290
    %v1292 = vrcp.pop %v1263
    %v1293 = vmul.f32 1.0, %v1292
    %v1294 = vrcp.pop %v1264
    %v1295 = vmul.f32 1.0, %v1294
    %v1296 = vrcp.pop %v1265
    %v1297 = vmul.f32 1.0, %v1296
    %v1298 = vtanh.pop %v1027
    %v1299 = vtanh.pop %v1029
    %v1300 = vtanh.pop %v1031
    %v1301 = vtanh.pop %v1033
    %v1302 = vtanh.pop %v1035
    %v1303 = vtanh.pop %v1037
    %v1304 = vtanh.pop %v1039
    %v1305 = vtanh.pop %v1041
    %v1306 = vtanh.pop %v1043
    %v1307 = vtanh.pop %v1045
    %v1308 = vtanh.pop %v1047
    %v1309 = vtanh.pop %v1049
    %v1310 = vtanh.pop %v1051
    %v1311 = vtanh.pop %v1053
    %v1312 = vtanh.pop %v1055
    %v1313 = vtanh.pop %v1057
    %v1330 = vrot.slane %v1027, 4
    %v1331 = vrot.slane %v1029, 4
    %v1332 = vrot.slane %v1031, 4
    %v1333 = vrot.slane %v1033, 4
    %v1334 = vrot.slane %v1035, 4
    %v1335 = vrot.slane %v1037, 4
    %v1336 = vrot.slane %v1039, 4
    %v1337 = vrot.slane %v1041, 4
    %v1338 = vrot.slane %v1043, 4
    %v1339 = vrot.slane %v1045, 4
    %v1340 = vrot.slane %v1047, 4
    %v1341 = vrot.slane %v1049, 4
    %v1342 = vrot.slane %v1051, 4
    %v1343 = vrot.slane %v1053, 4
    %v1344 = vrot.slane %v1055, 4
    %v1345 = vrot.slane %v1057, 4
    %v1362 = vxor.u32 %v1330, 2147483648
    %v1363 = vxor.u32 %v1331, 2147483648
    %v1364 = vxor.u32 %v1332, 2147483648
    %v1365 = vxor.u32 %v1333, 2147483648
    %v1366 = vxor.u32 %v1334, 2147483648
    %v1367 = vxor.u32 %v1335, 2147483648
    %v1368 = vxor.u32 %v1336, 2147483648
    %v1369 = vxor.u32 %v1337, 2147483648
    %v1370 = vxor.u32 %v1338, 2147483648
    %v1371 = vxor.u32 %v1339, 2147483648
    %v1372 = vxor.u32 %v1340, 2147483648
    %v1373 = vxor.u32 %v1341, 2147483648
    %v1374 = vxor.u32 %v1342, 2147483648
    %v1375 = vxor.u32 %v1343, 2147483648
    %v1376 = vxor.u32 %v1344, 2147483648
    %v1377 = vxor.u32 %v1345, 2147483648
    %v1378 = vmul.f32 %v1362, 1.442695
    %v1379 = vpow.pop %v1378
    %v1380 = vmul.f32 %v1363, 1.442695
    %v1381 = vpow.pop %v1380
    %v1382 = vmul.f32 %v1364, 1.442695
    %v1383 = vpow.pop %v1382
    %v1384 = vmul.f32 %v1365, 1.442695
    %v1385 = vpow.pop %v1384
    %v1386 = vmul.f32 %v1366, 1.442695
    %v1387 = vpow.pop %v1386
    %v1388 = vmul.f32 %v1367, 1.442695
    %v1389 = vpow.pop %v1388
    %v1390 = vmul.f32 %v1368, 1.442695
    %v1391 = vpow.pop %v1390
    %v1392 = vmul.f32 %v1369, 1.442695
    %v1393 = vpow.pop %v1392
    %v1394 = vmul.f32 %v1370, 1.442695
    %v1395 = vpow.pop %v1394
    %v1396 = vmul.f32 %v1371, 1.442695
    %v1397 = vpow.pop %v1396
    %v1398 = vmul.f32 %v1372, 1.442695
    %v1399 = vpow.pop %v1398
    %v1400 = vmul.f32 %v1373, 1.442695
    %v1401 = vpow.pop %v1400
    %v1402 = vmul.f32 %v1374, 1.442695
    %v1403 = vpow.pop %v1402
    %v1404 = vmul.f32 %v1375, 1.442695
    %v1405 = vpow.pop %v1404
    %v1406 = vmul.f32 %v1376, 1.442695
    %v1407 = vpow.pop %v1406
    %v1408 = vmul.f32 %v1377, 1.442695
    %v1409 = vpow.pop %v1408
    %v1410 = vadd.f32 %v1379, 1.0
    %v1411 = vadd.f32 %v1381, 1.0
    %v1412 = vadd.f32 %v1383, 1.0
    %v1413 = vadd.f32 %v1385, 1.0
    %v1414 = vadd.f32 %v1387, 1.0
    %v1415 = vadd.f32 %v1389, 1.0
    %v1416 = vadd.f32 %v1391, 1.0
    %v1417 = vadd.f32 %v1393, 1.0
    %v1418 = vadd.f32 %v1395, 1.0
    %v1419 = vadd.f32 %v1397, 1.0
    %v1420 = vadd.f32 %v1399, 1.0
    %v1421 = vadd.f32 %v1401, 1.0
    %v1422 = vadd.f32 %v1403, 1.0
    %v1423 = vadd.f32 %v1405, 1.0
    %v1424 = vadd.f32 %v1407, 1.0
    %v1425 = vadd.f32 %v1409, 1.0
    %v1426 = vrcp.pop %v1410
    %v1427 = vmul.f32 1.0, %v1426
    %v1428 = vrcp.pop %v1411
    %v1429 = vmul.f32 1.0, %v1428
    %v1430 = vrcp.pop %v1412
    %v1431 = vmul.f32 1.0, %v1430
    %v1432 = vrcp.pop %v1413
    %v1433 = vmul.f32 1.0, %v1432
    %v1434 = vrcp.pop %v1414
    %v1435 = vmul.f32 1.0, %v1434
    %v1436 = vrcp.pop %v1415
    %v1437 = vmul.f32 1.0, %v1436
    %v1438 = vrcp.pop %v1416
    %v1439 = vmul.f32 1.0, %v1438
    %v1440 = vrcp.pop %v1417
    %v1441 = vmul.f32 1.0, %v1440
    %v1442 = vrcp.pop %v1418
    %v1443 = vmul.f32 1.0, %v1442
    %v1444 = vrcp.pop %v1419
    %v1445 = vmul.f32 1.0, %v1444
    %v1446 = vrcp.pop %v1420
    %v1447 = vmul.f32 1.0, %v1446
    %v1448 = vrcp.pop %v1421
    %v1449 = vmul.f32 1.0, %v1448
    %v1450 = vrcp.pop %v1422
    %v1451 = vmul.f32 1.0, %v1450
    %v1452 = vrcp.pop %v1423
    %v1453 = vmul.f32 1.0, %v1452
    %v1454 = vrcp.pop %v1424
    %v1455 = vmul.f32 1.0, %v1454
    %v1456 = vrcp.pop %v1425
    %v1457 = vmul.f32 1.0, %v1456
    %v1460 = vcombine.high %v705, %v705
    %v1461 = vcombine.high %v706, %v706
    %v1462 = vrot.slane %v705, 1
    %v1463 = vrot.slane %v705, 2
    %v1464 = vrot.slane %v705, 3
    %v1465 = vrot.slane %v1460, 1
    %v1466 = vrot.slane %v1460, 2
    %v1467 = vrot.slane %v1460, 3
    %v1468 = vrot.slane %v706, 1
    %v1469 = vrot.slane %v706, 2
    %v1470 = vrot.slane %v706, 3
    %v1471 = vrot.slane %v1461, 1
    %v1472 = vrot.slane %v1461, 2
    %v1473 = vrot.slane %v1461, 3
    %v1490 = vmul.f32 %v1267, %v705
    %v1491 = vmul.f32 %v1269, %v1462
    %v1492 = vmul.f32 %v1271, %v1463
    %v1493 = vmul.f32 %v1273, %v1464
    %v1494 = vmul.f32 %v1275, %v1460
    %v1495 = vmul.f32 %v1277, %v1465
    %v1496 = vmul.f32 %v1279, %v1466
    %v1497 = vmul.f32 %v1281, %v1467
    %v1498 = vmul.f32 %v1283, %v706
    %v1499 = vmul.f32 %v1285, %v1468
    %v1500 = vmul.f32 %v1287, %v1469
    %v1501 = vmul.f32 %v1289, %v1470
    %v1502 = vmul.f32 %v1291, %v1461
    %v1503 = vmul.f32 %v1293, %v1471
    %v1504 = vmul.f32 %v1295, %v1472
    %v1505 = vmul.f32 %v1297, %v1473
    %v1506 = vmul.f32 %v1123, %v1298
    %v1507 = vmul.f32 %v1125, %v1299
    %v1508 = vmul.f32 %v1127, %v1300
    %v1509 = vmul.f32 %v1129, %v1301
    %v1510 = vmul.f32 %v1131, %v1302
    %v1511 = vmul.f32 %v1133, %v1303
    %v1512 = vmul.f32 %v1135, %v1304
    %v1513 = vmul.f32 %v1137, %v1305
    %v1514 = vmul.f32 %v1139, %v1306
    %v1515 = vmul.f32 %v1141, %v1307
    %v1516 = vmul.f32 %v1143, %v1308
    %v1517 = vmul.f32 %v1145, %v1309
    %v1518 = vmul.f32 %v1147, %v1310
    %v1519 = vmul.f32 %v1149, %v1311
    %v1520 = vmul.f32 %v1151, %v1312
    %v1521 = vmul.f32 %v1153, %v1313
    %v1522 = vadd.f32 %v1490, %v1506
    %v1523 = vadd.f32 %v1491, %v1507
    %v1524 = vadd.f32 %v1492, %v1508
    %v1525 = vadd.f32 %v1493, %v1509
    %v1526 = vadd.f32 %v1494, %v1510
    %v1527 = vadd.f32 %v1495, %v1511
    %v1528 = vadd.f32 %v1496, %v1512
    %v1529 = vadd.f32 %v1497, %v1513
    %v1530 = vadd.f32 %v1498, %v1514
    %v1531 = vadd.f32 %v1499, %v1515
    %v1532 = vadd.f32 %v1500, %v1516
    %v1533 = vadd.f32 %v1501, %v1517
    %v1534 = vadd.f32 %v1502, %v1518
    %v1535 = vadd.f32 %v1503, %v1519
    %v1536 = vadd.f32 %v1504, %v1520
    %v1537 = vadd.f32 %v1505, %v1521
    %v1538 = vtanh.pop %v1522
    %v1539 = vtanh.pop %v1523
    %v1540 = vtanh.pop %v1524
    %v1541 = vtanh.pop %v1525
    %v1542 = vtanh.pop %v1526
    %v1543 = vtanh.pop %v1527
    %v1544 = vtanh.pop %v1528
    %v1545 = vtanh.pop %v1529
    %v1546 = vtanh.pop %v1530
    %v1547 = vtanh.pop %v1531
    %v1548 = vtanh.pop %v1532
    %v1549 = vtanh.pop %v1533
    %v1550 = vtanh.pop %v1534
    %v1551 = vtanh.pop %v1535
    %v1552 = vtanh.pop %v1536
    %v1553 = vtanh.pop %v1537
    %v1554 = vmul.f32 %v1427, %v1538
    %v1555 = vmul.f32 %v1429, %v1539
    %v1556 = vmul.f32 %v1431, %v1540
    %v1557 = vmul.f32 %v1433, %v1541
    %v1558 = vmul.f32 %v1435, %v1542
    %v1559 = vmul.f32 %v1437, %v1543
    %v1560 = vmul.f32 %v1439, %v1544
    %v1561 = vmul.f32 %v1441, %v1545
    %v1562 = vmul.f32 %v1443, %v1546
    %v1563 = vmul.f32 %v1445, %v1547
    %v1564 = vmul.f32 %v1447, %v1548
    %v1565 = vmul.f32 %v1449, %v1549
    %v1566 = vmul.f32 %v1451, %v1550
    %v1567 = vmul.f32 %v1453, %v1551
    %v1568 = vmul.f32 %v1455, %v1552
    %v1569 = vmul.f32 %v1457, %v1553
    %vm1570 = vcmp.gt.f32.partialorder %v701, 0.0
    %vm1571 = vcmp.gt.f32.partialorder %v702, 0.0
    %v1572 = vsel %vm1570, 1, 0
    %v1573 = vsel %vm1571, 1, 0
    %1574 = vset.pattern.permute.xlu0 0
    %1575 = vperm.xlu0 %1574, %v1572
    %v1576 = vpop.permute.xlu0 %1575
    %1577 = vset.pattern.permute.xlu0 0
    %1578 = vperm.xlu0 %1577, %v1573
    %v1579 = vpop.permute.xlu0 %1578
    %vm1580 = vcmp.eq.s32.totalorder %v1576, 1
    %vm1581 = vcmp.eq.s32.totalorder %v1579, 1
    %v1598 = vlaneseq
    %v1599 = vshrl.u32 %v1598, 7
    %v1600 = vsub.s32 0, %v1599
    %v1601 = vrot.slane %v1554, %v1600
    %v1602 = vlaneseq
    %v1603 = vshrl.u32 %v1602, 7
    %v1604 = vsub.s32 0, %v1603
    %v1605 = vrot.slane %v1555, %v1604
    %v1606 = vlaneseq
    %v1607 = vshrl.u32 %v1606, 7
    %v1608 = vsub.s32 0, %v1607
    %v1609 = vrot.slane %v1556, %v1608
    %v1610 = vlaneseq
    %v1611 = vshrl.u32 %v1610, 7
    %v1612 = vsub.s32 0, %v1611
    %v1613 = vrot.slane %v1557, %v1612
    %v1614 = vlaneseq
    %v1615 = vshrl.u32 %v1614, 7
    %v1616 = vsub.s32 0, %v1615
    %v1617 = vrot.slane %v1558, %v1616
    %v1618 = vlaneseq
    %v1619 = vshrl.u32 %v1618, 7
    %v1620 = vsub.s32 0, %v1619
    %v1621 = vrot.slane %v1559, %v1620
    %v1622 = vlaneseq
    %v1623 = vshrl.u32 %v1622, 7
    %v1624 = vsub.s32 0, %v1623
    %v1625 = vrot.slane %v1560, %v1624
    %v1626 = vlaneseq
    %v1627 = vshrl.u32 %v1626, 7
    %v1628 = vsub.s32 0, %v1627
    %v1629 = vrot.slane %v1561, %v1628
    %v1630 = vlaneseq
    %v1631 = vshrl.u32 %v1630, 7
    %v1632 = vsub.s32 0, %v1631
    %v1633 = vrot.slane %v1562, %v1632
    %v1634 = vlaneseq
    %v1635 = vshrl.u32 %v1634, 7
    %v1636 = vsub.s32 0, %v1635
    %v1637 = vrot.slane %v1563, %v1636
    %v1638 = vlaneseq
    %v1639 = vshrl.u32 %v1638, 7
    %v1640 = vsub.s32 0, %v1639
    %v1641 = vrot.slane %v1564, %v1640
    %v1642 = vlaneseq
    %v1643 = vshrl.u32 %v1642, 7
    %v1644 = vsub.s32 0, %v1643
    %v1645 = vrot.slane %v1565, %v1644
    %v1646 = vlaneseq
    %v1647 = vshrl.u32 %v1646, 7
    %v1648 = vsub.s32 0, %v1647
    %v1649 = vrot.slane %v1566, %v1648
    %v1650 = vlaneseq
    %v1651 = vshrl.u32 %v1650, 7
    %v1652 = vsub.s32 0, %v1651
    %v1653 = vrot.slane %v1567, %v1652
    %v1654 = vlaneseq
    %v1655 = vshrl.u32 %v1654, 7
    %v1656 = vsub.s32 0, %v1655
    %v1657 = vrot.slane %v1568, %v1656
    %v1658 = vlaneseq
    %v1659 = vshrl.u32 %v1658, 7
    %v1660 = vsub.s32 0, %v1659
    %v1661 = vrot.slane %v1569, %v1660
    %vm1662 = vcmask 1041409
    %v1663 = vsel %vm1662, %v1605, %v1601
    %vm1664 = vcmask 1042434
    %v1665 = vsel %vm1664, %v1609, %v1663
    %vm1666 = vcmask 1043459
    %v1667 = vsel %vm1666, %v1613, %v1665
    %vm1668 = vcmask 1044484
    %v1669 = vsel %vm1668, %v1617, %v1667
    %vm1670 = vcmask 1045509
    %v1671 = vsel %vm1670, %v1621, %v1669
    %vm1672 = vcmask 1046534
    %v1673 = vsel %vm1672, %v1625, %v1671
    %vm1674 = vcmask 1047559
    %v1675 = vsel %vm1674, %v1629, %v1673
    %v1676 = vsel %vm1662, %v1637, %v1633
    %v1677 = vsel %vm1664, %v1641, %v1676
    %v1678 = vsel %vm1666, %v1645, %v1677
    %v1679 = vsel %vm1668, %v1649, %v1678
    %v1680 = vsel %vm1670, %v1653, %v1679
    %v1681 = vsel %vm1672, %v1657, %v1680
    %v1682 = vsel %vm1674, %v1661, %v1681
    %v1685 = vsel %vm1580, %v1675, %v703
    %v1686 = vsel %vm1581, %v1682, %v704
    %1687 = vst [vmem:[#allocation2] sm:$0xff] %v1685
    %1688 = vst [vmem:[#allocation2 + $0x8] sm:$0xff] %v1686
    %v1705 = vlaneseq
    %v1706 = vshrl.u32 %v1705, 7
    %v1707 = vsub.s32 0, %v1706
    %v1708 = vrot.slane %v1522, %v1707
    %v1709 = vlaneseq
    %v1710 = vshrl.u32 %v1709, 7
    %v1711 = vsub.s32 0, %v1710
    %v1712 = vrot.slane %v1523, %v1711
    %v1713 = vlaneseq
    %v1714 = vshrl.u32 %v1713, 7
    %v1715 = vsub.s32 0, %v1714
    %v1716 = vrot.slane %v1524, %v1715
    %v1717 = vlaneseq
    %v1718 = vshrl.u32 %v1717, 7
    %v1719 = vsub.s32 0, %v1718
    %v1720 = vrot.slane %v1525, %v1719
    %v1721 = vlaneseq
    %v1722 = vshrl.u32 %v1721, 7
    %v1723 = vsub.s32 0, %v1722
    %v1724 = vrot.slane %v1526, %v1723
    %v1725 = vlaneseq
    %v1726 = vshrl.u32 %v1725, 7
    %v1727 = vsub.s32 0, %v1726
    %v1728 = vrot.slane %v1527, %v1727
    %v1729 = vlaneseq
    %v1730 = vshrl.u32 %v1729, 7
    %v1731 = vsub.s32 0, %v1730
    %v1732 = vrot.slane %v1528, %v1731
    %v1733 = vlaneseq
    %v1734 = vshrl.u32 %v1733, 7
    %v1735 = vsub.s32 0, %v1734
    %v1736 = vrot.slane %v1529, %v1735
    %v1737 = vlaneseq
    %v1738 = vshrl.u32 %v1737, 7
    %v1739 = vsub.s32 0, %v1738
    %v1740 = vrot.slane %v1530, %v1739
    %v1741 = vlaneseq
    %v1742 = vshrl.u32 %v1741, 7
    %v1743 = vsub.s32 0, %v1742
    %v1744 = vrot.slane %v1531, %v1743
    %v1745 = vlaneseq
    %v1746 = vshrl.u32 %v1745, 7
    %v1747 = vsub.s32 0, %v1746
    %v1748 = vrot.slane %v1532, %v1747
    %v1749 = vlaneseq
    %v1750 = vshrl.u32 %v1749, 7
    %v1751 = vsub.s32 0, %v1750
    %v1752 = vrot.slane %v1533, %v1751
    %v1753 = vlaneseq
    %v1754 = vshrl.u32 %v1753, 7
    %v1755 = vsub.s32 0, %v1754
    %v1756 = vrot.slane %v1534, %v1755
    %v1757 = vlaneseq
    %v1758 = vshrl.u32 %v1757, 7
    %v1759 = vsub.s32 0, %v1758
    %v1760 = vrot.slane %v1535, %v1759
    %v1761 = vlaneseq
    %v1762 = vshrl.u32 %v1761, 7
    %v1763 = vsub.s32 0, %v1762
    %v1764 = vrot.slane %v1536, %v1763
    %v1765 = vlaneseq
    %v1766 = vshrl.u32 %v1765, 7
    %v1767 = vsub.s32 0, %v1766
    %v1768 = vrot.slane %v1537, %v1767
    %v1769 = vsel %vm1662, %v1712, %v1708
    %v1770 = vsel %vm1664, %v1716, %v1769
    %v1771 = vsel %vm1666, %v1720, %v1770
    %v1772 = vsel %vm1668, %v1724, %v1771
    %v1773 = vsel %vm1670, %v1728, %v1772
    %v1774 = vsel %vm1672, %v1732, %v1773
    %v1775 = vsel %vm1674, %v1736, %v1774
    %v1776 = vsel %vm1662, %v1744, %v1740
    %v1777 = vsel %vm1664, %v1748, %v1776
    %v1778 = vsel %vm1666, %v1752, %v1777
    %v1779 = vsel %vm1668, %v1756, %v1778
    %v1780 = vsel %vm1670, %v1760, %v1779
    %v1781 = vsel %vm1672, %v1764, %v1780
    %v1782 = vsel %vm1674, %v1768, %v1781
    %v1785 = vsel %vm1580, %v1775, %v705
    %v1786 = vsel %vm1581, %v1782, %v706
    %1787 = vst [vmem:[#allocation3] sm:$0xff] %v1785
    %1788 = vst [vmem:[#allocation3 + $0x8] sm:$0xff] %v1786
    %v1789 = vld [vmem:[#allocation2] sm:$0xff]
    %v1790 = vld [vmem:[#allocation2 + $0x8] sm:$0xff]
    %v1791 = vld [vmem:[#allocation3] sm:$0xff]
    %v1792 = vld [vmem:[#allocation3 + $0x8] sm:$0xff]
    %v1793 = vpack.c.bf16 %v1790, %v1789
    %1794 = vmatprep.subr.bf16.mxu0 %v805
    %1795 = vmatpush1.bf16.msra.mxu0 %v804
    %1796 = vmatprep.subr.bf16.mxu0 %v809
    %1797 = vmatpush1.bf16.msra.mxu0 %v808
    %1798 = vmatprep.subr.bf16.mxu0 %v813
    %1799 = vmatpush1.bf16.msra.mxu0 %v812
    %1800 = vmatprep.subr.bf16.mxu0 %v817
    %1801 = vmatpush1.bf16.msra.mxu0 %v816
    %1802 = vmatprep.subr.bf16.mxu0 %v821
    %1803 = vmatpush1.bf16.msra.mxu0 %v820
    %1804 = vmatprep.subr.bf16.mxu0 %v825
    %1805 = vmatpush1.bf16.msra.mxu0 %v824
    %1806 = vmatprep.subr.bf16.mxu0 %v829
    %1807 = vmatpush1.bf16.msra.mxu0 %v828
    %1808 = vmatprep.subr.bf16.mxu0 %v833
    %1809 = vmatpush1.bf16.msra.mxu0 %v832
    %1810 = vmatprep.subr.bf16.mxu0 0
    %1811 = vmatpush1.bf16.msra.mxu0 0
    %1812 = vmatprep.subr.bf16.mxu0 0
    %1813 = vmatpush1.bf16.msra.mxu0 0
    %1814 = vmatprep.subr.bf16.mxu0 0
    %1815 = vmatpush1.bf16.msra.mxu0 0
    %1816 = vmatprep.subr.bf16.mxu0 0
    %1817 = vmatpush1.bf16.msra.mxu0 0
    %1818 = vmatprep.subr.bf16.mxu0 0
    %1819 = vmatpush1.bf16.msra.mxu0 0
    %1820 = vmatprep.subr.bf16.mxu0 0
    %1821 = vmatpush1.bf16.msra.mxu0 0
    %1822 = vmatprep.subr.bf16.mxu0 0
    %1823 = vmatpush1.bf16.msra.mxu0 0
    %1824 = vmatprep.subr.bf16.mxu0 0
    %1825 = vmatpush1.bf16.msra.mxu0 0
    %1826 = vmatprep.mubr.bf16.mxu0 0
    %1827 = vmatmul.mubr.bf16.gmra.mrb[0].mxu0 %v1793
    %v1828 = vpop.f32.mrb[0].mxu0
    %v1829 = vadd.f32 0.0, %v1828
    %v1830 = vpop.f32.mrb[0].mxu0
    %v1831 = vadd.f32 0.0, %v1830
    %v1832 = vpop.f32.mrb[0].mxu0
    %v1833 = vadd.f32 0.0, %v1832
    %v1834 = vpop.f32.mrb[0].mxu0
    %v1835 = vadd.f32 0.0, %v1834
    %1836 = vdwg.mxu0
    %1837 = vmatprep.subr.bf16.mxu0 %v807
    %1838 = vmatpush1.bf16.msra.mxu0 %v806
    %1839 = vmatprep.subr.bf16.mxu0 %v811
    %1840 = vmatpush1.bf16.msra.mxu0 %v810
    %1841 = vmatprep.subr.bf16.mxu0 %v815
    %1842 = vmatpush1.bf16.msra.mxu0 %v814
    %1843 = vmatprep.subr.bf16.mxu0 %v819
    %1844 = vmatpush1.bf16.msra.mxu0 %v818
    %1845 = vmatprep.subr.bf16.mxu0 %v823
    %1846 = vmatpush1.bf16.msra.mxu0 %v822
    %1847 = vmatprep.subr.bf16.mxu0 %v827
    %1848 = vmatpush1.bf16.msra.mxu0 %v826
    %1849 = vmatprep.subr.bf16.mxu0 %v831
    %1850 = vmatpush1.bf16.msra.mxu0 %v830
    %1851 = vmatprep.subr.bf16.mxu0 %v835
    %1852 = vmatpush1.bf16.msra.mxu0 %v834
    %1853 = vmatprep.subr.bf16.mxu0 0
    %1854 = vmatpush1.bf16.msra.mxu0 0
    %1855 = vmatprep.subr.bf16.mxu0 0
    %1856 = vmatpush1.bf16.msra.mxu0 0
    %1857 = vmatprep.subr.bf16.mxu0 0
    %1858 = vmatpush1.bf16.msra.mxu0 0
    %1859 = vmatprep.subr.bf16.mxu0 0
    %1860 = vmatpush1.bf16.msra.mxu0 0
    %1861 = vmatprep.subr.bf16.mxu0 0
    %1862 = vmatpush1.bf16.msra.mxu0 0
    %1863 = vmatprep.subr.bf16.mxu0 0
    %1864 = vmatpush1.bf16.msra.mxu0 0
    %1865 = vmatprep.subr.bf16.mxu0 0
    %1866 = vmatpush1.bf16.msra.mxu0 0
    %1867 = vmatprep.subr.bf16.mxu0 0
    %1868 = vmatpush1.bf16.msra.mxu0 0
    %1869 = vmatprep.mubr.bf16.mxu0 0
    %1870 = vmatmul.mubr.bf16.gmra.mrb[0].mxu0 %v1793
    %v1871 = vpop.f32.mrb[0].mxu0
    %v1872 = vadd.f32 0.0, %v1871
    %v1873 = vpop.f32.mrb[0].mxu0
    %v1874 = vadd.f32 0.0, %v1873
    %v1875 = vpop.f32.mrb[0].mxu0
    %v1876 = vadd.f32 0.0, %v1875
    %v1877 = vpop.f32.mrb[0].mxu0
    %v1878 = vadd.f32 0.0, %v1877
    %1879 = vdwg.mxu0
    %v1888 = vcombine.low %v1829, %v1831
    %v1889 = vcombine.high %v1829, %v1831
    %v1890 = vcombine.low %v1872, %v1874
    %v1891 = vcombine.high %v1872, %v1874
    %v1892 = vcombine.low %v1833, %v1835
    %v1893 = vcombine.high %v1833, %v1835
    %v1894 = vcombine.low %v1876, %v1878
    %v1895 = vcombine.high %v1876, %v1878
    %v1896 = vrot.slane %v1888, 7
    %v1897 = vrot.slane %v1890, 7
    %v1898 = vrot.slane %v1888, 1
    %v1899 = vrot.slane %v1890, 1
    %v1900 = vrot.slane %v1888, 2
    %v1901 = vrot.slane %v1890, 2
    %v1902 = vrot.slane %v1889, 7
    %v1903 = vrot.slane %v1891, 7
    %v1904 = vrot.slane %v1889, 1
    %v1905 = vrot.slane %v1891, 1
    %v1906 = vrot.slane %v1889, 2
    %v1907 = vrot.slane %v1891, 2
    %v1908 = vrot.slane %v1892, 7
    %v1909 = vrot.slane %v1894, 7
    %v1910 = vrot.slane %v1892, 1
    %v1911 = vrot.slane %v1894, 1
    %v1912 = vrot.slane %v1892, 2
    %v1913 = vrot.slane %v1894, 2
    %v1914 = vrot.slane %v1893, 7
    %v1915 = vrot.slane %v1895, 7
    %v1916 = vrot.slane %v1893, 1
    %v1917 = vrot.slane %v1895, 1
    %v1918 = vrot.slane %v1893, 2
    %v1919 = vrot.slane %v1895, 2
    %v1952 = vadd.f32 %v601, %v1896
    %v1953 = vadd.f32 %v603, %v1897
    %v1954 = vadd.f32 %v602, %v1888
    %v1955 = vadd.f32 %v604, %v1890
    %v1956 = vadd.f32 %v605, %v1898
    %v1957 = vadd.f32 %v607, %v1899
    %v1958 = vadd.f32 %v606, %v1900
    %v1959 = vadd.f32 %v608, %v1901
    %v1960 = vadd.f32 %v609, %v1902
    %v1961 = vadd.f32 %v611, %v1903
    %v1962 = vadd.f32 %v610, %v1889
    %v1963 = vadd.f32 %v612, %v1891
    %v1964 = vadd.f32 %v613, %v1904
    %v1965 = vadd.f32 %v615, %v1905
    %v1966 = vadd.f32 %v614, %v1906
    %v1967 = vadd.f32 %v616, %v1907
    %v1968 = vadd.f32 %v617, %v1908
    %v1969 = vadd.f32 %v619, %v1909
    %v1970 = vadd.f32 %v618, %v1892
    %v1971 = vadd.f32 %v620, %v1894
    %v1972 = vadd.f32 %v621, %v1910
    %v1973 = vadd.f32 %v623, %v1911
    %v1974 = vadd.f32 %v622, %v1912
    %v1975 = vadd.f32 %v624, %v1913
    %v1976 = vadd.f32 %v625, %v1914
    %v1977 = vadd.f32 %v627, %v1915
    %v1978 = vadd.f32 %v626, %v1893
    %v1979 = vadd.f32 %v628, %v1895
    %v1980 = vadd.f32 %v629, %v1916
    %v1981 = vadd.f32 %v631, %v1917
    %v1982 = vadd.f32 %v630, %v1918
    %v1983 = vadd.f32 %v632, %v1919
    %v1984 = vxor.u32 %v1952, 2147483648
    %v1985 = vxor.u32 %v1954, 2147483648
    %v1986 = vxor.u32 %v1956, 2147483648
    %v1987 = vxor.u32 %v1958, 2147483648
    %v1988 = vxor.u32 %v1960, 2147483648
    %v1989 = vxor.u32 %v1962, 2147483648
    %v1990 = vxor.u32 %v1964, 2147483648
    %v1991 = vxor.u32 %v1966, 2147483648
    %v1992 = vxor.u32 %v1968, 2147483648
    %v1993 = vxor.u32 %v1970, 2147483648
    %v1994 = vxor.u32 %v1972, 2147483648
    %v1995 = vxor.u32 %v1974, 2147483648
    %v1996 = vxor.u32 %v1976, 2147483648
    %v1997 = vxor.u32 %v1978, 2147483648
    %v1998 = vxor.u32 %v1980, 2147483648
    %v1999 = vxor.u32 %v1982, 2147483648
    %v2000 = vmul.f32 %v1984, 1.442695
    %v2001 = vpow.pop %v2000
    %v2002 = vmul.f32 %v1985, 1.442695
    %v2003 = vpow.pop %v2002
    %v2004 = vmul.f32 %v1986, 1.442695
    %v2005 = vpow.pop %v2004
    %v2006 = vmul.f32 %v1987, 1.442695
    %v2007 = vpow.pop %v2006
    %v2008 = vmul.f32 %v1988, 1.442695
    %v2009 = vpow.pop %v2008
    %v2010 = vmul.f32 %v1989, 1.442695
    %v2011 = vpow.pop %v2010
    %v2012 = vmul.f32 %v1990, 1.442695
    %v2013 = vpow.pop %v2012
    %v2014 = vmul.f32 %v1991, 1.442695
    %v2015 = vpow.pop %v2014
    %v2016 = vmul.f32 %v1992, 1.442695
    %v2017 = vpow.pop %v2016
    %v2018 = vmul.f32 %v1993, 1.442695
    %v2019 = vpow.pop %v2018
    %v2020 = vmul.f32 %v1994, 1.442695
    %v2021 = vpow.pop %v2020
    %v2022 = vmul.f32 %v1995, 1.442695
    %v2023 = vpow.pop %v2022
    %v2024 = vmul.f32 %v1996, 1.442695
    %v2025 = vpow.pop %v2024
    %v2026 = vmul.f32 %v1997, 1.442695
    %v2027 = vpow.pop %v2026
    %v2028 = vmul.f32 %v1998, 1.442695
    %v2029 = vpow.pop %v2028
    %v2030 = vmul.f32 %v1999, 1.442695
    %v2031 = vpow.pop %v2030
    %v2032 = vadd.f32 %v2001, 1.0
    %v2033 = vadd.f32 %v2003, 1.0
    %v2034 = vadd.f32 %v2005, 1.0
    %v2035 = vadd.f32 %v2007, 1.0
    %v2036 = vadd.f32 %v2009, 1.0
    %v2037 = vadd.f32 %v2011, 1.0
    %v2038 = vadd.f32 %v2013, 1.0
    %v2039 = vadd.f32 %v2015, 1.0
    %v2040 = vadd.f32 %v2017, 1.0
    %v2041 = vadd.f32 %v2019, 1.0
    %v2042 = vadd.f32 %v2021, 1.0
    %v2043 = vadd.f32 %v2023, 1.0
    %v2044 = vadd.f32 %v2025, 1.0
    %v2045 = vadd.f32 %v2027, 1.0
    %v2046 = vadd.f32 %v2029, 1.0
    %v2047 = vadd.f32 %v2031, 1.0
    %v2048 = vrcp.pop %v2032
    %v2049 = vmul.f32 1.0, %v2048
    %v2050 = vrcp.pop %v2033
    %v2051 = vmul.f32 1.0, %v2050
    %v2052 = vrcp.pop %v2034
    %v2053 = vmul.f32 1.0, %v2052
    %v2054 = vrcp.pop %v2035
    %v2055 = vmul.f32 1.0, %v2054
    %v2056 = vrcp.pop %v2036
    %v2057 = vmul.f32 1.0, %v2056
    %v2058 = vrcp.pop %v2037
    %v2059 = vmul.f32 1.0, %v2058
    %v2060 = vrcp.pop %v2038
    %v2061 = vmul.f32 1.0, %v2060
    %v2062 = vrcp.pop %v2039
    %v2063 = vmul.f32 1.0, %v2062
    %v2064 = vrcp.pop %v2040
    %v2065 = vmul.f32 1.0, %v2064
    %v2066 = vrcp.pop %v2041
    %v2067 = vmul.f32 1.0, %v2066
    %v2068 = vrcp.pop %v2042
    %v2069 = vmul.f32 1.0, %v2068
    %v2070 = vrcp.pop %v2043
    %v2071 = vmul.f32 1.0, %v2070
    %v2072 = vrcp.pop %v2044
    %v2073 = vmul.f32 1.0, %v2072
    %v2074 = vrcp.pop %v2045
    %v2075 = vmul.f32 1.0, %v2074
    %v2076 = vrcp.pop %v2046
    %v2077 = vmul.f32 1.0, %v2076
    %v2078 = vrcp.pop %v2047
    %v2079 = vmul.f32 1.0, %v2078
    %v2096 = vrot.slane %v1952, 4
    %v2097 = vrot.slane %v1954, 4
    %v2098 = vrot.slane %v1956, 4
    %v2099 = vrot.slane %v1958, 4
    %v2100 = vrot.slane %v1960, 4
    %v2101 = vrot.slane %v1962, 4
    %v2102 = vrot.slane %v1964, 4
    %v2103 = vrot.slane %v1966, 4
    %v2104 = vrot.slane %v1968, 4
    %v2105 = vrot.slane %v1970, 4
    %v2106 = vrot.slane %v1972, 4
    %v2107 = vrot.slane %v1974, 4
    %v2108 = vrot.slane %v1976, 4
    %v2109 = vrot.slane %v1978, 4
    %v2110 = vrot.slane %v1980, 4
    %v2111 = vrot.slane %v1982, 4
    %v2128 = vxor.u32 %v2096, 2147483648
    %v2129 = vxor.u32 %v2097, 2147483648
    %v2130 = vxor.u32 %v2098, 2147483648
    %v2131 = vxor.u32 %v2099, 2147483648
    %v2132 = vxor.u32 %v2100, 2147483648
    %v2133 = vxor.u32 %v2101, 2147483648
    %v2134 = vxor.u32 %v2102, 2147483648
    %v2135 = vxor.u32 %v2103, 2147483648
    %v2136 = vxor.u32 %v2104, 2147483648
    %v2137 = vxor.u32 %v2105, 2147483648
    %v2138 = vxor.u32 %v2106, 2147483648
    %v2139 = vxor.u32 %v2107, 2147483648
    %v2140 = vxor.u32 %v2108, 2147483648
    %v2141 = vxor.u32 %v2109, 2147483648
    %v2142 = vxor.u32 %v2110, 2147483648
    %v2143 = vxor.u32 %v2111, 2147483648
    %v2144 = vmul.f32 %v2128, 1.442695
    %v2145 = vpow.pop %v2144
    %v2146 = vmul.f32 %v2129, 1.442695
    %v2147 = vpow.pop %v2146
    %v2148 = vmul.f32 %v2130, 1.442695
    %v2149 = vpow.pop %v2148
    %v2150 = vmul.f32 %v2131, 1.442695
    %v2151 = vpow.pop %v2150
    %v2152 = vmul.f32 %v2132, 1.442695
    %v2153 = vpow.pop %v2152
    %v2154 = vmul.f32 %v2133, 1.442695
    %v2155 = vpow.pop %v2154
    %v2156 = vmul.f32 %v2134, 1.442695
    %v2157 = vpow.pop %v2156
    %v2158 = vmul.f32 %v2135, 1.442695
    %v2159 = vpow.pop %v2158
    %v2160 = vmul.f32 %v2136, 1.442695
    %v2161 = vpow.pop %v2160
    %v2162 = vmul.f32 %v2137, 1.442695
    %v2163 = vpow.pop %v2162
    %v2164 = vmul.f32 %v2138, 1.442695
    %v2165 = vpow.pop %v2164
    %v2166 = vmul.f32 %v2139, 1.442695
    %v2167 = vpow.pop %v2166
    %v2168 = vmul.f32 %v2140, 1.442695
    %v2169 = vpow.pop %v2168
    %v2170 = vmul.f32 %v2141, 1.442695
    %v2171 = vpow.pop %v2170
    %v2172 = vmul.f32 %v2142, 1.442695
    %v2173 = vpow.pop %v2172
    %v2174 = vmul.f32 %v2143, 1.442695
    %v2175 = vpow.pop %v2174
    %v2176 = vadd.f32 %v2145, 1.0
    %v2177 = vadd.f32 %v2147, 1.0
    %v2178 = vadd.f32 %v2149, 1.0
    %v2179 = vadd.f32 %v2151, 1.0
    %v2180 = vadd.f32 %v2153, 1.0
    %v2181 = vadd.f32 %v2155, 1.0
    %v2182 = vadd.f32 %v2157, 1.0
    %v2183 = vadd.f32 %v2159, 1.0
    %v2184 = vadd.f32 %v2161, 1.0
    %v2185 = vadd.f32 %v2163, 1.0
    %v2186 = vadd.f32 %v2165, 1.0
    %v2187 = vadd.f32 %v2167, 1.0
    %v2188 = vadd.f32 %v2169, 1.0
    %v2189 = vadd.f32 %v2171, 1.0
    %v2190 = vadd.f32 %v2173, 1.0
    %v2191 = vadd.f32 %v2175, 1.0
    %v2192 = vrcp.pop %v2176
    %v2193 = vmul.f32 1.0, %v2192
    %v2194 = vrcp.pop %v2177
    %v2195 = vmul.f32 1.0, %v2194
    %v2196 = vrcp.pop %v2178
    %v2197 = vmul.f32 1.0, %v2196
    %v2198 = vrcp.pop %v2179
    %v2199 = vmul.f32 1.0, %v2198
    %v2200 = vrcp.pop %v2180
    %v2201 = vmul.f32 1.0, %v2200
    %v2202 = vrcp.pop %v2181
    %v2203 = vmul.f32 1.0, %v2202
    %v2204 = vrcp.pop %v2182
    %v2205 = vmul.f32 1.0, %v2204
    %v2206 = vrcp.pop %v2183
    %v2207 = vmul.f32 1.0, %v2206
    %v2208 = vrcp.pop %v2184
    %v2209 = vmul.f32 1.0, %v2208
    %v2210 = vrcp.pop %v2185
    %v2211 = vmul.f32 1.0, %v2210
    %v2212 = vrcp.pop %v2186
    %v2213 = vmul.f32 1.0, %v2212
    %v2214 = vrcp.pop %v2187
    %v2215 = vmul.f32 1.0, %v2214
    %v2216 = vrcp.pop %v2188
    %v2217 = vmul.f32 1.0, %v2216
    %v2218 = vrcp.pop %v2189
    %v2219 = vmul.f32 1.0, %v2218
    %v2220 = vrcp.pop %v2190
    %v2221 = vmul.f32 1.0, %v2220
    %v2222 = vrcp.pop %v2191
    %v2223 = vmul.f32 1.0, %v2222
    %v2224 = vtanh.pop %v1953
    %v2225 = vtanh.pop %v1955
    %v2226 = vtanh.pop %v1957
    %v2227 = vtanh.pop %v1959
    %v2228 = vtanh.pop %v1961
    %v2229 = vtanh.pop %v1963
    %v2230 = vtanh.pop %v1965
    %v2231 = vtanh.pop %v1967
    %v2232 = vtanh.pop %v1969
    %v2233 = vtanh.pop %v1971
    %v2234 = vtanh.pop %v1973
    %v2235 = vtanh.pop %v1975
    %v2236 = vtanh.pop %v1977
    %v2237 = vtanh.pop %v1979
    %v2238 = vtanh.pop %v1981
    %v2239 = vtanh.pop %v1983
    %v2256 = vrot.slane %v1953, 4
    %v2257 = vrot.slane %v1955, 4
    %v2258 = vrot.slane %v1957, 4
    %v2259 = vrot.slane %v1959, 4
    %v2260 = vrot.slane %v1961, 4
    %v2261 = vrot.slane %v1963, 4
    %v2262 = vrot.slane %v1965, 4
    %v2263 = vrot.slane %v1967, 4
    %v2264 = vrot.slane %v1969, 4
    %v2265 = vrot.slane %v1971, 4
    %v2266 = vrot.slane %v1973, 4
    %v2267 = vrot.slane %v1975, 4
    %v2268 = vrot.slane %v1977, 4
    %v2269 = vrot.slane %v1979, 4
    %v2270 = vrot.slane %v1981, 4
    %v2271 = vrot.slane %v1983, 4
    %v2288 = vxor.u32 %v2256, 2147483648
    %v2289 = vxor.u32 %v2257, 2147483648
    %v2290 = vxor.u32 %v2258, 2147483648
    %v2291 = vxor.u32 %v2259, 2147483648
    %v2292 = vxor.u32 %v2260, 2147483648
    %v2293 = vxor.u32 %v2261, 2147483648
    %v2294 = vxor.u32 %v2262, 2147483648
    %v2295 = vxor.u32 %v2263, 2147483648
    %v2296 = vxor.u32 %v2264, 2147483648
    %v2297 = vxor.u32 %v2265, 2147483648
    %v2298 = vxor.u32 %v2266, 2147483648
    %v2299 = vxor.u32 %v2267, 2147483648
    %v2300 = vxor.u32 %v2268, 2147483648
    %v2301 = vxor.u32 %v2269, 2147483648
    %v2302 = vxor.u32 %v2270, 2147483648
    %v2303 = vxor.u32 %v2271, 2147483648
    %v2304 = vmul.f32 %v2288, 1.442695
    %v2305 = vpow.pop %v2304
    %v2306 = vmul.f32 %v2289, 1.442695
    %v2307 = vpow.pop %v2306
    %v2308 = vmul.f32 %v2290, 1.442695
    %v2309 = vpow.pop %v2308
    %v2310 = vmul.f32 %v2291, 1.442695
    %v2311 = vpow.pop %v2310
    %v2312 = vmul.f32 %v2292, 1.442695
    %v2313 = vpow.pop %v2312
    %v2314 = vmul.f32 %v2293, 1.442695
    %v2315 = vpow.pop %v2314
    %v2316 = vmul.f32 %v2294, 1.442695
    %v2317 = vpow.pop %v2316
    %v2318 = vmul.f32 %v2295, 1.442695
    %v2319 = vpow.pop %v2318
    %v2320 = vmul.f32 %v2296, 1.442695
    %v2321 = vpow.pop %v2320
    %v2322 = vmul.f32 %v2297, 1.442695
    %v2323 = vpow.pop %v2322
    %v2324 = vmul.f32 %v2298, 1.442695
    %v2325 = vpow.pop %v2324
    %v2326 = vmul.f32 %v2299, 1.442695
    %v2327 = vpow.pop %v2326
    %v2328 = vmul.f32 %v2300, 1.442695
    %v2329 = vpow.pop %v2328
    %v2330 = vmul.f32 %v2301, 1.442695
    %v2331 = vpow.pop %v2330
    %v2332 = vmul.f32 %v2302, 1.442695
    %v2333 = vpow.pop %v2332
    %v2334 = vmul.f32 %v2303, 1.442695
    %v2335 = vpow.pop %v2334
    %v2336 = vadd.f32 %v2305, 1.0
    %v2337 = vadd.f32 %v2307, 1.0
    %v2338 = vadd.f32 %v2309, 1.0
    %v2339 = vadd.f32 %v2311, 1.0
    %v2340 = vadd.f32 %v2313, 1.0
    %v2341 = vadd.f32 %v2315, 1.0
    %v2342 = vadd.f32 %v2317, 1.0
    %v2343 = vadd.f32 %v2319, 1.0
    %v2344 = vadd.f32 %v2321, 1.0
    %v2345 = vadd.f32 %v2323, 1.0
    %v2346 = vadd.f32 %v2325, 1.0
    %v2347 = vadd.f32 %v2327, 1.0
    %v2348 = vadd.f32 %v2329, 1.0
    %v2349 = vadd.f32 %v2331, 1.0
    %v2350 = vadd.f32 %v2333, 1.0
    %v2351 = vadd.f32 %v2335, 1.0
    %v2352 = vrcp.pop %v2336
    %v2353 = vmul.f32 1.0, %v2352
    %v2354 = vrcp.pop %v2337
    %v2355 = vmul.f32 1.0, %v2354
    %v2356 = vrcp.pop %v2338
    %v2357 = vmul.f32 1.0, %v2356
    %v2358 = vrcp.pop %v2339
    %v2359 = vmul.f32 1.0, %v2358
    %v2360 = vrcp.pop %v2340
    %v2361 = vmul.f32 1.0, %v2360
    %v2362 = vrcp.pop %v2341
    %v2363 = vmul.f32 1.0, %v2362
    %v2364 = vrcp.pop %v2342
    %v2365 = vmul.f32 1.0, %v2364
    %v2366 = vrcp.pop %v2343
    %v2367 = vmul.f32 1.0, %v2366
    %v2368 = vrcp.pop %v2344
    %v2369 = vmul.f32 1.0, %v2368
    %v2370 = vrcp.pop %v2345
    %v2371 = vmul.f32 1.0, %v2370
    %v2372 = vrcp.pop %v2346
    %v2373 = vmul.f32 1.0, %v2372
    %v2374 = vrcp.pop %v2347
    %v2375 = vmul.f32 1.0, %v2374
    %v2376 = vrcp.pop %v2348
    %v2377 = vmul.f32 1.0, %v2376
    %v2378 = vrcp.pop %v2349
    %v2379 = vmul.f32 1.0, %v2378
    %v2380 = vrcp.pop %v2350
    %v2381 = vmul.f32 1.0, %v2380
    %v2382 = vrcp.pop %v2351
    %v2383 = vmul.f32 1.0, %v2382
    %v2386 = vcombine.high %v1791, %v1791
    %v2387 = vcombine.high %v1792, %v1792
    %v2388 = vrot.slane %v1791, 7
    %v2389 = vrot.slane %v1791, 1
    %v2390 = vrot.slane %v1791, 2
    %v2391 = vrot.slane %v2386, 7
    %v2392 = vrot.slane %v2386, 1
    %v2393 = vrot.slane %v2386, 2
    %v2394 = vrot.slane %v1792, 7
    %v2395 = vrot.slane %v1792, 1
    %v2396 = vrot.slane %v1792, 2
    %v2397 = vrot.slane %v2387, 7
    %v2398 = vrot.slane %v2387, 1
    %v2399 = vrot.slane %v2387, 2
    %v2416 = vmul.f32 %v2193, %v2388
    %v2417 = vmul.f32 %v2195, %v1791
    %v2418 = vmul.f32 %v2197, %v2389
    %v2419 = vmul.f32 %v2199, %v2390
    %v2420 = vmul.f32 %v2201, %v2391
    %v2421 = vmul.f32 %v2203, %v2386
    %v2422 = vmul.f32 %v2205, %v2392
    %v2423 = vmul.f32 %v2207, %v2393
    %v2424 = vmul.f32 %v2209, %v2394
    %v2425 = vmul.f32 %v2211, %v1792
    %v2426 = vmul.f32 %v2213, %v2395
    %v2427 = vmul.f32 %v2215, %v2396
    %v2428 = vmul.f32 %v2217, %v2397
    %v2429 = vmul.f32 %v2219, %v2387
    %v2430 = vmul.f32 %v2221, %v2398
    %v2431 = vmul.f32 %v2223, %v2399
    %v2432 = vmul.f32 %v2049, %v2224
    %v2433 = vmul.f32 %v2051, %v2225
    %v2434 = vmul.f32 %v2053, %v2226
    %v2435 = vmul.f32 %v2055, %v2227
    %v2436 = vmul.f32 %v2057, %v2228
    %v2437 = vmul.f32 %v2059, %v2229
    %v2438 = vmul.f32 %v2061, %v2230
    %v2439 = vmul.f32 %v2063, %v2231
    %v2440 = vmul.f32 %v2065, %v2232
    %v2441 = vmul.f32 %v2067, %v2233
    %v2442 = vmul.f32 %v2069, %v2234
    %v2443 = vmul.f32 %v2071, %v2235
    %v2444 = vmul.f32 %v2073, %v2236
    %v2445 = vmul.f32 %v2075, %v2237
    %v2446 = vmul.f32 %v2077, %v2238
    %v2447 = vmul.f32 %v2079, %v2239
    %v2448 = vadd.f32 %v2416, %v2432
    %v2449 = vadd.f32 %v2417, %v2433
    %v2450 = vadd.f32 %v2418, %v2434
    %v2451 = vadd.f32 %v2419, %v2435
    %v2452 = vadd.f32 %v2420, %v2436
    %v2453 = vadd.f32 %v2421, %v2437
    %v2454 = vadd.f32 %v2422, %v2438
    %v2455 = vadd.f32 %v2423, %v2439
    %v2456 = vadd.f32 %v2424, %v2440
    %v2457 = vadd.f32 %v2425, %v2441
    %v2458 = vadd.f32 %v2426, %v2442
    %v2459 = vadd.f32 %v2427, %v2443
    %v2460 = vadd.f32 %v2428, %v2444
    %v2461 = vadd.f32 %v2429, %v2445
    %v2462 = vadd.f32 %v2430, %v2446
    %v2463 = vadd.f32 %v2431, %v2447
    %v2464 = vtanh.pop %v2448
    %v2465 = vtanh.pop %v2449
    %v2466 = vtanh.pop %v2450
    %v2467 = vtanh.pop %v2451
    %v2468 = vtanh.pop %v2452
    %v2469 = vtanh.pop %v2453
    %v2470 = vtanh.pop %v2454
    %v2471 = vtanh.pop %v2455
    %v2472 = vtanh.pop %v2456
    %v2473 = vtanh.pop %v2457
    %v2474 = vtanh.pop %v2458
    %v2475 = vtanh.pop %v2459
    %v2476 = vtanh.pop %v2460
    %v2477 = vtanh.pop %v2461
    %v2478 = vtanh.pop %v2462
    %v2479 = vtanh.pop %v2463
    %v2480 = vmul.f32 %v2353, %v2464
    %v2481 = vmul.f32 %v2355, %v2465
    %v2482 = vmul.f32 %v2357, %v2466
    %v2483 = vmul.f32 %v2359, %v2467
    %v2484 = vmul.f32 %v2361, %v2468
    %v2485 = vmul.f32 %v2363, %v2469
    %v2486 = vmul.f32 %v2365, %v2470
    %v2487 = vmul.f32 %v2367, %v2471
    %v2488 = vmul.f32 %v2369, %v2472
    %v2489 = vmul.f32 %v2371, %v2473
    %v2490 = vmul.f32 %v2373, %v2474
    %v2491 = vmul.f32 %v2375, %v2475
    %v2492 = vmul.f32 %v2377, %v2476
    %v2493 = vmul.f32 %v2379, %v2477
    %v2494 = vmul.f32 %v2381, %v2478
    %v2495 = vmul.f32 %v2383, %v2479
    %vm2496 = vcmp.gt.f32.partialorder %v701, 1.0
    %vm2497 = vcmp.gt.f32.partialorder %v702, 1.0
    %v2498 = vsel %vm2496, 1, 0
    %v2499 = vsel %vm2497, 1, 0
    %2500 = vset.pattern.permute.xlu0 0
    %2501 = vperm.xlu0 %2500, %v2498
    %v2502 = vpop.permute.xlu0 %2501
    %2503 = vset.pattern.permute.xlu0 0
    %2504 = vperm.xlu0 %2503, %v2499
    %v2505 = vpop.permute.xlu0 %2504
    %vm2506 = vcmp.eq.s32.totalorder %v2502, 1
    %vm2507 = vcmp.eq.s32.totalorder %v2505, 1
    %v2524 = vlaneseq
    %v2525 = vshrl.u32 %v2524, 7
    %v2526 = vsub.s32 1, %v2525
    %v2527 = vrot.slane %v2480, %v2526
    %v2528 = vlaneseq
    %v2529 = vshrl.u32 %v2528, 7
    %v2530 = vsub.s32 1, %v2529
    %v2531 = vrot.slane %v2481, %v2530
    %v2532 = vlaneseq
    %v2533 = vshrl.u32 %v2532, 7
    %v2534 = vsub.s32 1, %v2533
    %v2535 = vrot.slane %v2482, %v2534
    %v2536 = vlaneseq
    %v2537 = vshrl.u32 %v2536, 7
    %v2538 = vsub.s32 1, %v2537
    %v2539 = vrot.slane %v2483, %v2538
    %v2540 = vlaneseq
    %v2541 = vshrl.u32 %v2540, 7
    %v2542 = vsub.s32 1, %v2541
    %v2543 = vrot.slane %v2484, %v2542
    %v2544 = vlaneseq
    %v2545 = vshrl.u32 %v2544, 7
    %v2546 = vsub.s32 1, %v2545
    %v2547 = vrot.slane %v2485, %v2546
    %v2548 = vlaneseq
    %v2549 = vshrl.u32 %v2548, 7
    %v2550 = vsub.s32 1, %v2549
    %v2551 = vrot.slane %v2486, %v2550
    %v2552 = vlaneseq
    %v2553 = vshrl.u32 %v2552, 7
    %v2554 = vsub.s32 1, %v2553
    %v2555 = vrot.slane %v2487, %v2554
    %v2556 = vlaneseq
    %v2557 = vshrl.u32 %v2556, 7
    %v2558 = vsub.s32 1, %v2557
    %v2559 = vrot.slane %v2488, %v2558
    %v2560 = vlaneseq
    %v2561 = vshrl.u32 %v2560, 7
    %v2562 = vsub.s32 1, %v2561
    %v2563 = vrot.slane %v2489, %v2562
    %v2564 = vlaneseq
    %v2565 = vshrl.u32 %v2564, 7
    %v2566 = vsub.s32 1, %v2565
    %v2567 = vrot.slane %v2490, %v2566
    %v2568 = vlaneseq
    %v2569 = vshrl.u32 %v2568, 7
    %v2570 = vsub.s32 1, %v2569
    %v2571 = vrot.slane %v2491, %v2570
    %v2572 = vlaneseq
    %v2573 = vshrl.u32 %v2572, 7
    %v2574 = vsub.s32 1, %v2573
    %v2575 = vrot.slane %v2492, %v2574
    %v2576 = vlaneseq
    %v2577 = vshrl.u32 %v2576, 7
    %v2578 = vsub.s32 1, %v2577
    %v2579 = vrot.slane %v2493, %v2578
    %v2580 = vlaneseq
    %v2581 = vshrl.u32 %v2580, 7
    %v2582 = vsub.s32 1, %v2581
    %v2583 = vrot.slane %v2494, %v2582
    %v2584 = vlaneseq
    %v2585 = vshrl.u32 %v2584, 7
    %v2586 = vsub.s32 1, %v2585
    %v2587 = vrot.slane %v2495, %v2586
    %v2588 = vsel %vm1662, %v2531, %v2527
    %v2589 = vsel %vm1664, %v2535, %v2588
    %v2590 = vsel %vm1666, %v2539, %v2589
    %v2591 = vsel %vm1668, %v2543, %v2590
    %v2592 = vsel %vm1670, %v2547, %v2591
    %v2593 = vsel %vm1672, %v2551, %v2592
    %v2594 = vsel %vm1674, %v2555, %v2593
    %v2595 = vsel %vm1662, %v2563, %v2559
    %v2596 = vsel %vm1664, %v2567, %v2595
    %v2597 = vsel %vm1666, %v2571, %v2596
    %v2598 = vsel %vm1668, %v2575, %v2597
    %v2599 = vsel %vm1670, %v2579, %v2598
    %v2600 = vsel %vm1672, %v2583, %v2599
    %v2601 = vsel %vm1674, %v2587, %v2600
    %v2604 = vsel %vm2506, %v2594, %v1789
    %v2605 = vsel %vm2507, %v2601, %v1790
    %2606 = vst [vmem:[#allocation2] sm:$0xff] %v2604
    %2607 = vst [vmem:[#allocation2 + $0x8] sm:$0xff] %v2605
    %v2624 = vlaneseq
    %v2625 = vshrl.u32 %v2624, 7
    %v2626 = vsub.s32 1, %v2625
    %v2627 = vrot.slane %v2448, %v2626
    %v2628 = vlaneseq
    %v2629 = vshrl.u32 %v2628, 7
    %v2630 = vsub.s32 1, %v2629
    %v2631 = vrot.slane %v2449, %v2630
    %v2632 = vlaneseq
    %v2633 = vshrl.u32 %v2632, 7
    %v2634 = vsub.s32 1, %v2633
    %v2635 = vrot.slane %v2450, %v2634
    %v2636 = vlaneseq
    %v2637 = vshrl.u32 %v2636, 7
    %v2638 = vsub.s32 1, %v2637
    %v2639 = vrot.slane %v2451, %v2638
    %v2640 = vlaneseq
    %v2641 = vshrl.u32 %v2640, 7
    %v2642 = vsub.s32 1, %v2641
    %v2643 = vrot.slane %v2452, %v2642
    %v2644 = vlaneseq
    %v2645 = vshrl.u32 %v2644, 7
    %v2646 = vsub.s32 1, %v2645
    %v2647 = vrot.slane %v2453, %v2646
    %v2648 = vlaneseq
    %v2649 = vshrl.u32 %v2648, 7
    %v2650 = vsub.s32 1, %v2649
    %v2651 = vrot.slane %v2454, %v2650
    %v2652 = vlaneseq
    %v2653 = vshrl.u32 %v2652, 7
    %v2654 = vsub.s32 1, %v2653
    %v2655 = vrot.slane %v2455, %v2654
    %v2656 = vlaneseq
    %v2657 = vshrl.u32 %v2656, 7
    %v2658 = vsub.s32 1, %v2657
    %v2659 = vrot.slane %v2456, %v2658
    %v2660 = vlaneseq
    %v2661 = vshrl.u32 %v2660, 7
    %v2662 = vsub.s32 1, %v2661
    %v2663 = vrot.slane %v2457, %v2662
    %v2664 = vlaneseq
    %v2665 = vshrl.u32 %v2664, 7
    %v2666 = vsub.s32 1, %v2665
    %v2667 = vrot.slane %v2458, %v2666
    %v2668 = vlaneseq
    %v2669 = vshrl.u32 %v2668, 7
    %v2670 = vsub.s32 1, %v2669
    %v2671 = vrot.slane %v2459, %v2670
    %v2672 = vlaneseq
    %v2673 = vshrl.u32 %v2672, 7
    %v2674 = vsub.s32 1, %v2673
    %v2675 = vrot.slane %v2460, %v2674
    %v2676 = vlaneseq
    %v2677 = vshrl.u32 %v2676, 7
    %v2678 = vsub.s32 1, %v2677
    %v2679 = vrot.slane %v2461, %v2678
    %v2680 = vlaneseq
    %v2681 = vshrl.u32 %v2680, 7
    %v2682 = vsub.s32 1, %v2681
    %v2683 = vrot.slane %v2462, %v2682
    %v2684 = vlaneseq
    %v2685 = vshrl.u32 %v2684, 7
    %v2686 = vsub.s32 1, %v2685
    %v2687 = vrot.slane %v2463, %v2686
    %v2688 = vsel %vm1662, %v2631, %v2627
    %v2689 = vsel %vm1664, %v2635, %v2688
    %v2690 = vsel %vm1666, %v2639, %v2689
    %v2691 = vsel %vm1668, %v2643, %v2690
    %v2692 = vsel %vm1670, %v2647, %v2691
    %v2693 = vsel %vm1672, %v2651, %v2692
    %v2694 = vsel %vm1674, %v2655, %v2693
    %v2695 = vsel %vm1662, %v2663, %v2659
    %v2696 = vsel %vm1664, %v2667, %v2695
    %v2697 = vsel %vm1666, %v2671, %v2696
    %v2698 = vsel %vm1668, %v2675, %v2697
    %v2699 = vsel %vm1670, %v2679, %v2698
    %v2700 = vsel %vm1672, %v2683, %v2699
    %v2701 = vsel %vm1674, %v2687, %v2700
    %v2704 = vsel %vm2506, %v2694, %v1791
    %v2705 = vsel %vm2507, %v2701, %v1792
    %2706 = vst [vmem:[#allocation3] sm:$0xff] %v2704
    %2707 = vst [vmem:[#allocation3 + $0x8] sm:$0xff] %v2705
    %v2708 = vld [vmem:[#allocation2] sm:$0xff]
    %v2709 = vld [vmem:[#allocation2 + $0x8] sm:$0xff]
    %v2710 = vld [vmem:[#allocation3] sm:$0xff]
    %v2711 = vld [vmem:[#allocation3 + $0x8] sm:$0xff]
    %v2712 = vpack.c.bf16 %v2709, %v2708
    %2713 = vmatprep.subr.bf16.mxu0 %v805
    %2714 = vmatpush1.bf16.msra.mxu0 %v804
    %2715 = vmatprep.subr.bf16.mxu0 %v809
    %2716 = vmatpush1.bf16.msra.mxu0 %v808
    %2717 = vmatprep.subr.bf16.mxu0 %v813
    %2718 = vmatpush1.bf16.msra.mxu0 %v812
    %2719 = vmatprep.subr.bf16.mxu0 %v817
    %2720 = vmatpush1.bf16.msra.mxu0 %v816
    %2721 = vmatprep.subr.bf16.mxu0 %v821
    %2722 = vmatpush1.bf16.msra.mxu0 %v820
    %2723 = vmatprep.subr.bf16.mxu0 %v825
    %2724 = vmatpush1.bf16.msra.mxu0 %v824
    %2725 = vmatprep.subr.bf16.mxu0 %v829
    %2726 = vmatpush1.bf16.msra.mxu0 %v828
    %2727 = vmatprep.subr.bf16.mxu0 %v833
    %2728 = vmatpush1.bf16.msra.mxu0 %v832
    %2729 = vmatprep.subr.bf16.mxu0 0
    %2730 = vmatpush1.bf16.msra.mxu0 0
    %2731 = vmatprep.subr.bf16.mxu0 0
    %2732 = vmatpush1.bf16.msra.mxu0 0
    %2733 = vmatprep.subr.bf16.mxu0 0
    %2734 = vmatpush1.bf16.msra.mxu0 0
    %2735 = vmatprep.subr.bf16.mxu0 0
    %2736 = vmatpush1.bf16.msra.mxu0 0
    %2737 = vmatprep.subr.bf16.mxu0 0
    %2738 = vmatpush1.bf16.msra.mxu0 0
    %2739 = vmatprep.subr.bf16.mxu0 0
    %2740 = vmatpush1.bf16.msra.mxu0 0
    %2741 = vmatprep.subr.bf16.mxu0 0
    %2742 = vmatpush1.bf16.msra.mxu0 0
    %2743 = vmatprep.subr.bf16.mxu0 0
    %2744 = vmatpush1.bf16.msra.mxu0 0
    %2745 = vmatprep.mubr.bf16.mxu0 0
    %2746 = vmatmul.mubr.bf16.gmra.mrb[0].mxu0 %v2712
    %v2747 = vpop.f32.mrb[0].mxu0
    %v2748 = vadd.f32 0.0, %v2747
    %v2749 = vpop.f32.mrb[0].mxu0
    %v2750 = vadd.f32 0.0, %v2749
    %v2751 = vpop.f32.mrb[0].mxu0
    %v2752 = vadd.f32 0.0, %v2751
    %v2753 = vpop.f32.mrb[0].mxu0
    %v2754 = vadd.f32 0.0, %v2753
    %2755 = vdwg.mxu0
    %2756 = vmatprep.subr.bf16.mxu0 %v807
    %2757 = vmatpush1.bf16.msra.mxu0 %v806
    %2758 = vmatprep.subr.bf16.mxu0 %v811
    %2759 = vmatpush1.bf16.msra.mxu0 %v810
    %2760 = vmatprep.subr.bf16.mxu0 %v815
    %2761 = vmatpush1.bf16.msra.mxu0 %v814
    %2762 = vmatprep.subr.bf16.mxu0 %v819
    %2763 = vmatpush1.bf16.msra.mxu0 %v818
    %2764 = vmatprep.subr.bf16.mxu0 %v823
    %2765 = vmatpush1.bf16.msra.mxu0 %v822
    %2766 = vmatprep.subr.bf16.mxu0 %v827
    %2767 = vmatpush1.bf16.msra.mxu0 %v826
    %2768 = vmatprep.subr.bf16.mxu0 %v831
    %2769 = vmatpush1.bf16.msra.mxu0 %v830
    %2770 = vmatprep.subr.bf16.mxu0 %v835
    %2771 = vmatpush1.bf16.msra.mxu0 %v834
    %2772 = vmatprep.subr.bf16.mxu0 0
    %2773 = vmatpush1.bf16.msra.mxu0 0
    %2774 = vmatprep.subr.bf16.mxu0 0
    %2775 = vmatpush1.bf16.msra.mxu0 0
    %2776 = vmatprep.subr.bf16.mxu0 0
    %2777 = vmatpush1.bf16.msra.mxu0 0
    %2778 = vmatprep.subr.bf16.mxu0 0
    %2779 = vmatpush1.bf16.msra.mxu0 0
    %2780 = vmatprep.subr.bf16.mxu0 0
    %2781 = vmatpush1.bf16.msra.mxu0 0
    %2782 = vmatprep.subr.bf16.mxu0 0
    %2783 = vmatpush1.bf16.msra.mxu0 0
    %2784 = vmatprep.subr.bf16.mxu0 0
    %2785 = vmatpush1.bf16.msra.mxu0 0
    %2786 = vmatprep.subr.bf16.mxu0 0
    %2787 = vmatpush1.bf16.msra.mxu0 0
    %2788 = vmatprep.mubr.bf16.mxu0 0
    %2789 = vmatmul.mubr.bf16.gmra.mrb[0].mxu0 %v2712
    %v2790 = vpop.f32.mrb[0].mxu0
    %v2791 = vadd.f32 0.0, %v2790
    %v2792 = vpop.f32.mrb[0].mxu0
    %v2793 = vadd.f32 0.0, %v2792
    %v2794 = vpop.f32.mrb[0].mxu0
    %v2795 = vadd.f32 0.0, %v2794
    %v2796 = vpop.f32.mrb[0].mxu0
    %v2797 = vadd.f32 0.0, %v2796
    %2798 = vdwg.mxu0
    %v2807 = vcombine.low %v2748, %v2750
    %v2808 = vcombine.high %v2748, %v2750
    %v2809 = vcombine.low %v2791, %v2793
    %v2810 = vcombine.high %v2791, %v2793
    %v2811 = vcombine.low %v2752, %v2754
    %v2812 = vcombine.high %v2752, %v2754
    %v2813 = vcombine.low %v2795, %v2797
    %v2814 = vcombine.high %v2795, %v2797
    %v2815 = vrot.slane %v2807, 6
    %v2816 = vrot.slane %v2809, 6
    %v2817 = vrot.slane %v2807, 7
    %v2818 = vrot.slane %v2809, 7
    %v2819 = vrot.slane %v2807, 1
    %v2820 = vrot.slane %v2809, 1
    %v2821 = vrot.slane %v2808, 6
    %v2822 = vrot.slane %v2810, 6
    %v2823 = vrot.slane %v2808, 7
    %v2824 = vrot.slane %v2810, 7
    %v2825 = vrot.slane %v2808, 1
    %v2826 = vrot.slane %v2810, 1
    %v2827 = vrot.slane %v2811, 6
    %v2828 = vrot.slane %v2813, 6
    %v2829 = vrot.slane %v2811, 7
    %v2830 = vrot.slane %v2813, 7
    %v2831 = vrot.slane %v2811, 1
    %v2832 = vrot.slane %v2813, 1
    %v2833 = vrot.slane %v2812, 6
    %v2834 = vrot.slane %v2814, 6
    %v2835 = vrot.slane %v2812, 7
    %v2836 = vrot.slane %v2814, 7
    %v2837 = vrot.slane %v2812, 1
    %v2838 = vrot.slane %v2814, 1
    %v2871 = vadd.f32 %v601, %v2815
    %v2872 = vadd.f32 %v603, %v2816
    %v2873 = vadd.f32 %v602, %v2817
    %v2874 = vadd.f32 %v604, %v2818
    %v2875 = vadd.f32 %v605, %v2807
    %v2876 = vadd.f32 %v607, %v2809
    %v2877 = vadd.f32 %v606, %v2819
    %v2878 = vadd.f32 %v608, %v2820
    %v2879 = vadd.f32 %v609, %v2821
    %v2880 = vadd.f32 %v611, %v2822
    %v2881 = vadd.f32 %v610, %v2823
    %v2882 = vadd.f32 %v612, %v2824
    %v2883 = vadd.f32 %v613, %v2808
    %v2884 = vadd.f32 %v615, %v2810
    %v2885 = vadd.f32 %v614, %v2825
    %v2886 = vadd.f32 %v616, %v2826
    %v2887 = vadd.f32 %v617, %v2827
    %v2888 = vadd.f32 %v619, %v2828
    %v2889 = vadd.f32 %v618, %v2829
    %v2890 = vadd.f32 %v620, %v2830
    %v2891 = vadd.f32 %v621, %v2811
    %v2892 = vadd.f32 %v623, %v2813
    %v2893 = vadd.f32 %v622, %v2831
    %v2894 = vadd.f32 %v624, %v2832
    %v2895 = vadd.f32 %v625, %v2833
    %v2896 = vadd.f32 %v627, %v2834
    %v2897 = vadd.f32 %v626, %v2835
    %v2898 = vadd.f32 %v628, %v2836
    %v2899 = vadd.f32 %v629, %v2812
    %v2900 = vadd.f32 %v631, %v2814
    %v2901 = vadd.f32 %v630, %v2837
    %v2902 = vadd.f32 %v632, %v2838
    %v2903 = vxor.u32 %v2871, 2147483648
    %v2904 = vxor.u32 %v2873, 2147483648
    %v2905 = vxor.u32 %v2875, 2147483648
    %v2906 = vxor.u32 %v2877, 2147483648
    %v2907 = vxor.u32 %v2879, 2147483648
    %v2908 = vxor.u32 %v2881, 2147483648
    %v2909 = vxor.u32 %v2883, 2147483648
    %v2910 = vxor.u32 %v2885, 2147483648
    %v2911 = vxor.u32 %v2887, 2147483648
    %v2912 = vxor.u32 %v2889, 2147483648
    %v2913 = vxor.u32 %v2891, 2147483648
    %v2914 = vxor.u32 %v2893, 2147483648
    %v2915 = vxor.u32 %v2895, 2147483648
    %v2916 = vxor.u32 %v2897, 2147483648
    %v2917 = vxor.u32 %v2899, 2147483648
    %v2918 = vxor.u32 %v2901, 2147483648
    %v2919 = vmul.f32 %v2903, 1.442695
    %v2920 = vpow.pop %v2919
    %v2921 = vmul.f32 %v2904, 1.442695
    %v2922 = vpow.pop %v2921
    %v2923 = vmul.f32 %v2905, 1.442695
    %v2924 = vpow.pop %v2923
    %v2925 = vmul.f32 %v2906, 1.442695
    %v2926 = vpow.pop %v2925
    %v2927 = vmul.f32 %v2907, 1.442695
    %v2928 = vpow.pop %v2927
    %v2929 = vmul.f32 %v2908, 1.442695
    %v2930 = vpow.pop %v2929
    %v2931 = vmul.f32 %v2909, 1.442695
    %v2932 = vpow.pop %v2931
    %v2933 = vmul.f32 %v2910, 1.442695
    %v2934 = vpow.pop %v2933
    %v2935 = vmul.f32 %v2911, 1.442695
    %v2936 = vpow.pop %v2935
    %v2937 = vmul.f32 %v2912, 1.442695
    %v2938 = vpow.pop %v2937
    %v2939 = vmul.f32 %v2913, 1.442695
    %v2940 = vpow.pop %v2939
    %v2941 = vmul.f32 %v2914, 1.442695
    %v2942 = vpow.pop %v2941
    %v2943 = vmul.f32 %v2915, 1.442695
    %v2944 = vpow.pop %v2943
    %v2945 = vmul.f32 %v2916, 1.442695
    %v2946 = vpow.pop %v2945
    %v2947 = vmul.f32 %v2917, 1.442695
    %v2948 = vpow.pop %v2947
    %v2949 = vmul.f32 %v2918, 1.442695
    %v2950 = vpow.pop %v2949
    %v2951 = vadd.f32 %v2920, 1.0
    %v2952 = vadd.f32 %v2922, 1.0
    %v2953 = vadd.f32 %v2924, 1.0
    %v2954 = vadd.f32 %v2926, 1.0
    %v2955 = vadd.f32 %v2928, 1.0
    %v2956 = vadd.f32 %v2930, 1.0
    %v2957 = vadd.f32 %v2932, 1.0
    %v2958 = vadd.f32 %v2934, 1.0
    %v2959 = vadd.f32 %v2936, 1.0
    %v2960 = vadd.f32 %v2938, 1.0
    %v2961 = vadd.f32 %v2940, 1.0
    %v2962 = vadd.f32 %v2942, 1.0
    %v2963 = vadd.f32 %v2944, 1.0
    %v2964 = vadd.f32 %v2946, 1.0
    %v2965 = vadd.f32 %v2948, 1.0
    %v2966 = vadd.f32 %v2950, 1.0
    %v2967 = vrcp.pop %v2951
    %v2968 = vmul.f32 1.0, %v2967
    %v2969 = vrcp.pop %v2952
    %v2970 = vmul.f32 1.0, %v2969
    %v2971 = vrcp.pop %v2953
    %v2972 = vmul.f32 1.0, %v2971
    %v2973 = vrcp.pop %v2954
    %v2974 = vmul.f32 1.0, %v2973
    %v2975 = vrcp.pop %v2955
    %v2976 = vmul.f32 1.0, %v2975
    %v2977 = vrcp.pop %v2956
    %v2978 = vmul.f32 1.0, %v2977
    %v2979 = vrcp.pop %v2957
    %v2980 = vmul.f32 1.0, %v2979
    %v2981 = vrcp.pop %v2958
    %v2982 = vmul.f32 1.0, %v2981
    %v2983 = vrcp.pop %v2959
    %v2984 = vmul.f32 1.0, %v2983
    %v2985 = vrcp.pop %v2960
    %v2986 = vmul.f32 1.0, %v2985
    %v2987 = vrcp.pop %v2961
    %v2988 = vmul.f32 1.0, %v2987
    %v2989 = vrcp.pop %v2962
    %v2990 = vmul.f32 1.0, %v2989
    %v2991 = vrcp.pop %v2963
    %v2992 = vmul.f32 1.0, %v2991
    %v2993 = vrcp.pop %v2964
    %v2994 = vmul.f32 1.0, %v2993
    %v2995 = vrcp.pop %v2965
    %v2996 = vmul.f32 1.0, %v2995
    %v2997 = vrcp.pop %v2966
    %v2998 = vmul.f32 1.0, %v2997
    %v3015 = vrot.slane %v2871, 4
    %v3016 = vrot.slane %v2873, 4
    %v3017 = vrot.slane %v2875, 4
    %v3018 = vrot.slane %v2877, 4
    %v3019 = vrot.slane %v2879, 4
    %v3020 = vrot.slane %v2881, 4
    %v3021 = vrot.slane %v2883, 4
    %v3022 = vrot.slane %v2885, 4
    %v3023 = vrot.slane %v2887, 4
    %v3024 = vrot.slane %v2889, 4
    %v3025 = vrot.slane %v2891, 4
    %v3026 = vrot.slane %v2893, 4
    %v3027 = vrot.slane %v2895, 4
    %v3028 = vrot.slane %v2897, 4
    %v3029 = vrot.slane %v2899, 4
    %v3030 = vrot.slane %v2901, 4
    %v3047 = vxor.u32 %v3015, 2147483648
    %v3048 = vxor.u32 %v3016, 2147483648
    %v3049 = vxor.u32 %v3017, 2147483648
    %v3050 = vxor.u32 %v3018, 2147483648
    %v3051 = vxor.u32 %v3019, 2147483648
    %v3052 = vxor.u32 %v3020, 2147483648
    %v3053 = vxor.u32 %v3021, 2147483648
    %v3054 = vxor.u32 %v3022, 2147483648
    %v3055 = vxor.u32 %v3023, 2147483648
    %v3056 = vxor.u32 %v3024, 2147483648
    %v3057 = vxor.u32 %v3025, 2147483648
    %v3058 = vxor.u32 %v3026, 2147483648
    %v3059 = vxor.u32 %v3027, 2147483648
    %v3060 = vxor.u32 %v3028, 2147483648
    %v3061 = vxor.u32 %v3029, 2147483648
    %v3062 = vxor.u32 %v3030, 2147483648
    %v3063 = vmul.f32 %v3047, 1.442695
    %v3064 = vpow.pop %v3063
    %v3065 = vmul.f32 %v3048, 1.442695
    %v3066 = vpow.pop %v3065
    %v3067 = vmul.f32 %v3049, 1.442695
    %v3068 = vpow.pop %v3067
    %v3069 = vmul.f32 %v3050, 1.442695
    %v3070 = vpow.pop %v3069
    %v3071 = vmul.f32 %v3051, 1.442695
    %v3072 = vpow.pop %v3071
    %v3073 = vmul.f32 %v3052, 1.442695
    %v3074 = vpow.pop %v3073
    %v3075 = vmul.f32 %v3053, 1.442695
    %v3076 = vpow.pop %v3075
    %v3077 = vmul.f32 %v3054, 1.442695
    %v3078 = vpow.pop %v3077
    %v3079 = vmul.f32 %v3055, 1.442695
    %v3080 = vpow.pop %v3079
    %v3081 = vmul.f32 %v3056, 1.442695
    %v3082 = vpow.pop %v3081
    %v3083 = vmul.f32 %v3057, 1.442695
    %v3084 = vpow.pop %v3083
    %v3085 = vmul.f32 %v3058, 1.442695
    %v3086 = vpow.pop %v3085
    %v3087 = vmul.f32 %v3059, 1.442695
    %v3088 = vpow.pop %v3087
    %v3089 = vmul.f32 %v3060, 1.442695
    %v3090 = vpow.pop %v3089
    %v3091 = vmul.f32 %v3061, 1.442695
    %v3092 = vpow.pop %v3091
    %v3093 = vmul.f32 %v3062, 1.442695
    %v3094 = vpow.pop %v3093
    %v3095 = vadd.f32 %v3064, 1.0
    %v3096 = vadd.f32 %v3066, 1.0
    %v3097 = vadd.f32 %v3068, 1.0
    %v3098 = vadd.f32 %v3070, 1.0
    %v3099 = vadd.f32 %v3072, 1.0
    %v3100 = vadd.f32 %v3074, 1.0
    %v3101 = vadd.f32 %v3076, 1.0
    %v3102 = vadd.f32 %v3078, 1.0
    %v3103 = vadd.f32 %v3080, 1.0
    %v3104 = vadd.f32 %v3082, 1.0
    %v3105 = vadd.f32 %v3084, 1.0
    %v3106 = vadd.f32 %v3086, 1.0
    %v3107 = vadd.f32 %v3088, 1.0
    %v3108 = vadd.f32 %v3090, 1.0
    %v3109 = vadd.f32 %v3092, 1.0
    %v3110 = vadd.f32 %v3094, 1.0
    %v3111 = vrcp.pop %v3095
    %v3112 = vmul.f32 1.0, %v3111
    %v3113 = vrcp.pop %v3096
    %v3114 = vmul.f32 1.0, %v3113
    %v3115 = vrcp.pop %v3097
    %v3116 = vmul.f32 1.0, %v3115
    %v3117 = vrcp.pop %v3098
    %v3118 = vmul.f32 1.0, %v3117
    %v3119 = vrcp.pop %v3099
    %v3120 = vmul.f32 1.0, %v3119
    %v3121 = vrcp.pop %v3100
    %v3122 = vmul.f32 1.0, %v3121
    %v3123 = vrcp.pop %v3101
    %v3124 = vmul.f32 1.0, %v3123
    %v3125 = vrcp.pop %v3102
    %v3126 = vmul.f32 1.0, %v3125
    %v3127 = vrcp.pop %v3103
    %v3128 = vmul.f32 1.0, %v3127
    %v3129 = vrcp.pop %v3104
    %v3130 = vmul.f32 1.0, %v3129
    %v3131 = vrcp.pop %v3105
    %v3132 = vmul.f32 1.0, %v3131
    %v3133 = vrcp.pop %v3106
    %v3134 = vmul.f32 1.0, %v3133
    %v3135 = vrcp.pop %v3107
    %v3136 = vmul.f32 1.0, %v3135
    %v3137 = vrcp.pop %v3108
    %v3138 = vmul.f32 1.0, %v3137
    %v3139 = vrcp.pop %v3109
    %v3140 = vmul.f32 1.0, %v3139
    %v3141 = vrcp.pop %v3110
    %v3142 = vmul.f32 1.0, %v3141
    %v3143 = vtanh.pop %v2872
    %v3144 = vtanh.pop %v2874
    %v3145 = vtanh.pop %v2876
    %v3146 = vtanh.pop %v2878
    %v3147 = vtanh.pop %v2880
    %v3148 = vtanh.pop %v2882
    %v3149 = vtanh.pop %v2884
    %v3150 = vtanh.pop %v2886
    %v3151 = vtanh.pop %v2888
    %v3152 = vtanh.pop %v2890
    %v3153 = vtanh.pop %v2892
    %v3154 = vtanh.pop %v2894
    %v3155 = vtanh.pop %v2896
    %v3156 = vtanh.pop %v2898
    %v3157 = vtanh.pop %v2900
    %v3158 = vtanh.pop %v2902
    %v3175 = vrot.slane %v2872, 4
    %v3176 = vrot.slane %v2874, 4
    %v3177 = vrot.slane %v2876, 4
    %v3178 = vrot.slane %v2878, 4
    %v3179 = vrot.slane %v2880, 4
    %v3180 = vrot.slane %v2882, 4
    %v3181 = vrot.slane %v2884, 4
    %v3182 = vrot.slane %v2886, 4
    %v3183 = vrot.slane %v2888, 4
    %v3184 = vrot.slane %v2890, 4
    %v3185 = vrot.slane %v2892, 4
    %v3186 = vrot.slane %v2894, 4
    %v3187 = vrot.slane %v2896, 4
    %v3188 = vrot.slane %v2898, 4
    %v3189 = vrot.slane %v2900, 4
    %v3190 = vrot.slane %v2902, 4
    %v3207 = vxor.u32 %v3175, 2147483648
    %v3208 = vxor.u32 %v3176, 2147483648
    %v3209 = vxor.u32 %v3177, 2147483648
    %v3210 = vxor.u32 %v3178, 2147483648
    %v3211 = vxor.u32 %v3179, 2147483648
    %v3212 = vxor.u32 %v3180, 2147483648
    %v3213 = vxor.u32 %v3181, 2147483648
    %v3214 = vxor.u32 %v3182, 2147483648
    %v3215 = vxor.u32 %v3183, 2147483648
    %v3216 = vxor.u32 %v3184, 2147483648
    %v3217 = vxor.u32 %v3185, 2147483648
    %v3218 = vxor.u32 %v3186, 2147483648
    %v3219 = vxor.u32 %v3187, 2147483648
    %v3220 = vxor.u32 %v3188, 2147483648
    %v3221 = vxor.u32 %v3189, 2147483648
    %v3222 = vxor.u32 %v3190, 2147483648
    %v3223 = vmul.f32 %v3207, 1.442695
    %v3224 = vpow.pop %v3223
    %v3225 = vmul.f32 %v3208, 1.442695
    %v3226 = vpow.pop %v3225
    %v3227 = vmul.f32 %v3209, 1.442695
    %v3228 = vpow.pop %v3227
    %v3229 = vmul.f32 %v3210, 1.442695
    %v3230 = vpow.pop %v3229
    %v3231 = vmul.f32 %v3211, 1.442695
    %v3232 = vpow.pop %v3231
    %v3233 = vmul.f32 %v3212, 1.442695
    %v3234 = vpow.pop %v3233
    %v3235 = vmul.f32 %v3213, 1.442695
    %v3236 = vpow.pop %v3235
    %v3237 = vmul.f32 %v3214, 1.442695
    %v3238 = vpow.pop %v3237
    %v3239 = vmul.f32 %v3215, 1.442695
    %v3240 = vpow.pop %v3239
    %v3241 = vmul.f32 %v3216, 1.442695
    %v3242 = vpow.pop %v3241
    %v3243 = vmul.f32 %v3217, 1.442695
    %v3244 = vpow.pop %v3243
    %v3245 = vmul.f32 %v3218, 1.442695
    %v3246 = vpow.pop %v3245
    %v3247 = vmul.f32 %v3219, 1.442695
    %v3248 = vpow.pop %v3247
    %v3249 = vmul.f32 %v3220, 1.442695
    %v3250 = vpow.pop %v3249
    %v3251 = vmul.f32 %v3221, 1.442695
    %v3252 = vpow.pop %v3251
    %v3253 = vmul.f32 %v3222, 1.442695
    %v3254 = vpow.pop %v3253
    %v3255 = vadd.f32 %v3224, 1.0
    %v3256 = vadd.f32 %v3226, 1.0
    %v3257 = vadd.f32 %v3228, 1.0
    %v3258 = vadd.f32 %v3230, 1.0
    %v3259 = vadd.f32 %v3232, 1.0
    %v3260 = vadd.f32 %v3234, 1.0
    %v3261 = vadd.f32 %v3236, 1.0
    %v3262 = vadd.f32 %v3238, 1.0
    %v3263 = vadd.f32 %v3240, 1.0
    %v3264 = vadd.f32 %v3242, 1.0
    %v3265 = vadd.f32 %v3244, 1.0
    %v3266 = vadd.f32 %v3246, 1.0
    %v3267 = vadd.f32 %v3248, 1.0
    %v3268 = vadd.f32 %v3250, 1.0
    %v3269 = vadd.f32 %v3252, 1.0
    %v3270 = vadd.f32 %v3254, 1.0
    %v3271 = vrcp.pop %v3255
    %v3272 = vmul.f32 1.0, %v3271
    %v3273 = vrcp.pop %v3256
    %v3274 = vmul.f32 1.0, %v3273
    %v3275 = vrcp.pop %v3257
    %v3276 = vmul.f32 1.0, %v3275
    %v3277 = vrcp.pop %v3258
    %v3278 = vmul.f32 1.0, %v3277
    %v3279 = vrcp.pop %v3259
    %v3280 = vmul.f32 1.0, %v3279
    %v3281 = vrcp.pop %v3260
    %v3282 = vmul.f32 1.0, %v3281
    %v3283 = vrcp.pop %v3261
    %v3284 = vmul.f32 1.0, %v3283
    %v3285 = vrcp.pop %v3262
    %v3286 = vmul.f32 1.0, %v3285
    %v3287 = vrcp.pop %v3263
    %v3288 = vmul.f32 1.0, %v3287
    %v3289 = vrcp.pop %v3264
    %v3290 = vmul.f32 1.0, %v3289
    %v3291 = vrcp.pop %v3265
    %v3292 = vmul.f32 1.0, %v3291
    %v3293 = vrcp.pop %v3266
    %v3294 = vmul.f32 1.0, %v3293
    %v3295 = vrcp.pop %v3267
    %v3296 = vmul.f32 1.0, %v3295
    %v3297 = vrcp.pop %v3268
    %v3298 = vmul.f32 1.0, %v3297
    %v3299 = vrcp.pop %v3269
    %v3300 = vmul.f32 1.0, %v3299
    %v3301 = vrcp.pop %v3270
    %v3302 = vmul.f32 1.0, %v3301
    %v3305 = vcombine.high %v2710, %v2710
    %v3306 = vcombine.high %v2711, %v2711
    %v3307 = vrot.slane %v2710, 6
    %v3308 = vrot.slane %v2710, 7
    %v3309 = vrot.slane %v2710, 1
    %v3310 = vrot.slane %v3305, 6
    %v3311 = vrot.slane %v3305, 7
    %v3312 = vrot.slane %v3305, 1
    %v3313 = vrot.slane %v2711, 6
    %v3314 = vrot.slane %v2711, 7
    %v3315 = vrot.slane %v2711, 1
    %v3316 = vrot.slane %v3306, 6
    %v3317 = vrot.slane %v3306, 7
    %v3318 = vrot.slane %v3306, 1
    %v3335 = vmul.f32 %v3112, %v3307
    %v3336 = vmul.f32 %v3114, %v3308
    %v3337 = vmul.f32 %v3116, %v2710
    %v3338 = vmul.f32 %v3118, %v3309
    %v3339 = vmul.f32 %v3120, %v3310
    %v3340 = vmul.f32 %v3122, %v3311
    %v3341 = vmul.f32 %v3124, %v3305
    %v3342 = vmul.f32 %v3126, %v3312
    %v3343 = vmul.f32 %v3128, %v3313
    %v3344 = vmul.f32 %v3130, %v3314
    %v3345 = vmul.f32 %v3132, %v2711
    %v3346 = vmul.f32 %v3134, %v3315
    %v3347 = vmul.f32 %v3136, %v3316
    %v3348 = vmul.f32 %v3138, %v3317
    %v3349 = vmul.f32 %v3140, %v3306
    %v3350 = vmul.f32 %v3142, %v3318
    %v3351 = vmul.f32 %v2968, %v3143
    %v3352 = vmul.f32 %v2970, %v3144
    %v3353 = vmul.f32 %v2972, %v3145
    %v3354 = vmul.f32 %v2974, %v3146
    %v3355 = vmul.f32 %v2976, %v3147
    %v3356 = vmul.f32 %v2978, %v3148
    %v3357 = vmul.f32 %v2980, %v3149
    %v3358 = vmul.f32 %v2982, %v3150
    %v3359 = vmul.f32 %v2984, %v3151
    %v3360 = vmul.f32 %v2986, %v3152
    %v3361 = vmul.f32 %v2988, %v3153
    %v3362 = vmul.f32 %v2990, %v3154
    %v3363 = vmul.f32 %v2992, %v3155
    %v3364 = vmul.f32 %v2994, %v3156
    %v3365 = vmul.f32 %v2996, %v3157
    %v3366 = vmul.f32 %v2998, %v3158
    %v3367 = vadd.f32 %v3335, %v3351
    %v3368 = vadd.f32 %v3336, %v3352
    %v3369 = vadd.f32 %v3337, %v3353
    %v3370 = vadd.f32 %v3338, %v3354
    %v3371 = vadd.f32 %v3339, %v3355
    %v3372 = vadd.f32 %v3340, %v3356
    %v3373 = vadd.f32 %v3341, %v3357
    %v3374 = vadd.f32 %v3342, %v3358
    %v3375 = vadd.f32 %v3343, %v3359
    %v3376 = vadd.f32 %v3344, %v3360
    %v3377 = vadd.f32 %v3345, %v3361
    %v3378 = vadd.f32 %v3346, %v3362
    %v3379 = vadd.f32 %v3347, %v3363
    %v3380 = vadd.f32 %v3348, %v3364
    %v3381 = vadd.f32 %v3349, %v3365
    %v3382 = vadd.f32 %v3350, %v3366
    %v3383 = vtanh.pop %v3367
    %v3384 = vtanh.pop %v3368
    %v3385 = vtanh.pop %v3369
    %v3386 = vtanh.pop %v3370
    %v3387 = vtanh.pop %v3371
    %v3388 = vtanh.pop %v3372
    %v3389 = vtanh.pop %v3373
    %v3390 = vtanh.pop %v3374
    %v3391 = vtanh.pop %v3375
    %v3392 = vtanh.pop %v3376
    %v3393 = vtanh.pop %v3377
    %v3394 = vtanh.pop %v3378
    %v3395 = vtanh.pop %v3379
    %v3396 = vtanh.pop %v3380
    %v3397 = vtanh.pop %v3381
    %v3398 = vtanh.pop %v3382
    %v3399 = vmul.f32 %v3272, %v3383
    %v3400 = vmul.f32 %v3274, %v3384
    %v3401 = vmul.f32 %v3276, %v3385
    %v3402 = vmul.f32 %v3278, %v3386
    %v3403 = vmul.f32 %v3280, %v3387
    %v3404 = vmul.f32 %v3282, %v3388
    %v3405 = vmul.f32 %v3284, %v3389
    %v3406 = vmul.f32 %v3286, %v3390
    %v3407 = vmul.f32 %v3288, %v3391
    %v3408 = vmul.f32 %v3290, %v3392
    %v3409 = vmul.f32 %v3292, %v3393
    %v3410 = vmul.f32 %v3294, %v3394
    %v3411 = vmul.f32 %v3296, %v3395
    %v3412 = vmul.f32 %v3298, %v3396
    %v3413 = vmul.f32 %v3300, %v3397
    %v3414 = vmul.f32 %v3302, %v3398
    %vm3415 = vcmp.gt.f32.partialorder %v701, 2.0
    %vm3416 = vcmp.gt.f32.partialorder %v702, 2.0
    %v3417 = vsel %vm3415, 1, 0
    %v3418 = vsel %vm3416, 1, 0
    %3419 = vset.pattern.permute.xlu0 0
    %3420 = vperm.xlu0 %3419, %v3417
    %v3421 = vpop.permute.xlu0 %3420
    %3422 = vset.pattern.permute.xlu0 0
    %3423 = vperm.xlu0 %3422, %v3418
    %v3424 = vpop.permute.xlu0 %3423
    %vm3425 = vcmp.eq.s32.totalorder %v3421, 1
    %vm3426 = vcmp.eq.s32.totalorder %v3424, 1
    %v3443 = vlaneseq
    %v3444 = vshrl.u32 %v3443, 7
    %v3445 = vsub.s32 2, %v3444
    %v3446 = vrot.slane %v3399, %v3445
    %v3447 = vlaneseq
    %v3448 = vshrl.u32 %v3447, 7
    %v3449 = vsub.s32 2, %v3448
    %v3450 = vrot.slane %v3400, %v3449
    %v3451 = vlaneseq
    %v3452 = vshrl.u32 %v3451, 7
    %v3453 = vsub.s32 2, %v3452
    %v3454 = vrot.slane %v3401, %v3453
    %v3455 = vlaneseq
    %v3456 = vshrl.u32 %v3455, 7
    %v3457 = vsub.s32 2, %v3456
    %v3458 = vrot.slane %v3402, %v3457
    %v3459 = vlaneseq
    %v3460 = vshrl.u32 %v3459, 7
    %v3461 = vsub.s32 2, %v3460
    %v3462 = vrot.slane %v3403, %v3461
    %v3463 = vlaneseq
    %v3464 = vshrl.u32 %v3463, 7
    %v3465 = vsub.s32 2, %v3464
    %v3466 = vrot.slane %v3404, %v3465
    %v3467 = vlaneseq
    %v3468 = vshrl.u32 %v3467, 7
    %v3469 = vsub.s32 2, %v3468
    %v3470 = vrot.slane %v3405, %v3469
    %v3471 = vlaneseq
    %v3472 = vshrl.u32 %v3471, 7
    %v3473 = vsub.s32 2, %v3472
    %v3474 = vrot.slane %v3406, %v3473
    %v3475 = vlaneseq
    %v3476 = vshrl.u32 %v3475, 7
    %v3477 = vsub.s32 2, %v3476
    %v3478 = vrot.slane %v3407, %v3477
    %v3479 = vlaneseq
    %v3480 = vshrl.u32 %v3479, 7
    %v3481 = vsub.s32 2, %v3480
    %v3482 = vrot.slane %v3408, %v3481
    %v3483 = vlaneseq
    %v3484 = vshrl.u32 %v3483, 7
    %v3485 = vsub.s32 2, %v3484
    %v3486 = vrot.slane %v3409, %v3485
    %v3487 = vlaneseq
    %v3488 = vshrl.u32 %v3487, 7
    %v3489 = vsub.s32 2, %v3488
    %v3490 = vrot.slane %v3410, %v3489
    %v3491 = vlaneseq
    %v3492 = vshrl.u32 %v3491, 7
    %v3493 = vsub.s32 2, %v3492
    %v3494 = vrot.slane %v3411, %v3493
    %v3495 = vlaneseq
    %v3496 = vshrl.u32 %v3495, 7
    %v3497 = vsub.s32 2, %v3496
    %v3498 = vrot.slane %v3412, %v3497
    %v3499 = vlaneseq
    %v3500 = vshrl.u32 %v3499, 7
    %v3501 = vsub.s32 2, %v3500
    %v3502 = vrot.slane %v3413, %v3501
    %v3503 = vlaneseq
    %v3504 = vshrl.u32 %v3503, 7
    %v3505 = vsub.s32 2, %v3504
    %v3506 = vrot.slane %v3414, %v3505
    %v3507 = vsel %vm1662, %v3450, %v3446
    %v3508 = vsel %vm1664, %v3454, %v3507
    %v3509 = vsel %vm1666, %v3458, %v3508
    %v3510 = vsel %vm1668, %v3462, %v3509
    %v3511 = vsel %vm1670, %v3466, %v3510
    %v3512 = vsel %vm1672, %v3470, %v3511
    %v3513 = vsel %vm1674, %v3474, %v3512
    %v3514 = vsel %vm1662, %v3482, %v3478
    %v3515 = vsel %vm1664, %v3486, %v3514
    %v3516 = vsel %vm1666, %v3490, %v3515
    %v3517 = vsel %vm1668, %v3494, %v3516
    %v3518 = vsel %vm1670, %v3498, %v3517
    %v3519 = vsel %vm1672, %v3502, %v3518
    %v3520 = vsel %vm1674, %v3506, %v3519
    %v3523 = vsel %vm3425, %v3513, %v2708
    %v3524 = vsel %vm3426, %v3520, %v2709
    %3525 = vst [vmem:[#allocation2] sm:$0xff] %v3523
    %3526 = vst [vmem:[#allocation2 + $0x8] sm:$0xff] %v3524
    %v3543 = vlaneseq
    %v3544 = vshrl.u32 %v3543, 7
    %v3545 = vsub.s32 2, %v3544
    %v3546 = vrot.slane %v3367, %v3545
    %v3547 = vlaneseq
    %v3548 = vshrl.u32 %v3547, 7
    %v3549 = vsub.s32 2, %v3548
    %v3550 = vrot.slane %v3368, %v3549
    %v3551 = vlaneseq
    %v3552 = vshrl.u32 %v3551, 7
    %v3553 = vsub.s32 2, %v3552
    %v3554 = vrot.slane %v3369, %v3553
    %v3555 = vlaneseq
    %v3556 = vshrl.u32 %v3555, 7
    %v3557 = vsub.s32 2, %v3556
    %v3558 = vrot.slane %v3370, %v3557
    %v3559 = vlaneseq
    %v3560 = vshrl.u32 %v3559, 7
    %v3561 = vsub.s32 2, %v3560
    %v3562 = vrot.slane %v3371, %v3561
    %v3563 = vlaneseq
    %v3564 = vshrl.u32 %v3563, 7
    %v3565 = vsub.s32 2, %v3564
    %v3566 = vrot.slane %v3372, %v3565
    %v3567 = vlaneseq
    %v3568 = vshrl.u32 %v3567, 7
    %v3569 = vsub.s32 2, %v3568
    %v3570 = vrot.slane %v3373, %v3569
    %v3571 = vlaneseq
    %v3572 = vshrl.u32 %v3571, 7
    %v3573 = vsub.s32 2, %v3572
    %v3574 = vrot.slane %v3374, %v3573
    %v3575 = vlaneseq
    %v3576 = vshrl.u32 %v3575, 7
    %v3577 = vsub.s32 2, %v3576
    %v3578 = vrot.slane %v3375, %v3577
    %v3579 = vlaneseq
    %v3580 = vshrl.u32 %v3579, 7
    %v3581 = vsub.s32 2, %v3580
    %v3582 = vrot.slane %v3376, %v3581
    %v3583 = vlaneseq
    %v3584 = vshrl.u32 %v3583, 7
    %v3585 = vsub.s32 2, %v3584
    %v3586 = vrot.slane %v3377, %v3585
    %v3587 = vlaneseq
    %v3588 = vshrl.u32 %v3587, 7
    %v3589 = vsub.s32 2, %v3588
    %v3590 = vrot.slane %v3378, %v3589
    %v3591 = vlaneseq
    %v3592 = vshrl.u32 %v3591, 7
    %v3593 = vsub.s32 2, %v3592
    %v3594 = vrot.slane %v3379, %v3593
    %v3595 = vlaneseq
    %v3596 = vshrl.u32 %v3595, 7
    %v3597 = vsub.s32 2, %v3596
    %v3598 = vrot.slane %v3380, %v3597
    %v3599 = vlaneseq
    %v3600 = vshrl.u32 %v3599, 7
    %v3601 = vsub.s32 2, %v3600
    %v3602 = vrot.slane %v3381, %v3601
    %v3603 = vlaneseq
    %v3604 = vshrl.u32 %v3603, 7
    %v3605 = vsub.s32 2, %v3604
    %v3606 = vrot.slane %v3382, %v3605
    %v3607 = vsel %vm1662, %v3550, %v3546
    %v3608 = vsel %vm1664, %v3554, %v3607
    %v3609 = vsel %vm1666, %v3558, %v3608
    %v3610 = vsel %vm1668, %v3562, %v3609
    %v3611 = vsel %vm1670, %v3566, %v3610
    %v3612 = vsel %vm1672, %v3570, %v3611
    %v3613 = vsel %vm1674, %v3574, %v3612
    %v3614 = vsel %vm1662, %v3582, %v3578
    %v3615 = vsel %vm1664, %v3586, %v3614
    %v3616 = vsel %vm1666, %v3590, %v3615
    %v3617 = vsel %vm1668, %v3594, %v3616
    %v3618 = vsel %vm1670, %v3598, %v3617
    %v3619 = vsel %vm1672, %v3602, %v3618
    %v3620 = vsel %vm1674, %v3606, %v3619
    %v3623 = vsel %vm3425, %v3613, %v2710
    %v3624 = vsel %vm3426, %v3620, %v2711
    %3625 = vst [vmem:[#allocation3] sm:$0xff] %v3623
    %3626 = vst [vmem:[#allocation3 + $0x8] sm:$0xff] %v3624
    %v3627 = vld [vmem:[#allocation2] sm:$0xff]
    %v3628 = vld [vmem:[#allocation2 + $0x8] sm:$0xff]
    %v3629 = vld [vmem:[#allocation3] sm:$0xff]
    %v3630 = vld [vmem:[#allocation3 + $0x8] sm:$0xff]
    %v3631 = vpack.c.bf16 %v3628, %v3627
    %3632 = vmatprep.subr.bf16.mxu0 %v805
    %3633 = vmatpush1.bf16.msra.mxu0 %v804
    %3634 = vmatprep.subr.bf16.mxu0 %v809
    %3635 = vmatpush1.bf16.msra.mxu0 %v808
    %3636 = vmatprep.subr.bf16.mxu0 %v813
    %3637 = vmatpush1.bf16.msra.mxu0 %v812
    %3638 = vmatprep.subr.bf16.mxu0 %v817
    %3639 = vmatpush1.bf16.msra.mxu0 %v816
    %3640 = vmatprep.subr.bf16.mxu0 %v821
    %3641 = vmatpush1.bf16.msra.mxu0 %v820
    %3642 = vmatprep.subr.bf16.mxu0 %v825
    %3643 = vmatpush1.bf16.msra.mxu0 %v824
    %3644 = vmatprep.subr.bf16.mxu0 %v829
    %3645 = vmatpush1.bf16.msra.mxu0 %v828
    %3646 = vmatprep.subr.bf16.mxu0 %v833
    %3647 = vmatpush1.bf16.msra.mxu0 %v832
    %3648 = vmatprep.subr.bf16.mxu0 0
    %3649 = vmatpush1.bf16.msra.mxu0 0
    %3650 = vmatprep.subr.bf16.mxu0 0
    %3651 = vmatpush1.bf16.msra.mxu0 0
    %3652 = vmatprep.subr.bf16.mxu0 0
    %3653 = vmatpush1.bf16.msra.mxu0 0
    %3654 = vmatprep.subr.bf16.mxu0 0
    %3655 = vmatpush1.bf16.msra.mxu0 0
    %3656 = vmatprep.subr.bf16.mxu0 0
    %3657 = vmatpush1.bf16.msra.mxu0 0
    %3658 = vmatprep.subr.bf16.mxu0 0
    %3659 = vmatpush1.bf16.msra.mxu0 0
    %3660 = vmatprep.subr.bf16.mxu0 0
    %3661 = vmatpush1.bf16.msra.mxu0 0
    %3662 = vmatprep.subr.bf16.mxu0 0
    %3663 = vmatpush1.bf16.msra.mxu0 0
    %3664 = vmatprep.mubr.bf16.mxu0 0
    %3665 = vmatmul.mubr.bf16.gmra.mrb[0].mxu0 %v3631
    %v3666 = vpop.f32.mrb[0].mxu0
    %v3667 = vadd.f32 0.0, %v3666
    %v3668 = vpop.f32.mrb[0].mxu0
    %v3669 = vadd.f32 0.0, %v3668
    %v3670 = vpop.f32.mrb[0].mxu0
    %v3671 = vadd.f32 0.0, %v3670
    %v3672 = vpop.f32.mrb[0].mxu0
    %v3673 = vadd.f32 0.0, %v3672
    %3674 = vdwg.mxu0
    %3675 = vmatprep.subr.bf16.mxu0 %v807
    %3676 = vmatpush1.bf16.msra.mxu0 %v806
    %3677 = vmatprep.subr.bf16.mxu0 %v811
    %3678 = vmatpush1.bf16.msra.mxu0 %v810
    %3679 = vmatprep.subr.bf16.mxu0 %v815
    %3680 = vmatpush1.bf16.msra.mxu0 %v814
    %3681 = vmatprep.subr.bf16.mxu0 %v819
    %3682 = vmatpush1.bf16.msra.mxu0 %v818
    %3683 = vmatprep.subr.bf16.mxu0 %v823
    %3684 = vmatpush1.bf16.msra.mxu0 %v822
    %3685 = vmatprep.subr.bf16.mxu0 %v827
    %3686 = vmatpush1.bf16.msra.mxu0 %v826
    %3687 = vmatprep.subr.bf16.mxu0 %v831
    %3688 = vmatpush1.bf16.msra.mxu0 %v830
    %3689 = vmatprep.subr.bf16.mxu0 %v835
    %3690 = vmatpush1.bf16.msra.mxu0 %v834
    %3691 = vmatprep.subr.bf16.mxu0 0
    %3692 = vmatpush1.bf16.msra.mxu0 0
    %3693 = vmatprep.subr.bf16.mxu0 0
    %3694 = vmatpush1.bf16.msra.mxu0 0
    %3695 = vmatprep.subr.bf16.mxu0 0
    %3696 = vmatpush1.bf16.msra.mxu0 0
    %3697 = vmatprep.subr.bf16.mxu0 0
    %3698 = vmatpush1.bf16.msra.mxu0 0
    %3699 = vmatprep.subr.bf16.mxu0 0
    %3700 = vmatpush1.bf16.msra.mxu0 0
    %3701 = vmatprep.subr.bf16.mxu0 0
    %3702 = vmatpush1.bf16.msra.mxu0 0
    %3703 = vmatprep.subr.bf16.mxu0 0
    %3704 = vmatpush1.bf16.msra.mxu0 0
    %3705 = vmatprep.subr.bf16.mxu0 0
    %3706 = vmatpush1.bf16.msra.mxu0 0
    %3707 = vmatprep.mubr.bf16.mxu0 0
    %3708 = vmatmul.mubr.bf16.gmra.mrb[0].mxu0 %v3631
    %v3709 = vpop.f32.mrb[0].mxu0
    %v3710 = vadd.f32 0.0, %v3709
    %v3711 = vpop.f32.mrb[0].mxu0
    %v3712 = vadd.f32 0.0, %v3711
    %v3713 = vpop.f32.mrb[0].mxu0
    %v3714 = vadd.f32 0.0, %v3713
    %v3715 = vpop.f32.mrb[0].mxu0
    %v3716 = vadd.f32 0.0, %v3715
    %3717 = vdwg.mxu0
    %v3726 = vcombine.low %v3667, %v3669
    %v3727 = vcombine.high %v3667, %v3669
    %v3728 = vcombine.low %v3710, %v3712
    %v3729 = vcombine.high %v3710, %v3712
    %v3730 = vcombine.low %v3671, %v3673
    %v3731 = vcombine.high %v3671, %v3673
    %v3732 = vcombine.low %v3714, %v3716
    %v3733 = vcombine.high %v3714, %v3716
    %v3734 = vrot.slane %v3726, 5
    %v3735 = vrot.slane %v3728, 5
    %v3736 = vrot.slane %v3726, 6
    %v3737 = vrot.slane %v3728, 6
    %v3738 = vrot.slane %v3726, 7
    %v3739 = vrot.slane %v3728, 7
    %v3740 = vrot.slane %v3727, 5
    %v3741 = vrot.slane %v3729, 5
    %v3742 = vrot.slane %v3727, 6
    %v3743 = vrot.slane %v3729, 6
    %v3744 = vrot.slane %v3727, 7
    %v3745 = vrot.slane %v3729, 7
    %v3746 = vrot.slane %v3730, 5
    %v3747 = vrot.slane %v3732, 5
    %v3748 = vrot.slane %v3730, 6
    %v3749 = vrot.slane %v3732, 6
    %v3750 = vrot.slane %v3730, 7
    %v3751 = vrot.slane %v3732, 7
    %v3752 = vrot.slane %v3731, 5
    %v3753 = vrot.slane %v3733, 5
    %v3754 = vrot.slane %v3731, 6
    %v3755 = vrot.slane %v3733, 6
    %v3756 = vrot.slane %v3731, 7
    %v3757 = vrot.slane %v3733, 7
    %v3790 = vadd.f32 %v601, %v3734
    %v3791 = vadd.f32 %v603, %v3735
    %v3792 = vadd.f32 %v602, %v3736
    %v3793 = vadd.f32 %v604, %v3737
    %v3794 = vadd.f32 %v605, %v3738
    %v3795 = vadd.f32 %v607, %v3739
    %v3796 = vadd.f32 %v606, %v3726
    %v3797 = vadd.f32 %v608, %v3728
    %v3798 = vadd.f32 %v609, %v3740
    %v3799 = vadd.f32 %v611, %v3741
    %v3800 = vadd.f32 %v610, %v3742
    %v3801 = vadd.f32 %v612, %v3743
    %v3802 = vadd.f32 %v613, %v3744
    %v3803 = vadd.f32 %v615, %v3745
    %v3804 = vadd.f32 %v614, %v3727
    %v3805 = vadd.f32 %v616, %v3729
    %v3806 = vadd.f32 %v617, %v3746
    %v3807 = vadd.f32 %v619, %v3747
    %v3808 = vadd.f32 %v618, %v3748
    %v3809 = vadd.f32 %v620, %v3749
    %v3810 = vadd.f32 %v621, %v3750
    %v3811 = vadd.f32 %v623, %v3751
    %v3812 = vadd.f32 %v622, %v3730
    %v3813 = vadd.f32 %v624, %v3732
    %v3814 = vadd.f32 %v625, %v3752
    %v3815 = vadd.f32 %v627, %v3753
    %v3816 = vadd.f32 %v626, %v3754
    %v3817 = vadd.f32 %v628, %v3755
    %v3818 = vadd.f32 %v629, %v3756
    %v3819 = vadd.f32 %v631, %v3757
    %v3820 = vadd.f32 %v630, %v3731
    %v3821 = vadd.f32 %v632, %v3733
    %v3822 = vxor.u32 %v3790, 2147483648
    %v3823 = vxor.u32 %v3792, 2147483648
    %v3824 = vxor.u32 %v3794, 2147483648
    %v3825 = vxor.u32 %v3796, 2147483648
    %v3826 = vxor.u32 %v3798, 2147483648
    %v3827 = vxor.u32 %v3800, 2147483648
    %v3828 = vxor.u32 %v3802, 2147483648
    %v3829 = vxor.u32 %v3804, 2147483648
    %v3830 = vxor.u32 %v3806, 2147483648
    %v3831 = vxor.u32 %v3808, 2147483648
    %v3832 = vxor.u32 %v3810, 2147483648
    %v3833 = vxor.u32 %v3812, 2147483648
    %v3834 = vxor.u32 %v3814, 2147483648
    %v3835 = vxor.u32 %v3816, 2147483648
    %v3836 = vxor.u32 %v3818, 2147483648
    %v3837 = vxor.u32 %v3820, 2147483648
    %v3838 = vmul.f32 %v3822, 1.442695
    %v3839 = vpow.pop %v3838
    %v3840 = vmul.f32 %v3823, 1.442695
    %v3841 = vpow.pop %v3840
    %v3842 = vmul.f32 %v3824, 1.442695
    %v3843 = vpow.pop %v3842
    %v3844 = vmul.f32 %v3825, 1.442695
    %v3845 = vpow.pop %v3844
    %v3846 = vmul.f32 %v3826, 1.442695
    %v3847 = vpow.pop %v3846
    %v3848 = vmul.f32 %v3827, 1.442695
    %v3849 = vpow.pop %v3848
    %v3850 = vmul.f32 %v3828, 1.442695
    %v3851 = vpow.pop %v3850
    %v3852 = vmul.f32 %v3829, 1.442695
    %v3853 = vpow.pop %v3852
    %v3854 = vmul.f32 %v3830, 1.442695
    %v3855 = vpow.pop %v3854
    %v3856 = vmul.f32 %v3831, 1.442695
    %v3857 = vpow.pop %v3856
    %v3858 = vmul.f32 %v3832, 1.442695
    %v3859 = vpow.pop %v3858
    %v3860 = vmul.f32 %v3833, 1.442695
    %v3861 = vpow.pop %v3860
    %v3862 = vmul.f32 %v3834, 1.442695
    %v3863 = vpow.pop %v3862
    %v3864 = vmul.f32 %v3835, 1.442695
    %v3865 = vpow.pop %v3864
    %v3866 = vmul.f32 %v3836, 1.442695
    %v3867 = vpow.pop %v3866
    %v3868 = vmul.f32 %v3837, 1.442695
    %v3869 = vpow.pop %v3868
    %v3870 = vadd.f32 %v3839, 1.0
    %v3871 = vadd.f32 %v3841, 1.0
    %v3872 = vadd.f32 %v3843, 1.0
    %v3873 = vadd.f32 %v3845, 1.0
    %v3874 = vadd.f32 %v3847, 1.0
    %v3875 = vadd.f32 %v3849, 1.0
    %v3876 = vadd.f32 %v3851, 1.0
    %v3877 = vadd.f32 %v3853, 1.0
    %v3878 = vadd.f32 %v3855, 1.0
    %v3879 = vadd.f32 %v3857, 1.0
    %v3880 = vadd.f32 %v3859, 1.0
    %v3881 = vadd.f32 %v3861, 1.0
    %v3882 = vadd.f32 %v3863, 1.0
    %v3883 = vadd.f32 %v3865, 1.0
    %v3884 = vadd.f32 %v3867, 1.0
    %v3885 = vadd.f32 %v3869, 1.0
    %v3886 = vrcp.pop %v3870
    %v3887 = vmul.f32 1.0, %v3886
    %v3888 = vrcp.pop %v3871
    %v3889 = vmul.f32 1.0, %v3888
    %v3890 = vrcp.pop %v3872
    %v3891 = vmul.f32 1.0, %v3890
    %v3892 = vrcp.pop %v3873
    %v3893 = vmul.f32 1.0, %v3892
    %v3894 = vrcp.pop %v3874
    %v3895 = vmul.f32 1.0, %v3894
    %v3896 = vrcp.pop %v3875
    %v3897 = vmul.f32 1.0, %v3896
    %v3898 = vrcp.pop %v3876
    %v3899 = vmul.f32 1.0, %v3898
    %v3900 = vrcp.pop %v3877
    %v3901 = vmul.f32 1.0, %v3900
    %v3902 = vrcp.pop %v3878
    %v3903 = vmul.f32 1.0, %v3902
    %v3904 = vrcp.pop %v3879
    %v3905 = vmul.f32 1.0, %v3904
    %v3906 = vrcp.pop %v3880
    %v3907 = vmul.f32 1.0, %v3906
    %v3908 = vrcp.pop %v3881
    %v3909 = vmul.f32 1.0, %v3908
    %v3910 = vrcp.pop %v3882
    %v3911 = vmul.f32 1.0, %v3910
    %v3912 = vrcp.pop %v3883
    %v3913 = vmul.f32 1.0, %v3912
    %v3914 = vrcp.pop %v3884
    %v3915 = vmul.f32 1.0, %v3914
    %v3916 = vrcp.pop %v3885
    %v3917 = vmul.f32 1.0, %v3916
    %v3934 = vrot.slane %v3790, 4
    %v3935 = vrot.slane %v3792, 4
    %v3936 = vrot.slane %v3794, 4
    %v3937 = vrot.slane %v3796, 4
    %v3938 = vrot.slane %v3798, 4
    %v3939 = vrot.slane %v3800, 4
    %v3940 = vrot.slane %v3802, 4
    %v3941 = vrot.slane %v3804, 4
    %v3942 = vrot.slane %v3806, 4
    %v3943 = vrot.slane %v3808, 4
    %v3944 = vrot.slane %v3810, 4
    %v3945 = vrot.slane %v3812, 4
    %v3946 = vrot.slane %v3814, 4
    %v3947 = vrot.slane %v3816, 4
    %v3948 = vrot.slane %v3818, 4
    %v3949 = vrot.slane %v3820, 4
    %v3966 = vxor.u32 %v3934, 2147483648
    %v3967 = vxor.u32 %v3935, 2147483648
    %v3968 = vxor.u32 %v3936, 2147483648
    %v3969 = vxor.u32 %v3937, 2147483648
    %v3970 = vxor.u32 %v3938, 2147483648
    %v3971 = vxor.u32 %v3939, 2147483648
    %v3972 = vxor.u32 %v3940, 2147483648
    %v3973 = vxor.u32 %v3941, 2147483648
    %v3974 = vxor.u32 %v3942, 2147483648
    %v3975 = vxor.u32 %v3943, 2147483648
    %v3976 = vxor.u32 %v3944, 2147483648
    %v3977 = vxor.u32 %v3945, 2147483648
    %v3978 = vxor.u32 %v3946, 2147483648
    %v3979 = vxor.u32 %v3947, 2147483648
    %v3980 = vxor.u32 %v3948, 2147483648
    %v3981 = vxor.u32 %v3949, 2147483648
    %v3982 = vmul.f32 %v3966, 1.442695
    %v3983 = vpow.pop %v3982
    %v3984 = vmul.f32 %v3967, 1.442695
    %v3985 = vpow.pop %v3984
    %v3986 = vmul.f32 %v3968, 1.442695
    %v3987 = vpow.pop %v3986
    %v3988 = vmul.f32 %v3969, 1.442695
    %v3989 = vpow.pop %v3988
    %v3990 = vmul.f32 %v3970, 1.442695
    %v3991 = vpow.pop %v3990
    %v3992 = vmul.f32 %v3971, 1.442695
    %v3993 = vpow.pop %v3992
    %v3994 = vmul.f32 %v3972, 1.442695
    %v3995 = vpow.pop %v3994
    %v3996 = vmul.f32 %v3973, 1.442695
    %v3997 = vpow.pop %v3996
    %v3998 = vmul.f32 %v3974, 1.442695
    %v3999 = vpow.pop %v3998
    %v4000 = vmul.f32 %v3975, 1.442695
    %v4001 = vpow.pop %v4000
    %v4002 = vmul.f32 %v3976, 1.442695
    %v4003 = vpow.pop %v4002
    %v4004 = vmul.f32 %v3977, 1.442695
    %v4005 = vpow.pop %v4004
    %v4006 = vmul.f32 %v3978, 1.442695
    %v4007 = vpow.pop %v4006
    %v4008 = vmul.f32 %v3979, 1.442695
    %v4009 = vpow.pop %v4008
    %v4010 = vmul.f32 %v3980, 1.442695
    %v4011 = vpow.pop %v4010
    %v4012 = vmul.f32 %v3981, 1.442695
    %v4013 = vpow.pop %v4012
    %v4014 = vadd.f32 %v3983, 1.0
    %v4015 = vadd.f32 %v3985, 1.0
    %v4016 = vadd.f32 %v3987, 1.0
    %v4017 = vadd.f32 %v3989, 1.0
    %v4018 = vadd.f32 %v3991, 1.0
    %v4019 = vadd.f32 %v3993, 1.0
    %v4020 = vadd.f32 %v3995, 1.0
    %v4021 = vadd.f32 %v3997, 1.0
    %v4022 = vadd.f32 %v3999, 1.0
    %v4023 = vadd.f32 %v4001, 1.0
    %v4024 = vadd.f32 %v4003, 1.0
    %v4025 = vadd.f32 %v4005, 1.0
    %v4026 = vadd.f32 %v4007, 1.0
    %v4027 = vadd.f32 %v4009, 1.0
    %v4028 = vadd.f32 %v4011, 1.0
    %v4029 = vadd.f32 %v4013, 1.0
    %v4030 = vrcp.pop %v4014
    %v4031 = vmul.f32 1.0, %v4030
    %v4032 = vrcp.pop %v4015
    %v4033 = vmul.f32 1.0, %v4032
    %v4034 = vrcp.pop %v4016
    %v4035 = vmul.f32 1.0, %v4034
    %v4036 = vrcp.pop %v4017
    %v4037 = vmul.f32 1.0, %v4036
    %v4038 = vrcp.pop %v4018
    %v4039 = vmul.f32 1.0, %v4038
    %v4040 = vrcp.pop %v4019
    %v4041 = vmul.f32 1.0, %v4040
    %v4042 = vrcp.pop %v4020
    %v4043 = vmul.f32 1.0, %v4042
    %v4044 = vrcp.pop %v4021
    %v4045 = vmul.f32 1.0, %v4044
    %v4046 = vrcp.pop %v4022
    %v4047 = vmul.f32 1.0, %v4046
    %v4048 = vrcp.pop %v4023
    %v4049 = vmul.f32 1.0, %v4048
    %v4050 = vrcp.pop %v4024
    %v4051 = vmul.f32 1.0, %v4050
    %v4052 = vrcp.pop %v4025
    %v4053 = vmul.f32 1.0, %v4052
    %v4054 = vrcp.pop %v4026
    %v4055 = vmul.f32 1.0, %v4054
    %v4056 = vrcp.pop %v4027
    %v4057 = vmul.f32 1.0, %v4056
    %v4058 = vrcp.pop %v4028
    %v4059 = vmul.f32 1.0, %v4058
    %v4060 = vrcp.pop %v4029
    %v4061 = vmul.f32 1.0, %v4060
    %v4062 = vtanh.pop %v3791
    %v4063 = vtanh.pop %v3793
    %v4064 = vtanh.pop %v3795
    %v4065 = vtanh.pop %v3797
    %v4066 = vtanh.pop %v3799
    %v4067 = vtanh.pop %v3801
    %v4068 = vtanh.pop %v3803
    %v4069 = vtanh.pop %v3805
    %v4070 = vtanh.pop %v3807
    %v4071 = vtanh.pop %v3809
    %v4072 = vtanh.pop %v3811
    %v4073 = vtanh.pop %v3813
    %v4074 = vtanh.pop %v3815
    %v4075 = vtanh.pop %v3817
    %v4076 = vtanh.pop %v3819
    %v4077 = vtanh.pop %v3821
    %v4094 = vrot.slane %v3791, 4
    %v4095 = vrot.slane %v3793, 4
    %v4096 = vrot.slane %v3795, 4
    %v4097 = vrot.slane %v3797, 4
    %v4098 = vrot.slane %v3799, 4
    %v4099 = vrot.slane %v3801, 4
    %v4100 = vrot.slane %v3803, 4
    %v4101 = vrot.slane %v3805, 4
    %v4102 = vrot.slane %v3807, 4
    %v4103 = vrot.slane %v3809, 4
    %v4104 = vrot.slane %v3811, 4
    %v4105 = vrot.slane %v3813, 4
    %v4106 = vrot.slane %v3815, 4
    %v4107 = vrot.slane %v3817, 4
    %v4108 = vrot.slane %v3819, 4
    %v4109 = vrot.slane %v3821, 4
    %v4126 = vxor.u32 %v4094, 2147483648
    %v4127 = vxor.u32 %v4095, 2147483648
    %v4128 = vxor.u32 %v4096, 2147483648
    %v4129 = vxor.u32 %v4097, 2147483648
    %v4130 = vxor.u32 %v4098, 2147483648
    %v4131 = vxor.u32 %v4099, 2147483648
    %v4132 = vxor.u32 %v4100, 2147483648
    %v4133 = vxor.u32 %v4101, 2147483648
    %v4134 = vxor.u32 %v4102, 2147483648
    %v4135 = vxor.u32 %v4103, 2147483648
    %v4136 = vxor.u32 %v4104, 2147483648
    %v4137 = vxor.u32 %v4105, 2147483648
    %v4138 = vxor.u32 %v4106, 2147483648
    %v4139 = vxor.u32 %v4107, 2147483648
    %v4140 = vxor.u32 %v4108, 2147483648
    %v4141 = vxor.u32 %v4109, 2147483648
    %v4142 = vmul.f32 %v4126, 1.442695
    %v4143 = vpow.pop %v4142
    %v4144 = vmul.f32 %v4127, 1.442695
    %v4145 = vpow.pop %v4144
    %v4146 = vmul.f32 %v4128, 1.442695
    %v4147 = vpow.pop %v4146
    %v4148 = vmul.f32 %v4129, 1.442695
    %v4149 = vpow.pop %v4148
    %v4150 = vmul.f32 %v4130, 1.442695
    %v4151 = vpow.pop %v4150
    %v4152 = vmul.f32 %v4131, 1.442695
    %v4153 = vpow.pop %v4152
    %v4154 = vmul.f32 %v4132, 1.442695
    %v4155 = vpow.pop %v4154
    %v4156 = vmul.f32 %v4133, 1.442695
    %v4157 = vpow.pop %v4156
    %v4158 = vmul.f32 %v4134, 1.442695
    %v4159 = vpow.pop %v4158
    %v4160 = vmul.f32 %v4135, 1.442695
    %v4161 = vpow.pop %v4160
    %v4162 = vmul.f32 %v4136, 1.442695
    %v4163 = vpow.pop %v4162
    %v4164 = vmul.f32 %v4137, 1.442695
    %v4165 = vpow.pop %v4164
    %v4166 = vmul.f32 %v4138, 1.442695
    %v4167 = vpow.pop %v4166
    %v4168 = vmul.f32 %v4139, 1.442695
    %v4169 = vpow.pop %v4168
    %v4170 = vmul.f32 %v4140, 1.442695
    %v4171 = vpow.pop %v4170
    %v4172 = vmul.f32 %v4141, 1.442695
    %v4173 = vpow.pop %v4172
    %v4174 = vadd.f32 %v4143, 1.0
    %v4175 = vadd.f32 %v4145, 1.0
    %v4176 = vadd.f32 %v4147, 1.0
    %v4177 = vadd.f32 %v4149, 1.0
    %v4178 = vadd.f32 %v4151, 1.0
    %v4179 = vadd.f32 %v4153, 1.0
    %v4180 = vadd.f32 %v4155, 1.0
    %v4181 = vadd.f32 %v4157, 1.0
    %v4182 = vadd.f32 %v4159, 1.0
    %v4183 = vadd.f32 %v4161, 1.0
    %v4184 = vadd.f32 %v4163, 1.0
    %v4185 = vadd.f32 %v4165, 1.0
    %v4186 = vadd.f32 %v4167, 1.0
    %v4187 = vadd.f32 %v4169, 1.0
    %v4188 = vadd.f32 %v4171, 1.0
    %v4189 = vadd.f32 %v4173, 1.0
    %v4190 = vrcp.pop %v4174
    %v4191 = vmul.f32 1.0, %v4190
    %v4192 = vrcp.pop %v4175
    %v4193 = vmul.f32 1.0, %v4192
    %v4194 = vrcp.pop %v4176
    %v4195 = vmul.f32 1.0, %v4194
    %v4196 = vrcp.pop %v4177
    %v4197 = vmul.f32 1.0, %v4196
    %v4198 = vrcp.pop %v4178
    %v4199 = vmul.f32 1.0, %v4198
    %v4200 = vrcp.pop %v4179
    %v4201 = vmul.f32 1.0, %v4200
    %v4202 = vrcp.pop %v4180
    %v4203 = vmul.f32 1.0, %v4202
    %v4204 = vrcp.pop %v4181
    %v4205 = vmul.f32 1.0, %v4204
    %v4206 = vrcp.pop %v4182
    %v4207 = vmul.f32 1.0, %v4206
    %v4208 = vrcp.pop %v4183
    %v4209 = vmul.f32 1.0, %v4208
    %v4210 = vrcp.pop %v4184
    %v4211 = vmul.f32 1.0, %v4210
    %v4212 = vrcp.pop %v4185
    %v4213 = vmul.f32 1.0, %v4212
    %v4214 = vrcp.pop %v4186
    %v4215 = vmul.f32 1.0, %v4214
    %v4216 = vrcp.pop %v4187
    %v4217 = vmul.f32 1.0, %v4216
    %v4218 = vrcp.pop %v4188
    %v4219 = vmul.f32 1.0, %v4218
    %v4220 = vrcp.pop %v4189
    %v4221 = vmul.f32 1.0, %v4220
    %v4224 = vcombine.high %v3629, %v3629
    %v4225 = vcombine.high %v3630, %v3630
    %v4226 = vrot.slane %v3629, 5
    %v4227 = vrot.slane %v3629, 6
    %v4228 = vrot.slane %v3629, 7
    %v4229 = vrot.slane %v4224, 5
    %v4230 = vrot.slane %v4224, 6
    %v4231 = vrot.slane %v4224, 7
    %v4232 = vrot.slane %v3630, 5
    %v4233 = vrot.slane %v3630, 6
    %v4234 = vrot.slane %v3630, 7
    %v4235 = vrot.slane %v4225, 5
    %v4236 = vrot.slane %v4225, 6
    %v4237 = vrot.slane %v4225, 7
    %v4254 = vmul.f32 %v4031, %v4226
    %v4255 = vmul.f32 %v4033, %v4227
    %v4256 = vmul.f32 %v4035, %v4228
    %v4257 = vmul.f32 %v4037, %v3629
    %v4258 = vmul.f32 %v4039, %v4229
    %v4259 = vmul.f32 %v4041, %v4230
    %v4260 = vmul.f32 %v4043, %v4231
    %v4261 = vmul.f32 %v4045, %v4224
    %v4262 = vmul.f32 %v4047, %v4232
    %v4263 = vmul.f32 %v4049, %v4233
    %v4264 = vmul.f32 %v4051, %v4234
    %v4265 = vmul.f32 %v4053, %v3630
    %v4266 = vmul.f32 %v4055, %v4235
    %v4267 = vmul.f32 %v4057, %v4236
    %v4268 = vmul.f32 %v4059, %v4237
    %v4269 = vmul.f32 %v4061, %v4225
    %v4270 = vmul.f32 %v3887, %v4062
    %v4271 = vmul.f32 %v3889, %v4063
    %v4272 = vmul.f32 %v3891, %v4064
    %v4273 = vmul.f32 %v3893, %v4065
    %v4274 = vmul.f32 %v3895, %v4066
    %v4275 = vmul.f32 %v3897, %v4067
    %v4276 = vmul.f32 %v3899, %v4068
    %v4277 = vmul.f32 %v3901, %v4069
    %v4278 = vmul.f32 %v3903, %v4070
    %v4279 = vmul.f32 %v3905, %v4071
    %v4280 = vmul.f32 %v3907, %v4072
    %v4281 = vmul.f32 %v3909, %v4073
    %v4282 = vmul.f32 %v3911, %v4074
    %v4283 = vmul.f32 %v3913, %v4075
    %v4284 = vmul.f32 %v3915, %v4076
    %v4285 = vmul.f32 %v3917, %v4077
    %v4286 = vadd.f32 %v4254, %v4270
    %v4287 = vadd.f32 %v4255, %v4271
    %v4288 = vadd.f32 %v4256, %v4272
    %v4289 = vadd.f32 %v4257, %v4273
    %v4290 = vadd.f32 %v4258, %v4274
    %v4291 = vadd.f32 %v4259, %v4275
    %v4292 = vadd.f32 %v4260, %v4276
    %v4293 = vadd.f32 %v4261, %v4277
    %v4294 = vadd.f32 %v4262, %v4278
    %v4295 = vadd.f32 %v4263, %v4279
    %v4296 = vadd.f32 %v4264, %v4280
    %v4297 = vadd.f32 %v4265, %v4281
    %v4298 = vadd.f32 %v4266, %v4282
    %v4299 = vadd.f32 %v4267, %v4283
    %v4300 = vadd.f32 %v4268, %v4284
    %v4301 = vadd.f32 %v4269, %v4285
    %v4302 = vtanh.pop %v4286
    %v4303 = vtanh.pop %v4287
    %v4304 = vtanh.pop %v4288
    %v4305 = vtanh.pop %v4289
    %v4306 = vtanh.pop %v4290
    %v4307 = vtanh.pop %v4291
    %v4308 = vtanh.pop %v4292
    %v4309 = vtanh.pop %v4293
    %v4310 = vtanh.pop %v4294
    %v4311 = vtanh.pop %v4295
    %v4312 = vtanh.pop %v4296
    %v4313 = vtanh.pop %v4297
    %v4314 = vtanh.pop %v4298
    %v4315 = vtanh.pop %v4299
    %v4316 = vtanh.pop %v4300
    %v4317 = vtanh.pop %v4301
    %v4318 = vmul.f32 %v4191, %v4302
    %v4319 = vmul.f32 %v4193, %v4303
    %v4320 = vmul.f32 %v4195, %v4304
    %v4321 = vmul.f32 %v4197, %v4305
    %v4322 = vmul.f32 %v4199, %v4306
    %v4323 = vmul.f32 %v4201, %v4307
    %v4324 = vmul.f32 %v4203, %v4308
    %v4325 = vmul.f32 %v4205, %v4309
    %v4326 = vmul.f32 %v4207, %v4310
    %v4327 = vmul.f32 %v4209, %v4311
    %v4328 = vmul.f32 %v4211, %v4312
    %v4329 = vmul.f32 %v4213, %v4313
    %v4330 = vmul.f32 %v4215, %v4314
    %v4331 = vmul.f32 %v4217, %v4315
    %v4332 = vmul.f32 %v4219, %v4316
    %v4333 = vmul.f32 %v4221, %v4317
    %vm4334 = vcmp.gt.f32.partialorder %v701, 3.0
    %vm4335 = vcmp.gt.f32.partialorder %v702, 3.0
    %v4336 = vsel %vm4334, 1, 0
    %v4337 = vsel %vm4335, 1, 0
    %4338 = vset.pattern.permute.xlu0 0
    %4339 = vperm.xlu0 %4338, %v4336
    %v4340 = vpop.permute.xlu0 %4339
    %4341 = vset.pattern.permute.xlu0 0
    %4342 = vperm.xlu0 %4341, %v4337
    %v4343 = vpop.permute.xlu0 %4342
    %vm4344 = vcmp.eq.s32.totalorder %v4340, 1
    %vm4345 = vcmp.eq.s32.totalorder %v4343, 1
    %v4362 = vlaneseq
    %v4363 = vshrl.u32 %v4362, 7
    %v4364 = vsub.s32 3, %v4363
    %v4365 = vrot.slane %v4318, %v4364
    %v4366 = vlaneseq
    %v4367 = vshrl.u32 %v4366, 7
    %v4368 = vsub.s32 3, %v4367
    %v4369 = vrot.slane %v4319, %v4368
    %v4370 = vlaneseq
    %v4371 = vshrl.u32 %v4370, 7
    %v4372 = vsub.s32 3, %v4371
    %v4373 = vrot.slane %v4320, %v4372
    %v4374 = vlaneseq
    %v4375 = vshrl.u32 %v4374, 7
    %v4376 = vsub.s32 3, %v4375
    %v4377 = vrot.slane %v4321, %v4376
    %v4378 = vlaneseq
    %v4379 = vshrl.u32 %v4378, 7
    %v4380 = vsub.s32 3, %v4379
    %v4381 = vrot.slane %v4322, %v4380
    %v4382 = vlaneseq
    %v4383 = vshrl.u32 %v4382, 7
    %v4384 = vsub.s32 3, %v4383
    %v4385 = vrot.slane %v4323, %v4384
    %v4386 = vlaneseq
    %v4387 = vshrl.u32 %v4386, 7
    %v4388 = vsub.s32 3, %v4387
    %v4389 = vrot.slane %v4324, %v4388
    %v4390 = vlaneseq
    %v4391 = vshrl.u32 %v4390, 7
    %v4392 = vsub.s32 3, %v4391
    %v4393 = vrot.slane %v4325, %v4392
    %v4394 = vlaneseq
    %v4395 = vshrl.u32 %v4394, 7
    %v4396 = vsub.s32 3, %v4395
    %v4397 = vrot.slane %v4326, %v4396
    %v4398 = vlaneseq
    %v4399 = vshrl.u32 %v4398, 7
    %v4400 = vsub.s32 3, %v4399
    %v4401 = vrot.slane %v4327, %v4400
    %v4402 = vlaneseq
    %v4403 = vshrl.u32 %v4402, 7
    %v4404 = vsub.s32 3, %v4403
    %v4405 = vrot.slane %v4328, %v4404
    %v4406 = vlaneseq
    %v4407 = vshrl.u32 %v4406, 7
    %v4408 = vsub.s32 3, %v4407
    %v4409 = vrot.slane %v4329, %v4408
    %v4410 = vlaneseq
    %v4411 = vshrl.u32 %v4410, 7
    %v4412 = vsub.s32 3, %v4411
    %v4413 = vrot.slane %v4330, %v4412
    %v4414 = vlaneseq
    %v4415 = vshrl.u32 %v4414, 7
    %v4416 = vsub.s32 3, %v4415
    %v4417 = vrot.slane %v4331, %v4416
    %v4418 = vlaneseq
    %v4419 = vshrl.u32 %v4418, 7
    %v4420 = vsub.s32 3, %v4419
    %v4421 = vrot.slane %v4332, %v4420
    %v4422 = vlaneseq
    %v4423 = vshrl.u32 %v4422, 7
    %v4424 = vsub.s32 3, %v4423
    %v4425 = vrot.slane %v4333, %v4424
    %v4426 = vsel %vm1662, %v4369, %v4365
    %v4427 = vsel %vm1664, %v4373, %v4426
    %v4428 = vsel %vm1666, %v4377, %v4427
    %v4429 = vsel %vm1668, %v4381, %v4428
    %v4430 = vsel %vm1670, %v4385, %v4429
    %v4431 = vsel %vm1672, %v4389, %v4430
    %v4432 = vsel %vm1674, %v4393, %v4431
    %v4433 = vsel %vm1662, %v4401, %v4397
    %v4434 = vsel %vm1664, %v4405, %v4433
    %v4435 = vsel %vm1666, %v4409, %v4434
    %v4436 = vsel %vm1668, %v4413, %v4435
    %v4437 = vsel %vm1670, %v4417, %v4436
    %v4438 = vsel %vm1672, %v4421, %v4437
    %v4439 = vsel %vm1674, %v4425, %v4438
    %v4442 = vsel %vm4344, %v4432, %v3627
    %v4443 = vsel %vm4345, %v4439, %v3628
    %4444 = vst [vmem:[#allocation2] sm:$0xff] %v4442
    %4445 = vst [vmem:[#allocation2 + $0x8] sm:$0xff] %v4443
    %v4462 = vlaneseq
    %v4463 = vshrl.u32 %v4462, 7
    %v4464 = vsub.s32 3, %v4463
    %v4465 = vrot.slane %v4286, %v4464
    %v4466 = vlaneseq
    %v4467 = vshrl.u32 %v4466, 7
    %v4468 = vsub.s32 3, %v4467
    %v4469 = vrot.slane %v4287, %v4468
    %v4470 = vlaneseq
    %v4471 = vshrl.u32 %v4470, 7
    %v4472 = vsub.s32 3, %v4471
    %v4473 = vrot.slane %v4288, %v4472
    %v4474 = vlaneseq
    %v4475 = vshrl.u32 %v4474, 7
    %v4476 = vsub.s32 3, %v4475
    %v4477 = vrot.slane %v4289, %v4476
    %v4478 = vlaneseq
    %v4479 = vshrl.u32 %v4478, 7
    %v4480 = vsub.s32 3, %v4479
    %v4481 = vrot.slane %v4290, %v4480
    %v4482 = vlaneseq
    %v4483 = vshrl.u32 %v4482, 7
    %v4484 = vsub.s32 3, %v4483
    %v4485 = vrot.slane %v4291, %v4484
    %v4486 = vlaneseq
    %v4487 = vshrl.u32 %v4486, 7
    %v4488 = vsub.s32 3, %v4487
    %v4489 = vrot.slane %v4292, %v4488
    %v4490 = vlaneseq
    %v4491 = vshrl.u32 %v4490, 7
    %v4492 = vsub.s32 3, %v4491
    %v4493 = vrot.slane %v4293, %v4492
    %v4494 = vlaneseq
    %v4495 = vshrl.u32 %v4494, 7
    %v4496 = vsub.s32 3, %v4495
    %v4497 = vrot.slane %v4294, %v4496
    %v4498 = vlaneseq
    %v4499 = vshrl.u32 %v4498, 7
    %v4500 = vsub.s32 3, %v4499
    %v4501 = vrot.slane %v4295, %v4500
    %v4502 = vlaneseq
    %v4503 = vshrl.u32 %v4502, 7
    %v4504 = vsub.s32 3, %v4503
    %v4505 = vrot.slane %v4296, %v4504
    %v4506 = vlaneseq
    %v4507 = vshrl.u32 %v4506, 7
    %v4508 = vsub.s32 3, %v4507
    %v4509 = vrot.slane %v4297, %v4508
    %v4510 = vlaneseq
    %v4511 = vshrl.u32 %v4510, 7
    %v4512 = vsub.s32 3, %v4511
    %v4513 = vrot.slane %v4298, %v4512
    %v4514 = vlaneseq
    %v4515 = vshrl.u32 %v4514, 7
    %v4516 = vsub.s32 3, %v4515
    %v4517 = vrot.slane %v4299, %v4516
    %v4518 = vlaneseq
    %v4519 = vshrl.u32 %v4518, 7
    %v4520 = vsub.s32 3, %v4519
    %v4521 = vrot.slane %v4300, %v4520
    %v4522 = vlaneseq
    %v4523 = vshrl.u32 %v4522, 7
    %v4524 = vsub.s32 3, %v4523
    %v4525 = vrot.slane %v4301, %v4524
    %v4526 = vsel %vm1662, %v4469, %v4465
    %v4527 = vsel %vm1664, %v4473, %v4526
    %v4528 = vsel %vm1666, %v4477, %v4527
    %v4529 = vsel %vm1668, %v4481, %v4528
    %v4530 = vsel %vm1670, %v4485, %v4529
    %v4531 = vsel %vm1672, %v4489, %v4530
    %v4532 = vsel %vm1674, %v4493, %v4531
    %v4533 = vsel %vm1662, %v4501, %v4497
    %v4534 = vsel %vm1664, %v4505, %v4533
    %v4535 = vsel %vm1666, %v4509, %v4534
    %v4536 = vsel %vm1668, %v4513, %v4535
    %v4537 = vsel %vm1670, %v4517, %v4536
    %v4538 = vsel %vm1672, %v4521, %v4537
    %v4539 = vsel %vm1674, %v4525, %v4538
    %v4542 = vsel %vm4344, %v4532, %v3629
    %v4543 = vsel %vm4345, %v4539, %v3630
    %4544 = vst [vmem:[#allocation3] sm:$0xff] %v4542
    %4545 = vst [vmem:[#allocation3 + $0x8] sm:$0xff] %v4543
    %v4546 = vld [vmem:[#allocation2] sm:$0xff]
    %v4547 = vld [vmem:[#allocation2 + $0x8] sm:$0xff]
    %v4548 = vld [vmem:[%s2] sm:$0xf]
    %v4549 = vld [vmem:[%s2 + $0x4] sm:$0xf]
    %v4550 = vld [vmem:[#allocation10] sm:$0xf]
    %v4551 = vld [vmem:[#allocation10 + $0x4] sm:$0xf]
    %v4552 = vld [vmem:[#allocation10 + $0x8] sm:$0xf]
    %v4553 = vld [vmem:[#allocation10 + $0xc] sm:$0xf]
    %v4554 = vld [vmem:[#allocation10 + $0x10] sm:$0xf]
    %v4555 = vld [vmem:[#allocation10 + $0x14] sm:$0xf]
    %v4556 = vld [vmem:[#allocation10 + $0x18] sm:$0xf]
    %v4557 = vld [vmem:[#allocation10 + $0x1c] sm:$0xf]
    %v4558 = vld [vmem:[#allocation10 + $0x20] sm:$0xf]
    %v4559 = vld [vmem:[#allocation10 + $0x24] sm:$0xf]
    %v4560 = vld [vmem:[#allocation10 + $0x28] sm:$0xf]
    %v4561 = vld [vmem:[#allocation10 + $0x2c] sm:$0xf]
    %v4562 = vld [vmem:[#allocation10 + $0x30] sm:$0xf]
    %v4563 = vld [vmem:[#allocation10 + $0x34] sm:$0xf]
    %v4564 = vld [vmem:[#allocation10 + $0x38] sm:$0xf]
    %v4565 = vld [vmem:[#allocation10 + $0x3c] sm:$0xf]
    %v4566 = vpack.c.bf16 %v4547, %v4546
    %v4567 = vld [vmem:[#allocation12] sm:$0xf]
    %v4568 = vld [vmem:[#allocation12 + $0x4] sm:$0xf]
    %v4569 = vld [vmem:[#allocation12 + $0x8] sm:$0xf]
    %v4570 = vld [vmem:[#allocation12 + $0xc] sm:$0xf]
    %v4571 = vld [vmem:[#allocation12 + $0x10] sm:$0xf]
    %v4572 = vld [vmem:[#allocation12 + $0x14] sm:$0xf]
    %v4573 = vld [vmem:[#allocation12 + $0x18] sm:$0xf]
    %v4574 = vld [vmem:[#allocation12 + $0x1c] sm:$0xf]
    %v4575 = vld [vmem:[#allocation12 + $0x20] sm:$0xf]
    %v4576 = vld [vmem:[#allocation12 + $0x24] sm:$0xf]
    %v4577 = vld [vmem:[#allocation12 + $0x28] sm:$0xf]
    %v4578 = vld [vmem:[#allocation12 + $0x2c] sm:$0xf]
    %v4579 = vld [vmem:[#allocation12 + $0x30] sm:$0xf]
    %v4580 = vld [vmem:[#allocation12 + $0x34] sm:$0xf]
    %v4581 = vld [vmem:[#allocation12 + $0x38] sm:$0xf]
    %v4582 = vld [vmem:[#allocation12 + $0x3c] sm:$0xf]
    %v4599 = vunpack.c.l.b16 %v4567
    %v4600 = vunpack.c.l.b16 %v4568
    %v4601 = vunpack.c.l.b16 %v4569
    %v4602 = vunpack.c.l.b16 %v4570
    %v4603 = vunpack.c.l.b16 %v4571
    %v4604 = vunpack.c.l.b16 %v4572
    %v4605 = vunpack.c.l.b16 %v4573
    %v4606 = vunpack.c.l.b16 %v4574
    %v4607 = vunpack.c.l.b16 %v4575
    %v4608 = vunpack.c.l.b16 %v4576
    %v4609 = vunpack.c.l.b16 %v4577
    %v4610 = vunpack.c.l.b16 %v4578
    %v4611 = vunpack.c.l.b16 %v4579
    %v4612 = vunpack.c.l.b16 %v4580
    %v4613 = vunpack.c.l.b16 %v4581
    %v4614 = vunpack.c.l.b16 %v4582
    %v4615 = vpack.c.b16 %v4600, %v4599
    %v4616 = vpack.c.b16 %v4602, %v4601
    %v4617 = vpack.c.b16 %v4604, %v4603
    %v4618 = vpack.c.b16 %v4606, %v4605
    %v4619 = vpack.c.b16 %v4608, %v4607
    %v4620 = vpack.c.b16 %v4610, %v4609
    %v4621 = vpack.c.b16 %v4612, %v4611
    %v4622 = vpack.c.b16 %v4614, %v4613
    %4631 = vmatprep.subr.bf16.mxu0 0
    %4632 = vmatpush1.bf16.msra.mxu0 %v4615
    %4633 = vmatprep.subr.bf16.mxu0 0
    %4634 = vmatpush1.bf16.msra.mxu0 %v4616
    %4635 = vmatprep.subr.bf16.mxu0 0
    %4636 = vmatpush1.bf16.msra.mxu0 %v4617
    %4637 = vmatprep.subr.bf16.mxu0 0
    %4638 = vmatpush1.bf16.msra.mxu0 %v4618
    %4639 = vmatprep.subr.bf16.mxu0 0
    %4640 = vmatpush1.bf16.msra.mxu0 %v4619
    %4641 = vmatprep.subr.bf16.mxu0 0
    %4642 = vmatpush1.bf16.msra.mxu0 %v4620
    %4643 = vmatprep.subr.bf16.mxu0 0
    %4644 = vmatpush1.bf16.msra.mxu0 %v4621
    %4645 = vmatprep.subr.bf16.mxu0 0
    %4646 = vmatpush1.bf16.msra.mxu0 %v4622
    %4647 = vmatprep.subr.bf16.mxu0 0
    %4648 = vmatpush1.bf16.msra.mxu0 0
    %4649 = vmatprep.subr.bf16.mxu0 0
    %4650 = vmatpush1.bf16.msra.mxu0 0
    %4651 = vmatprep.subr.bf16.mxu0 0
    %4652 = vmatpush1.bf16.msra.mxu0 0
    %4653 = vmatprep.subr.bf16.mxu0 0
    %4654 = vmatpush1.bf16.msra.mxu0 0
    %4655 = vmatprep.subr.bf16.mxu0 0
    %4656 = vmatpush1.bf16.msra.mxu0 0
    %4657 = vmatprep.subr.bf16.mxu0 0
    %4658 = vmatpush1.bf16.msra.mxu0 0
    %4659 = vmatprep.subr.bf16.mxu0 0
    %4660 = vmatpush1.bf16.msra.mxu0 0
    %4661 = vmatprep.subr.bf16.mxu0 0
    %4662 = vmatpush1.bf16.msra.mxu0 0
    %4663 = vmatprep.mubr.bf16.mxu0 0
    %4664 = vmatmul.mubr.bf16.gmra.mrb[0].mxu0 %v4566
    %v4665 = vpop.f32.mrb[0].mxu0
    %v4666 = vadd.f32 0.0, %v4665
    %v4667 = vpop.f32.mrb[0].mxu0
    %v4668 = vpop.f32.mrb[0].mxu0
    %v4669 = vadd.f32 0.0, %v4668
    %v4670 = vpop.f32.mrb[0].mxu0
    %4671 = vdwg.mxu0
    %v4674 = vunpack.c.l.b16 %v4548
    %v4675 = vunpack.c.l.b16 %v4549
    %v4676 = vpack.c.b16 %v4675, %v4674
    %v4694 = vunpack.c.l.b16 %v4550
    %v4695 = vunpack.c.l.b16 %v4551
    %v4696 = vunpack.c.l.b16 %v4552
    %v4697 = vunpack.c.l.b16 %v4553
    %v4698 = vunpack.c.l.b16 %v4554
    %v4699 = vunpack.c.l.b16 %v4555
    %v4700 = vunpack.c.l.b16 %v4556
    %v4701 = vunpack.c.l.b16 %v4557
    %v4702 = vunpack.c.l.b16 %v4558
    %v4703 = vunpack.c.l.b16 %v4559
    %v4704 = vunpack.c.l.b16 %v4560
    %v4705 = vunpack.c.l.b16 %v4561
    %v4706 = vunpack.c.l.b16 %v4562
    %v4707 = vunpack.c.l.b16 %v4563
    %v4708 = vunpack.c.l.b16 %v4564
    %v4709 = vunpack.c.l.b16 %v4565
    %v4710 = vpack.c.b16 %v4695, %v4694
    %v4711 = vpack.c.b16 %v4697, %v4696
    %v4712 = vpack.c.b16 %v4699, %v4698
    %v4713 = vpack.c.b16 %v4701, %v4700
    %v4714 = vpack.c.b16 %v4703, %v4702
    %v4715 = vpack.c.b16 %v4705, %v4704
    %v4716 = vpack.c.b16 %v4707, %v4706
    %v4717 = vpack.c.b16 %v4709, %v4708
    %4726 = vmatprep.subr.bf16.mxu0 0
    %4727 = vmatpush1.bf16.msra.mxu0 %v4710
    %4728 = vmatprep.subr.bf16.mxu0 0
    %4729 = vmatpush1.bf16.msra.mxu0 %v4711
    %4730 = vmatprep.subr.bf16.mxu0 0
    %4731 = vmatpush1.bf16.msra.mxu0 %v4712
    %4732 = vmatprep.subr.bf16.mxu0 0
    %4733 = vmatpush1.bf16.msra.mxu0 %v4713
    %4734 = vmatprep.subr.bf16.mxu0 0
    %4735 = vmatpush1.bf16.msra.mxu0 %v4714
    %4736 = vmatprep.subr.bf16.mxu0 0
    %4737 = vmatpush1.bf16.msra.mxu0 %v4715
    %4738 = vmatprep.subr.bf16.mxu0 0
    %4739 = vmatpush1.bf16.msra.mxu0 %v4716
    %4740 = vmatprep.subr.bf16.mxu0 0
    %4741 = vmatpush1.bf16.msra.mxu0 %v4717
    %4742 = vmatprep.subr.bf16.mxu0 0
    %4743 = vmatpush1.bf16.msra.mxu0 0
    %4744 = vmatprep.subr.bf16.mxu0 0
    %4745 = vmatpush1.bf16.msra.mxu0 0
    %4746 = vmatprep.subr.bf16.mxu0 0
    %4747 = vmatpush1.bf16.msra.mxu0 0
    %4748 = vmatprep.subr.bf16.mxu0 0
    %4749 = vmatpush1.bf16.msra.mxu0 0
    %4750 = vmatprep.subr.bf16.mxu0 0
    %4751 = vmatpush1.bf16.msra.mxu0 0
    %4752 = vmatprep.subr.bf16.mxu0 0
    %4753 = vmatpush1.bf16.msra.mxu0 0
    %4754 = vmatprep.subr.bf16.mxu0 0
    %4755 = vmatpush1.bf16.msra.mxu0 0
    %4756 = vmatprep.subr.bf16.mxu0 0
    %4757 = vmatpush1.bf16.msra.mxu0 0
    %4758 = vmatprep.mubr.bf16.mxu0 0
    %4759 = vmatmul.mubr.bf16.gmra.mrb[0].mxu0 %v4676
    %v4760 = vpop.f32.mrb[0].mxu0
    %v4761 = vadd.f32 %v4666, %v4760
    %v4762 = vpop.f32.mrb[0].mxu0
    %v4763 = vpop.f32.mrb[0].mxu0
    %v4764 = vadd.f32 %v4669, %v4763
    %v4765 = vpop.f32.mrb[0].mxu0
    %4766 = vdwg.mxu0
    %v4767 = vld [vmem:[%s9] sm:$0x1]
    %v4769 = vlaneseq
    %v4770 = vshrl.u32 %v4769, 7
    %v4771 = vsub.s32 0, %v4770
    %v4772 = vrot.slane %v4767, %v4771
    %v4774 = vadd.f32 %v4761, %v4772
    %v4775 = vadd.f32 %v4764, %v4772
    %v4776 = vmax.f32 %v4774, 0.0
    %v4777 = vmax.f32 %v4775, 0.0
    %v4778 = vld [vmem:[%s3] sm:$0xff]
    %v4779 = vld [vmem:[%s3 + $0x8] sm:$0xff]
    %v4780 = vmul.f32 %v4776, %v4778
    %v4781 = vmul.f32 %v4777, %v4779
    %v4782 = vpack.c.bf16 %v4781, %v4780
    %v4784 = vunpack.c.l.b16 %v4782
    %v4785 = vunpack.c.h.b16 %v4782
    %v4786 = vpack.c.b16 %v4784, %v4784
    %v4787 = vpack.c.b16 %v4785, %v4785
    %4790 = vst [vmem:[#allocation13] sm:$0xf] %v4786
    %4791 = vst [vmem:[#allocation13 + $0x4] sm:$0xf] %v4787
    // Predicated region
    $region62: #{tpu_custom_call.1} parent=1 // pred_check
      _
    $region63: #{tpu_custom_call.1} parent=1 // pred_check_branch
      %4793 = sbr.rel (0) target = $region65
    $region64: #{tpu_custom_call.1} parent=1 // pred_region
      %s4795 = ssub.s32 128, 128
      %4796 = vsyncadd [#allocation6], %s4795
      %s4797 = sshll.u32 [#allocation13], 4
      %s4798 = int_to_ptr.vmem [resolvable:$true] %s4797
      %4803 = dma.vmem_to_hbm [thread:$0]  %s4798, 128, %s10, [#allocation6], 64, 64, 4
    $region65: #{tpu_custom_call.1} parent=1 // pred_fallthru
      _
    // Predicated region
    $region66: #{tpu_custom_call.1} parent=1 // pred_check
      _
    $region67: #{tpu_custom_call.1} parent=1 // pred_check_branch
      %4805 = sbr.rel (0) target = $region69
    $region68: #{tpu_custom_call.1} parent=1 // pred_region
      %4806 = dma.done [#allocation6], 128
    $region69: #{tpu_custom_call.1} parent=1 // pred_fallthru
      _
    %4807 = vsyncpa [#allocation5], 1
    %4808 = vsyncpa [#allocation8], 1
    %4809 = vsyncpa [#allocation11], 1
    %4810 = vsyncpa [#allocation6], 1

</llo_original>
